<compile_context>
chip_gen: v6e
topology: v6e:2x2x1
jax: 0.10.0
libtpu: 0.0.40
codegen_flags: <defaults>
</compile_context>

<pallas_src>
import functools

import jax
import jax.numpy as jnp
from jax import lax
from jax.experimental import pallas as pl
from jax.experimental.pallas import tpu as pltpu

EVAL_STEPS = 7      # NMF2D eval_steps (module runs in eval mode)
INV_T = 1.0         # NMF2D.__init__ overrides inv_t to 1
EPS = 1e-6
LANES = 128


def _round_up(x, m):
    return ((x + m - 1) // m) * m


def _mm(a, b, ca, cb):
    """2-D matmul contracting dim `ca` of `a` with dim `cb` of `b`, f32 acc."""
    return lax.dot_general(
        a, b, dimension_numbers=(((ca,), (cb,)), ((), ())),
        preferred_element_type=jnp.float32)


def _hamburger_kernel(x_hbm, bases_ref, win_ref, bin_ref, wout_ref, bout_ref,
                      out_hbm,
                      xres, yres, coef_res, obuf, in_sem, out_sem,
                      *, n_tiles, tile_n, n_valid, eval_steps):
    """One grid step == one batch element.

    x_hbm:     (B, Cp, Np) bf16  HBM (memory_space=ANY), manual tile DMA in
    bases_ref: (1, R,  Cp) f32   NMF bases, rank-major (transposed)
    win_ref:   (Cp, Cp)    bf16  ham_in 1x1 conv weight (out_ch, in_ch)
    bin_ref:   (Cp, 1)     f32   ham_in bias (broadcast over N)
    wout_ref:  (Cp, Cp)    bf16  ham_out 1x1 conv weight
    bout_ref:  (Cp, 1)     f32   ham_out bias
    out_hbm:   (B, Cp, Np) bf16  HBM (memory_space=ANY), manual tile DMA out
    xres:      (Cp, Np)    bf16  VMEM copy of x (residual source)
    yres:      (Cp, Np)    bf16  VMEM relu(ham_in(x)) -- resident for NMF
    coef_res:  (R,  Np)    bf16  VMEM final coef (phase-3 tiles read it)
    obuf:      (2, Cp, tile_n) bf16  output DMA staging (double buffer)
    in_sem/out_sem: DMA semaphores, one per buffer slot
    """
    b = pl.program_id(0)
    bf16 = jnp.bfloat16
    n_pad = n_tiles * tile_n - n_valid

    w_in = win_ref[...]          # (Cp, Cp) bf16
    b_in = bin_ref[...]          # (Cp, 1)  f32
    w_out = wout_ref[...]        # (Cp, Cp) bf16
    b_out = bout_ref[...]        # (Cp, 1)  f32

    def tile_off(t):
        off = t * tile_n
        if not isinstance(t, int):
            off = pl.multiple_of(off, tile_n)
        return off

    def in_copy(t, slot):
        off = tile_off(t)
        return pltpu.make_async_copy(
            x_hbm.at[b, :, pl.ds(off, tile_n)],
            xres.at[:, pl.ds(off, tile_n)],
            in_sem.at[slot])

    def out_copy(t, slot):
        off = tile_off(t)
        return pltpu.make_async_copy(
            obuf.at[slot],
            out_hbm.at[b, :, pl.ds(off, tile_n)],
            out_sem.at[slot])

    # ---- phase 1: stream x in over N tiles, build y = relu(W_in @ x + b_in).
    for p in range(min(2, n_tiles)):          # prime the DMA pipeline (static)
        in_copy(p, p).start()

    @pl.loop(0, n_tiles)
    def _(t):
        slot = t & 1
        in_copy(t, slot).wait()

        @pl.when(t + 2 < n_tiles)
        def _():
            in_copy(t + 2, slot).start()

        off = tile_off(t)
        xt = xres[:, pl.ds(off, tile_n)]                       # (Cp, TN) bf16
        yt = jnp.maximum(_mm(w_in, xt, 1, 0) + b_in, 0.0)      # (Cp, TN) f32
        if n_pad:
            # Zero-padded spatial columns would otherwise pick up the ham_in
            # bias and contaminate the N-contractions inside the NMF loop.
            cols = off + lax.broadcasted_iota(jnp.int32, yt.shape, 1)
            yt = jnp.where(cols < n_valid, yt, 0.0)
        yres[:, pl.ds(off, tile_n)] = yt.astype(bf16)

    # ---- phase 2: NMF2D on the VMEM-resident y ------------------------------
    yb = yres[...]                  # (Cp, Np) bf16
    bases = bases_ref[0]            # (R, Cp)  f32, transposed orientation

    # local_inference init: coef = softmax(inv_t * x^T @ bases) over R.
    # coef is carried transposed: coef[r, n] == torch coef[n, r].
    s = _mm(bases.astype(bf16), yb, 1, 0)                      # (R, Np) f32
    if INV_T != 1.0:
        s = s * INV_T
    s = s - jnp.max(s, axis=0, keepdims=True)
    e = jnp.exp(s)
    coef = e / jnp.sum(e, axis=0, keepdims=True)               # exact divide

    def step(_, carry):
        bases, coef = carry
        b16 = bases.astype(bf16)
        c16 = coef.astype(bf16)
        # coef update (uses old bases)
        num_c = _mm(b16, yb, 1, 0)                             # (R, Np)
        btb = _mm(b16, b16, 1, 1)                              # (R, R) symmetric
        den_c = _mm(btb.astype(bf16), c16, 1, 0)               # (R, Np)
        coef = coef * num_c * pl.reciprocal(den_c + EPS, approx=True)
        # bases update (uses new coef, old bases)
        c16 = coef.astype(bf16)
        num_b = _mm(c16, yb, 1, 1)                             # (R, Cp)
        ctc = _mm(c16, c16, 1, 1)                              # (R, R) symmetric
        den_b = _mm(ctc.astype(bf16), b16, 1, 0)               # (R, Cp)
        bases = bases * num_b * pl.reciprocal(den_b + EPS, approx=True)
        return bases, coef

    bases, coef = lax.fori_loop(0, eval_steps, step, (bases, coef),
                                unroll=True)

    # compute_coef: one final coef update.
    b16 = bases.astype(bf16)
    c16 = coef.astype(bf16)
    num_c = _mm(b16, yb, 1, 0)
    btb = _mm(b16, b16, 1, 1)
    den_c = _mm(btb.astype(bf16), c16, 1, 0)
    coef = coef * num_c * pl.reciprocal(den_c + EPS, approx=True)
    coef_res[...] = coef.astype(bf16)

    # ---- phase 3: ham_out (re-associated) + residual + ReLU, streamed out.
    #   W_out @ (bases @ coef^T) == (W_out @ bases) @ coef^T
    wb16 = _mm(w_out, b16, 1, 1).astype(bf16)                  # (Cp, R)

    @pl.loop(0, n_tiles)
    def _(t):
        slot = t & 1

        @pl.when(t >= 2)
        def _():
            out_copy(t - 2, slot).wait()       # free the slot before reuse

        off = tile_off(t)
        ct = coef_res[:, pl.ds(off, tile_n)]                   # (R, TN) bf16
        zt = _mm(wb16, ct, 1, 0) + b_out                       # (Cp, TN) f32
        res = jnp.maximum(
            xres[:, pl.ds(off, tile_n)].astype(jnp.float32) + zt, 0.0)
        obuf[slot] = res.astype(bf16)
        out_copy(t, slot).start()

    for p in range(min(2, n_tiles)):            # drain outstanding stores
        t_last = n_tiles - 1 - p
        out_copy(t_last, t_last % 2).wait()


def _vmem_limit_bytes():
    try:
        kind = jax.devices()[0].device_kind.lower()
    except Exception:
        return None
    if "v7" in kind:
        return 56 * 1024 * 1024     # 64 MiB physical per TC; leave headroom
    if "v5" in kind or "v6" in kind:
        return 100 * 1024 * 1024    # 128 MiB physical
    return None


def _default_tile_n(n):
    for cand in (512, 384, 256, 128):
        if n % cand == 0:
            return cand
    return min(512, _round_up(n, 128))


def hamburger_forward(x_nchw, bases, w_in, b_in, w_out, b_out, tile_n=None):
    """x_nchw: (B, C, H, W) f32; bases: (B, C, R) f32 (L2-normalized over C).

    Returns (B, C, H, W) f32.
    """
    B, C, H, W = x_nchw.shape
    N = H * W
    R = bases.shape[-1]
    Cp = _round_up(C, LANES)
    pad_c = Cp - C

    if tile_n is None:
        tile_n = _default_tile_n(N)
    tile_n = _round_up(tile_n, LANES)
    Np = _round_up(N, tile_n)
    n_tiles = Np // tile_n
    pad_n = Np - N

    # NCHW -> (B, C, N) is a pure reshape; channels are zero-padded to a lane
    # multiple and the spatial axis to a tile multiple.  x is shipped as bf16
    # (halves HBM read traffic; the MXU consumes bf16 anyway).
    x_cn = jnp.pad(x_nchw.reshape(B, C, N),
                   ((0, 0), (0, pad_c), (0, pad_n))).astype(jnp.bfloat16)
    bases_rc = jnp.pad(jnp.swapaxes(bases, 1, 2),
                       ((0, 0), (0, 0), (0, pad_c))).astype(jnp.float32)
    w_in_p = jnp.pad(w_in, ((0, pad_c), (0, pad_c))).astype(jnp.bfloat16)
    w_out_p = jnp.pad(w_out, ((0, pad_c), (0, pad_c))).astype(jnp.bfloat16)
    b_in_p = jnp.pad(b_in, (0, pad_c)).reshape(Cp, 1).astype(jnp.float32)
    b_out_p = jnp.pad(b_out, (0, pad_c)).reshape(Cp, 1).astype(jnp.float32)

    kernel = functools.partial(
        _hamburger_kernel, n_tiles=n_tiles, tile_n=tile_n, n_valid=N,
        eval_steps=EVAL_STEPS)

    nmf_mm = 2 * R * Cp * Np + 2 * R * R * Np + 2 * R * R * Cp
    flops = B * (
        2 * Cp * Cp * Np                      # ham_in
        + 2 * R * Cp * Np                     # softmax scores
        + (2 * EVAL_STEPS + 1) * nmf_mm       # 7 full steps + compute_coef
        + 2 * Cp * R * Cp + 2 * Cp * R * Np)  # ham_out (re-associated)
    cost = pl.CostEstimate(
        flops=int(flops),
        transcendentals=int(B * R * Np),
        bytes_accessed=int(2 * x_cn.size + 2 * B * Cp * Np + 4 * bases_rc.size
                           + 2 * w_in_p.size + 2 * w_out_p.size))

    out = pl.pallas_call(
        kernel,
        out_shape=jax.ShapeDtypeStruct((B, Cp, Np), jnp.bfloat16),
        grid_spec=pltpu.PrefetchScalarGridSpec(
            num_scalar_prefetch=0,
            grid=(B,),
            in_specs=[
                pl.BlockSpec(memory_space=pl.ANY),                # x (HBM)
                pl.BlockSpec((1, R, Cp), lambda g: (g, 0, 0)),    # bases
                pl.BlockSpec((Cp, Cp), lambda g: (0, 0)),         # w_in
                pl.BlockSpec((Cp, 1), lambda g: (0, 0)),          # b_in
                pl.BlockSpec((Cp, Cp), lambda g: (0, 0)),         # w_out
                pl.BlockSpec((Cp, 1), lambda g: (0, 0)),          # b_out
            ],
            out_specs=pl.BlockSpec(memory_space=pl.ANY),          # out (HBM)
            scratch_shapes=[
                pltpu.VMEM((Cp, Np), jnp.bfloat16),        # xres (residual)
                pltpu.VMEM((Cp, Np), jnp.bfloat16),        # y = relu(ham_in)
                pltpu.VMEM((R, Np), jnp.bfloat16),         # final coef
                pltpu.VMEM((2, Cp, tile_n), jnp.bfloat16), # output staging
                pltpu.SemaphoreType.DMA((2,)),             # in_sem
                pltpu.SemaphoreType.DMA((2,)),             # out_sem
            ]),
        compiler_params=pltpu.CompilerParams(
            dimension_semantics=("parallel",),
            vmem_limit_bytes=_vmem_limit_bytes()),
        cost_estimate=cost,
    )(x_cn, bases_rc, w_in_p, b_in_p, w_out_p, b_out_p)

    return out[:, :C, :N].astype(jnp.float32).reshape(B, C, H, W)


def build_params(key, C, B, R):
    """Deterministic parameter/bases construction (synthetic, no checkpoint)."""
    k_win, k_bin, k_wout, k_bout, k_bases = jax.random.split(key, 5)
    scale = 1.0 / jnp.sqrt(jnp.float32(C))
    w_in = jax.random.normal(k_win, (C, C), jnp.float32) * scale
    b_in = jax.random.normal(k_bin, (C,), jnp.float32) * 0.01
    w_out = jax.random.normal(k_wout, (C, C), jnp.float32) * scale
    b_out = jax.random.normal(k_bout, (C,), jnp.float32) * 0.01
    # NMF2D._build_bases: uniform[0,1) of shape (B*S, D, R), L2-normalized
    # over D.  (torch.rand RNG parity is not reproducible -> built here.)
    bases = jax.random.uniform(k_bases, (B, C, R), jnp.float32)
    bases = bases / jnp.maximum(
        jnp.linalg.norm(bases, axis=1, keepdims=True), 1e-12)
    return w_in, b_in, w_out, b_out, bases


def _reference_forward(x_nchw, bases, w_in, b_in, w_out, b_out):
    """Pure-JAX reference of the PyTorch forward (torch orientation)."""
    B, C, H, W = x_nchw.shape
    N = H * W
    x = x_nchw.reshape(B, C, N)
    y = jnp.maximum(jnp.einsum('oc,bcn->bon', w_in, x)
                    + b_in[None, :, None], 0.0)

    def coef_update(bases, coef):
        num = jnp.einsum('bcn,bcr->bnr', y, bases)
        den = jnp.einsum('bnr,brs->bns', coef,
                         jnp.einsum('bcr,bcs->brs', bases, bases))
        return coef * num / (den + EPS)

    coef = jax.nn.softmax(
        INV_T * jnp.einsum('bcn,bcr->bnr', y, bases), axis=-1)
    for _ in range(EVAL_STEPS):
        coef = coef_update(bases, coef)
        num_b = jnp.einsum('bcn,bnr->bcr', y, coef)
        den_b = jnp.einsum('bcr,brs->bcs', bases,
                           jnp.einsum('bnr,bns->brs', coef, coef))
        bases = bases * num_b / (den_b + EPS)
    coef = coef_update(bases, coef)
    recon = jnp.einsum('bcr,bnr->bcn', bases, coef)
    z = jnp.einsum('oc,bcn->bon', w_out, recon) + b_out[None, :, None]
    return jnp.maximum(x + z, 0.0).reshape(B, C, H, W)


if __name__ == "__main__":
    # Small shapes consistent with the module: B=2, C=64 channels (padded to
    # 128 lanes in the wrapper), 16x16 spatial (N=256 -> two 128-wide N tiles
    # to exercise the streaming path), NMF rank R=16.
    B, C, H, W, R = 2, 64, 16, 16, 16

    key = jax.random.PRNGKey(0)
    k_x, k_p = jax.random.split(key)
    x = jax.random.normal(k_x, (B, C, H, W), jnp.float32)
    w_in, b_in, w_out, b_out, bases = build_params(k_p, C, B, R)

    out = hamburger_forward(x, bases, w_in, b_in, w_out, b_out, tile_n=128)
    out = jax.block_until_ready(out)

    assert out.shape == (B, C, H, W)
    assert bool(jnp.all(jnp.isfinite(out)))
    assert bool(jnp.all(out >= 0.0))          # final ReLU

    # Loose-tolerance check against a pure-JAX reference: the kernel feeds the
    # MXU in bf16 and uses approximate reciprocals inside 8 multiplicative NMF
    # updates, so a few-percent drift vs f32 is expected and accepted.
    ref = _reference_forward(x, bases, w_in, b_in, w_out, b_out)
    max_err = float(jnp.max(jnp.abs(out - ref)))
    scale = float(jnp.max(jnp.abs(ref)))
    assert max_err <= 0.1 * scale + 0.1, (max_err, scale)

    print("KERNEL_OK")
</pallas_src>

<mosaic_0001>
module attributes {stable_mosaic.version = 11 : i64} {
  func.func @_hamburger_kernel(%arg0: i32, %arg1: memref<2x128x256xbf16, #tpu.memory_space<any>>, %arg2: memref<1x16x128xf32, #tpu.memory_space<vmem>>, %arg3: memref<128x128xbf16, #tpu.memory_space<vmem>>, %arg4: memref<128x1xf32, #tpu.memory_space<vmem>>, %arg5: memref<128x128xbf16, #tpu.memory_space<vmem>>, %arg6: memref<128x1xf32, #tpu.memory_space<vmem>>, %arg7: memref<2x128x256xbf16, #tpu.memory_space<any>>, %arg8: memref<128x256xbf16, #tpu.memory_space<vmem>>, %arg9: memref<128x256xbf16, #tpu.memory_space<vmem>>, %arg10: memref<16x256xbf16, #tpu.memory_space<vmem>>, %arg11: memref<2x128x128xbf16, #tpu.memory_space<vmem>>, %arg12: memref<2x!tpu.dma_semaphore, #tpu.memory_space<semaphore_mem>>, %arg13: memref<2x!tpu.dma_semaphore, #tpu.memory_space<semaphore_mem>>) attributes {dimension_semantics = [#tpu.dimension_semantics<parallel>], iteration_bounds = array<i64: 2>, scalar_prefetch = 0 : i64, scratch_operands = 6 : i64, tpu.core_type = #tpu.core_type<tc>, window_params = [{}, {transform_indices = @transform_1, window_bounds = array<i64: 1, 16, 128>}, {pipeline_mode = #tpu.pipeline_mode<synchronous>, transform_indices = @transform_2, window_bounds = array<i64: 128, 128>}, {pipeline_mode = #tpu.pipeline_mode<synchronous>, transform_indices = @transform_3, window_bounds = array<i64: 128, 1>}, {pipeline_mode = #tpu.pipeline_mode<synchronous>, transform_indices = @transform_4, window_bounds = array<i64: 128, 128>}, {pipeline_mode = #tpu.pipeline_mode<synchronous>, transform_indices = @transform_5, window_bounds = array<i64: 128, 1>}, {}]} {
    %c0 = arith.constant 0 : index
    %c0_0 = arith.constant 0 : index
    %0 = vector.load %arg3[%c0, %c0_0] : memref<128x128xbf16, #tpu.memory_space<vmem>>, vector<128x128xbf16>
    %c0_1 = arith.constant 0 : index
    %c0_2 = arith.constant 0 : index
    %1 = vector.load %arg4[%c0_1, %c0_2] : memref<128x1xf32, #tpu.memory_space<vmem>>, vector<128x1xf32>
    %c0_3 = arith.constant 0 : index
    %c0_4 = arith.constant 0 : index
    %2 = vector.load %arg5[%c0_3, %c0_4] : memref<128x128xbf16, #tpu.memory_space<vmem>>, vector<128x128xbf16>
    %c0_5 = arith.constant 0 : index
    %c0_6 = arith.constant 0 : index
    %3 = vector.load %arg6[%c0_5, %c0_6] : memref<128x1xf32, #tpu.memory_space<vmem>>, vector<128x1xf32>
    %c0_i32 = arith.constant 0 : i32
    %c0_i32_7 = arith.constant 0 : i32
    %c0_i32_8 = arith.constant 0 : i32
    %4 = tpu.memref_slice %arg1[%arg0, %c0_i32_7, %c0_i32_8] : memref<2x128x256xbf16, #tpu.memory_space<any>> -> memref<1x128x128xbf16, #tpu.memory_space<any>>
    %5 = tpu.memref_squeeze %4 : memref<1x128x128xbf16, #tpu.memory_space<any>> -> memref<128x128xbf16, #tpu.memory_space<any>>
    %c0_i32_9 = arith.constant 0 : i32
    %c0_i32_10 = arith.constant 0 : i32
    %6 = tpu.memref_slice %arg8[%c0_i32_9, %c0_i32_10] : memref<128x256xbf16, #tpu.memory_space<vmem>> -> memref<128x128xbf16, #tpu.memory_space<vmem>>
    %7 = tpu.memref_slice %arg12[%c0_i32] : memref<2x!tpu.dma_semaphore, #tpu.memory_space<semaphore_mem>> -> memref<1x!tpu.dma_semaphore, #tpu.memory_space<semaphore_mem>>
    %8 = tpu.memref_squeeze %7 : memref<1x!tpu.dma_semaphore, #tpu.memory_space<semaphore_mem>> -> memref<!tpu.dma_semaphore, #tpu.memory_space<semaphore_mem>>
    tpu.enqueue_dma source(%5 : memref<128x128xbf16, #tpu.memory_space<any>>) target(%6 : memref<128x128xbf16, #tpu.memory_space<vmem>>) target_semaphore(%8 : memref<!tpu.dma_semaphore, #tpu.memory_space<semaphore_mem>>)
    %c1_i32 = arith.constant 1 : i32
    %c0_i32_11 = arith.constant 0 : i32
    %c128_i32 = arith.constant 128 : i32
    %9 = tpu.memref_slice %arg1[%arg0, %c0_i32_11, %c128_i32] : memref<2x128x256xbf16, #tpu.memory_space<any>> -> memref<1x128x128xbf16, #tpu.memory_space<any>>
    %10 = tpu.memref_squeeze %9 : memref<1x128x128xbf16, #tpu.memory_space<any>> -> memref<128x128xbf16, #tpu.memory_space<any>>
    %c0_i32_12 = arith.constant 0 : i32
    %c128_i32_13 = arith.constant 128 : i32
    %11 = tpu.memref_slice %arg8[%c0_i32_12, %c128_i32_13] : memref<128x256xbf16, #tpu.memory_space<vmem>> -> memref<128x128xbf16, #tpu.memory_space<vmem>>
    %12 = tpu.memref_slice %arg12[%c1_i32] : memref<2x!tpu.dma_semaphore, #tpu.memory_space<semaphore_mem>> -> memref<1x!tpu.dma_semaphore, #tpu.memory_space<semaphore_mem>>
    %13 = tpu.memref_squeeze %12 : memref<1x!tpu.dma_semaphore, #tpu.memory_space<semaphore_mem>> -> memref<!tpu.dma_semaphore, #tpu.memory_space<semaphore_mem>>
    tpu.enqueue_dma source(%10 : memref<128x128xbf16, #tpu.memory_space<any>>) target(%11 : memref<128x128xbf16, #tpu.memory_space<vmem>>) target_semaphore(%13 : memref<!tpu.dma_semaphore, #tpu.memory_space<semaphore_mem>>)
    %c0_i32_14 = arith.constant 0 : i32
    %c2_i32 = arith.constant 2 : i32
    %14 = arith.addi %c0_i32_14, %c2_i32 : i32
    %c1_i32_15 = arith.constant 1 : i32
    scf.for %arg14 = %c0_i32_14 to %14 step %c1_i32_15  : i32 {
      %c1_i32_106 = arith.constant 1 : i32
      %204 = arith.muli %arg14, %c1_i32_106 : i32
      %c0_i32_107 = arith.constant 0 : i32
      %205 = arith.addi %c0_i32_107, %204 : i32
      %c1_i32_108 = arith.constant 1 : i32
      %206 = arith.andi %205, %c1_i32_108 : i32
      %c128_i32_109 = arith.constant 128 : i32
      %207 = arith.muli %205, %c128_i32_109 : i32
      %208 = tpu.assume_multiple %207, 128 : i32
      %c0_i32_110 = arith.constant 0 : i32
      %209 = tpu.memref_slice %arg1[%arg0, %c0_i32_110, %208] : memref<2x128x256xbf16, #tpu.memory_space<any>> -> memref<1x128x128xbf16, #tpu.memory_space<any>>
      %210 = tpu.memref_squeeze %209 : memref<1x128x128xbf16, #tpu.memory_space<any>> -> memref<128x128xbf16, #tpu.memory_space<any>>
      %c0_i32_111 = arith.constant 0 : i32
      %211 = tpu.memref_slice %arg8[%c0_i32_111, %208] : memref<128x256xbf16, #tpu.memory_space<vmem>> -> memref<128x128xbf16, #tpu.memory_space<vmem>>
      %212 = tpu.memref_slice %arg12[%206] : memref<2x!tpu.dma_semaphore, #tpu.memory_space<semaphore_mem>> -> memref<1x!tpu.dma_semaphore, #tpu.memory_space<semaphore_mem>>
      %213 = tpu.memref_squeeze %212 : memref<1x!tpu.dma_semaphore, #tpu.memory_space<semaphore_mem>> -> memref<!tpu.dma_semaphore, #tpu.memory_space<semaphore_mem>>
      tpu.wait_dma2 semaphore(%213 : memref<!tpu.dma_semaphore, #tpu.memory_space<semaphore_mem>>) src(%210 : memref<128x128xbf16, #tpu.memory_space<any>>) dst(%211 : memref<128x128xbf16, #tpu.memory_space<vmem>>)
      %c2_i32_112 = arith.constant 2 : i32
      %214 = arith.addi %205, %c2_i32_112 : i32
      %c2_i32_113 = arith.constant 2 : i32
      %215 = arith.cmpi slt, %214, %c2_i32_113 : i32
      %216 = arith.extui %215 : i1 to i32
      %c0_i32_114 = arith.constant 0 : i32
      %217 = arith.cmpi ne, %216, %c0_i32_114 : i32
      scf.if %217 {
        %c2_i32_120 = arith.constant 2 : i32
        %230 = arith.addi %205, %c2_i32_120 : i32
        %c128_i32_121 = arith.constant 128 : i32
        %231 = arith.muli %230, %c128_i32_121 : i32
        %232 = tpu.assume_multiple %231, 128 : i32
        %c0_i32_122 = arith.constant 0 : i32
        %233 = tpu.memref_slice %arg1[%arg0, %c0_i32_122, %232] : memref<2x128x256xbf16, #tpu.memory_space<any>> -> memref<1x128x128xbf16, #tpu.memory_space<any>>
        %234 = tpu.memref_squeeze %233 : memref<1x128x128xbf16, #tpu.memory_space<any>> -> memref<128x128xbf16, #tpu.memory_space<any>>
        %c0_i32_123 = arith.constant 0 : i32
        %235 = tpu.memref_slice %arg8[%c0_i32_123, %232] : memref<128x256xbf16, #tpu.memory_space<vmem>> -> memref<128x128xbf16, #tpu.memory_space<vmem>>
        %236 = tpu.memref_slice %arg12[%206] : memref<2x!tpu.dma_semaphore, #tpu.memory_space<semaphore_mem>> -> memref<1x!tpu.dma_semaphore, #tpu.memory_space<semaphore_mem>>
        %237 = tpu.memref_squeeze %236 : memref<1x!tpu.dma_semaphore, #tpu.memory_space<semaphore_mem>> -> memref<!tpu.dma_semaphore, #tpu.memory_space<semaphore_mem>>
        tpu.enqueue_dma source(%234 : memref<128x128xbf16, #tpu.memory_space<any>>) target(%235 : memref<128x128xbf16, #tpu.memory_space<vmem>>) target_semaphore(%237 : memref<!tpu.dma_semaphore, #tpu.memory_space<semaphore_mem>>)
      } else {
      }
      %c128_i32_115 = arith.constant 128 : i32
      %218 = arith.muli %205, %c128_i32_115 : i32
      %219 = tpu.assume_multiple %218, 128 : i32
      %c0_116 = arith.constant 0 : index
      %220 = arith.index_cast %219 : i32 to index
      %221 = vector.load %arg8[%c0_116, %220] : memref<128x256xbf16, #tpu.memory_space<vmem>>, vector<128x128xbf16>
      %cst_117 = arith.constant dense<0.000000e+00> : vector<128x128xf32>
      %222 = tpu.matmul %0, %221, %cst_117 {dimension_numbers = #tpu.dot_dimension_numbers<[1], [0], [0], [1], [0, 0, 1, 1], [], []>} : vector<128x128xbf16>, vector<128x128xbf16>, vector<128x128xf32> -> vector<128x128xf32>
      %223 = vector.broadcast %1 : vector<128x1xf32> to vector<128x128xf32>
      %224 = arith.addf %222, %223 : vector<128x128xf32>
      %cst_118 = arith.constant 0.000000e+00 : f32
      %225 = vector.broadcast %cst_118 : f32 to vector<128x128xf32>
      %226 = arith.maximumf %224, %225 : vector<128x128xf32>
      %227 = arith.truncf %226 : vector<128x128xf32> to vector<128x128xbf16>
      %c0_119 = arith.constant 0 : index
      %228 = arith.index_cast %219 : i32 to index
      %229 = vector.load %arg9[%c0_119, %228] : memref<128x256xbf16, #tpu.memory_space<vmem>>, vector<128x128xbf16>
      tpu.vector_store %arg9[%c0_119, %228], %227 {strides = array<i32>} : memref<128x256xbf16, #tpu.memory_space<vmem>>, vector<128x128xbf16>,
    }
    %c2_i32_16 = arith.constant 2 : i32
    %c0_17 = arith.constant 0 : index
    %c0_18 = arith.constant 0 : index
    %15 = vector.load %arg9[%c0_17, %c0_18] : memref<128x256xbf16, #tpu.memory_space<vmem>>, vector<128x256xbf16>
    %c0_19 = arith.constant 0 : index
    %c0_20 = arith.constant 0 : index
    %c0_21 = arith.constant 0 : index
    %16 = vector.load %arg2[%c0_19, %c0_20, %c0_21] : memref<1x16x128xf32, #tpu.memory_space<vmem>>, vector<1x16x128xf32>
    %17 = vector.shape_cast %16 : vector<1x16x128xf32> to vector<16x128xf32>
    %18 = arith.truncf %17 : vector<16x128xf32> to vector<16x128xbf16>
    %cst = arith.constant dense<0.000000e+00> : vector<16x256xf32>
    %19 = tpu.matmul %18, %15, %cst {dimension_numbers = #tpu.dot_dimension_numbers<[1], [0], [0], [1], [0, 0, 1, 1], [], []>} : vector<16x128xbf16>, vector<128x256xbf16>, vector<16x256xf32> -> vector<16x256xf32>
    %cst_22 = arith.constant dense<0xFF800000> : vector<256xf32>
    %20 = vector.multi_reduction <maximumf>, %19, %cst_22 [0] : vector<16x256xf32> to vector<256xf32>
    %21 = vector.shape_cast %20 : vector<256xf32> to vector<1x256xf32>
    %22 = vector.broadcast %21 : vector<1x256xf32> to vector<16x256xf32>
    %23 = arith.subf %19, %22 : vector<16x256xf32>
    %24 = math.exp %23 : vector<16x256xf32>
    %cst_23 = arith.constant dense<0.000000e+00> : vector<256xf32>
    %25 = vector.multi_reduction <add>, %24, %cst_23 [0] : vector<16x256xf32> to vector<256xf32>
    %26 = vector.shape_cast %25 : vector<256xf32> to vector<1x256xf32>
    %27 = vector.broadcast %26 : vector<1x256xf32> to vector<16x256xf32>
    %28 = arith.divf %24, %27 : vector<16x256xf32>
    %c0_i32_24 = arith.constant 0 : i32
    %29 = arith.truncf %17 : vector<16x128xf32> to vector<16x128xbf16>
    %30 = arith.truncf %28 : vector<16x256xf32> to vector<16x256xbf16>
    %cst_25 = arith.constant dense<0.000000e+00> : vector<16x256xf32>
    %31 = tpu.matmul %29, %15, %cst_25 {dimension_numbers = #tpu.dot_dimension_numbers<[1], [0], [0], [1], [0, 0, 1, 1], [], []>} : vector<16x128xbf16>, vector<128x256xbf16>, vector<16x256xf32> -> vector<16x256xf32>
    %cst_26 = arith.constant dense<0.000000e+00> : vector<16x16xf32>
    %32 = tpu.matmul %29, %29, %cst_26 {dimension_numbers = #tpu.dot_dimension_numbers<[1], [1], [0], [0], [0, 0, 1, 0], [], []>} : vector<16x128xbf16>, vector<16x128xbf16>, vector<16x16xf32> -> vector<16x16xf32>
    %33 = arith.truncf %32 : vector<16x16xf32> to vector<16x16xbf16>
    %cst_27 = arith.constant dense<0.000000e+00> : vector<16x256xf32>
    %34 = tpu.matmul %33, %30, %cst_27 {dimension_numbers = #tpu.dot_dimension_numbers<[1], [0], [0], [1], [0, 0, 1, 1], [], []>} : vector<16x16xbf16>, vector<16x256xbf16>, vector<16x256xf32> -> vector<16x256xf32>
    %35 = arith.mulf %28, %31 : vector<16x256xf32>
    %cst_28 = arith.constant 9.99999997E-7 : f32
    %36 = vector.broadcast %cst_28 : f32 to vector<16x256xf32>
    %37 = arith.addf %34, %36 : vector<16x256xf32>
    %38 = tpu.reciprocal %37 {approx = true} : vector<16x256xf32> -> vector<16x256xf32>
    %39 = arith.mulf %35, %38 : vector<16x256xf32>
    %40 = arith.truncf %39 : vector<16x256xf32> to vector<16x256xbf16>
    %cst_29 = arith.constant dense<0.000000e+00> : vector<16x128xf32>
    %41 = tpu.matmul %40, %15, %cst_29 {dimension_numbers = #tpu.dot_dimension_numbers<[1], [1], [0], [0], [0, 0, 1, 0], [], []>} : vector<16x256xbf16>, vector<128x256xbf16>, vector<16x128xf32> -> vector<16x128xf32>
    %cst_30 = arith.constant dense<0.000000e+00> : vector<16x16xf32>
    %42 = tpu.matmul %40, %40, %cst_30 {dimension_numbers = #tpu.dot_dimension_numbers<[1], [1], [0], [0], [0, 0, 1, 0], [], []>} : vector<16x256xbf16>, vector<16x256xbf16>, vector<16x16xf32> -> vector<16x16xf32>
    %43 = arith.truncf %42 : vector<16x16xf32> to vector<16x16xbf16>
    %cst_31 = arith.constant dense<0.000000e+00> : vector<16x128xf32>
    %44 = tpu.matmul %43, %29, %cst_31 {dimension_numbers = #tpu.dot_dimension_numbers<[1], [0], [0], [1], [0, 0, 1, 1], [], []>} : vector<16x16xbf16>, vector<16x128xbf16>, vector<16x128xf32> -> vector<16x128xf32>
    %45 = arith.mulf %17, %41 : vector<16x128xf32>
    %cst_32 = arith.constant 9.99999997E-7 : f32
    %46 = vector.broadcast %cst_32 : f32 to vector<16x128xf32>
    %47 = arith.addf %44, %46 : vector<16x128xf32>
    %48 = tpu.reciprocal %47 {approx = true} : vector<16x128xf32> -> vector<16x128xf32>
    %49 = arith.mulf %45, %48 : vector<16x128xf32>
    %c1_i32_33 = arith.constant 1 : i32
    %50 = arith.truncf %49 : vector<16x128xf32> to vector<16x128xbf16>
    %51 = arith.truncf %39 : vector<16x256xf32> to vector<16x256xbf16>
    %cst_34 = arith.constant dense<0.000000e+00> : vector<16x256xf32>
    %52 = tpu.matmul %50, %15, %cst_34 {dimension_numbers = #tpu.dot_dimension_numbers<[1], [0], [0], [1], [0, 0, 1, 1], [], []>} : vector<16x128xbf16>, vector<128x256xbf16>, vector<16x256xf32> -> vector<16x256xf32>
    %cst_35 = arith.constant dense<0.000000e+00> : vector<16x16xf32>
    %53 = tpu.matmul %50, %50, %cst_35 {dimension_numbers = #tpu.dot_dimension_numbers<[1], [1], [0], [0], [0, 0, 1, 0], [], []>} : vector<16x128xbf16>, vector<16x128xbf16>, vector<16x16xf32> -> vector<16x16xf32>
    %54 = arith.truncf %53 : vector<16x16xf32> to vector<16x16xbf16>
    %cst_36 = arith.constant dense<0.000000e+00> : vector<16x256xf32>
    %55 = tpu.matmul %54, %51, %cst_36 {dimension_numbers = #tpu.dot_dimension_numbers<[1], [0], [0], [1], [0, 0, 1, 1], [], []>} : vector<16x16xbf16>, vector<16x256xbf16>, vector<16x256xf32> -> vector<16x256xf32>
    %56 = arith.mulf %39, %52 : vector<16x256xf32>
    %cst_37 = arith.constant 9.99999997E-7 : f32
    %57 = vector.broadcast %cst_37 : f32 to vector<16x256xf32>
    %58 = arith.addf %55, %57 : vector<16x256xf32>
    %59 = tpu.reciprocal %58 {approx = true} : vector<16x256xf32> -> vector<16x256xf32>
    %60 = arith.mulf %56, %59 : vector<16x256xf32>
    %61 = arith.truncf %60 : vector<16x256xf32> to vector<16x256xbf16>
    %cst_38 = arith.constant dense<0.000000e+00> : vector<16x128xf32>
    %62 = tpu.matmul %61, %15, %cst_38 {dimension_numbers = #tpu.dot_dimension_numbers<[1], [1], [0], [0], [0, 0, 1, 0], [], []>} : vector<16x256xbf16>, vector<128x256xbf16>, vector<16x128xf32> -> vector<16x128xf32>
    %cst_39 = arith.constant dense<0.000000e+00> : vector<16x16xf32>
    %63 = tpu.matmul %61, %61, %cst_39 {dimension_numbers = #tpu.dot_dimension_numbers<[1], [1], [0], [0], [0, 0, 1, 0], [], []>} : vector<16x256xbf16>, vector<16x256xbf16>, vector<16x16xf32> -> vector<16x16xf32>
    %64 = arith.truncf %63 : vector<16x16xf32> to vector<16x16xbf16>
    %cst_40 = arith.constant dense<0.000000e+00> : vector<16x128xf32>
    %65 = tpu.matmul %64, %50, %cst_40 {dimension_numbers = #tpu.dot_dimension_numbers<[1], [0], [0], [1], [0, 0, 1, 1], [], []>} : vector<16x16xbf16>, vector<16x128xbf16>, vector<16x128xf32> -> vector<16x128xf32>
    %66 = arith.mulf %49, %62 : vector<16x128xf32>
    %cst_41 = arith.constant 9.99999997E-7 : f32
    %67 = vector.broadcast %cst_41 : f32 to vector<16x128xf32>
    %68 = arith.addf %65, %67 : vector<16x128xf32>
    %69 = tpu.reciprocal %68 {approx = true} : vector<16x128xf32> -> vector<16x128xf32>
    %70 = arith.mulf %66, %69 : vector<16x128xf32>
    %c2_i32_42 = arith.constant 2 : i32
    %71 = arith.truncf %70 : vector<16x128xf32> to vector<16x128xbf16>
    %72 = arith.truncf %60 : vector<16x256xf32> to vector<16x256xbf16>
    %cst_43 = arith.constant dense<0.000000e+00> : vector<16x256xf32>
    %73 = tpu.matmul %71, %15, %cst_43 {dimension_numbers = #tpu.dot_dimension_numbers<[1], [0], [0], [1], [0, 0, 1, 1], [], []>} : vector<16x128xbf16>, vector<128x256xbf16>, vector<16x256xf32> -> vector<16x256xf32>
    %cst_44 = arith.constant dense<0.000000e+00> : vector<16x16xf32>
    %74 = tpu.matmul %71, %71, %cst_44 {dimension_numbers = #tpu.dot_dimension_numbers<[1], [1], [0], [0], [0, 0, 1, 0], [], []>} : vector<16x128xbf16>, vector<16x128xbf16>, vector<16x16xf32> -> vector<16x16xf32>
    %75 = arith.truncf %74 : vector<16x16xf32> to vector<16x16xbf16>
    %cst_45 = arith.constant dense<0.000000e+00> : vector<16x256xf32>
    %76 = tpu.matmul %75, %72, %cst_45 {dimension_numbers = #tpu.dot_dimension_numbers<[1], [0], [0], [1], [0, 0, 1, 1], [], []>} : vector<16x16xbf16>, vector<16x256xbf16>, vector<16x256xf32> -> vector<16x256xf32>
    %77 = arith.mulf %60, %73 : vector<16x256xf32>
    %cst_46 = arith.constant 9.99999997E-7 : f32
    %78 = vector.broadcast %cst_46 : f32 to vector<16x256xf32>
    %79 = arith.addf %76, %78 : vector<16x256xf32>
    %80 = tpu.reciprocal %79 {approx = true} : vector<16x256xf32> -> vector<16x256xf32>
    %81 = arith.mulf %77, %80 : vector<16x256xf32>
    %82 = arith.truncf %81 : vector<16x256xf32> to vector<16x256xbf16>
    %cst_47 = arith.constant dense<0.000000e+00> : vector<16x128xf32>
    %83 = tpu.matmul %82, %15, %cst_47 {dimension_numbers = #tpu.dot_dimension_numbers<[1], [1], [0], [0], [0, 0, 1, 0], [], []>} : vector<16x256xbf16>, vector<128x256xbf16>, vector<16x128xf32> -> vector<16x128xf32>
    %cst_48 = arith.constant dense<0.000000e+00> : vector<16x16xf32>
    %84 = tpu.matmul %82, %82, %cst_48 {dimension_numbers = #tpu.dot_dimension_numbers<[1], [1], [0], [0], [0, 0, 1, 0], [], []>} : vector<16x256xbf16>, vector<16x256xbf16>, vector<16x16xf32> -> vector<16x16xf32>
    %85 = arith.truncf %84 : vector<16x16xf32> to vector<16x16xbf16>
    %cst_49 = arith.constant dense<0.000000e+00> : vector<16x128xf32>
    %86 = tpu.matmul %85, %71, %cst_49 {dimension_numbers = #tpu.dot_dimension_numbers<[1], [0], [0], [1], [0, 0, 1, 1], [], []>} : vector<16x16xbf16>, vector<16x128xbf16>, vector<16x128xf32> -> vector<16x128xf32>
    %87 = arith.mulf %70, %83 : vector<16x128xf32>
    %cst_50 = arith.constant 9.99999997E-7 : f32
    %88 = vector.broadcast %cst_50 : f32 to vector<16x128xf32>
    %89 = arith.addf %86, %88 : vector<16x128xf32>
    %90 = tpu.reciprocal %89 {approx = true} : vector<16x128xf32> -> vector<16x128xf32>
    %91 = arith.mulf %87, %90 : vector<16x128xf32>
    %c3_i32 = arith.constant 3 : i32
    %92 = arith.truncf %91 : vector<16x128xf32> to vector<16x128xbf16>
    %93 = arith.truncf %81 : vector<16x256xf32> to vector<16x256xbf16>
    %cst_51 = arith.constant dense<0.000000e+00> : vector<16x256xf32>
    %94 = tpu.matmul %92, %15, %cst_51 {dimension_numbers = #tpu.dot_dimension_numbers<[1], [0], [0], [1], [0, 0, 1, 1], [], []>} : vector<16x128xbf16>, vector<128x256xbf16>, vector<16x256xf32> -> vector<16x256xf32>
    %cst_52 = arith.constant dense<0.000000e+00> : vector<16x16xf32>
    %95 = tpu.matmul %92, %92, %cst_52 {dimension_numbers = #tpu.dot_dimension_numbers<[1], [1], [0], [0], [0, 0, 1, 0], [], []>} : vector<16x128xbf16>, vector<16x128xbf16>, vector<16x16xf32> -> vector<16x16xf32>
    %96 = arith.truncf %95 : vector<16x16xf32> to vector<16x16xbf16>
    %cst_53 = arith.constant dense<0.000000e+00> : vector<16x256xf32>
    %97 = tpu.matmul %96, %93, %cst_53 {dimension_numbers = #tpu.dot_dimension_numbers<[1], [0], [0], [1], [0, 0, 1, 1], [], []>} : vector<16x16xbf16>, vector<16x256xbf16>, vector<16x256xf32> -> vector<16x256xf32>
    %98 = arith.mulf %81, %94 : vector<16x256xf32>
    %cst_54 = arith.constant 9.99999997E-7 : f32
    %99 = vector.broadcast %cst_54 : f32 to vector<16x256xf32>
    %100 = arith.addf %97, %99 : vector<16x256xf32>
    %101 = tpu.reciprocal %100 {approx = true} : vector<16x256xf32> -> vector<16x256xf32>
    %102 = arith.mulf %98, %101 : vector<16x256xf32>
    %103 = arith.truncf %102 : vector<16x256xf32> to vector<16x256xbf16>
    %cst_55 = arith.constant dense<0.000000e+00> : vector<16x128xf32>
    %104 = tpu.matmul %103, %15, %cst_55 {dimension_numbers = #tpu.dot_dimension_numbers<[1], [1], [0], [0], [0, 0, 1, 0], [], []>} : vector<16x256xbf16>, vector<128x256xbf16>, vector<16x128xf32> -> vector<16x128xf32>
    %cst_56 = arith.constant dense<0.000000e+00> : vector<16x16xf32>
    %105 = tpu.matmul %103, %103, %cst_56 {dimension_numbers = #tpu.dot_dimension_numbers<[1], [1], [0], [0], [0, 0, 1, 0], [], []>} : vector<16x256xbf16>, vector<16x256xbf16>, vector<16x16xf32> -> vector<16x16xf32>
    %106 = arith.truncf %105 : vector<16x16xf32> to vector<16x16xbf16>
    %cst_57 = arith.constant dense<0.000000e+00> : vector<16x128xf32>
    %107 = tpu.matmul %106, %92, %cst_57 {dimension_numbers = #tpu.dot_dimension_numbers<[1], [0], [0], [1], [0, 0, 1, 1], [], []>} : vector<16x16xbf16>, vector<16x128xbf16>, vector<16x128xf32> -> vector<16x128xf32>
    %108 = arith.mulf %91, %104 : vector<16x128xf32>
    %cst_58 = arith.constant 9.99999997E-7 : f32
    %109 = vector.broadcast %cst_58 : f32 to vector<16x128xf32>
    %110 = arith.addf %107, %109 : vector<16x128xf32>
    %111 = tpu.reciprocal %110 {approx = true} : vector<16x128xf32> -> vector<16x128xf32>
    %112 = arith.mulf %108, %111 : vector<16x128xf32>
    %c4_i32 = arith.constant 4 : i32
    %113 = arith.truncf %112 : vector<16x128xf32> to vector<16x128xbf16>
    %114 = arith.truncf %102 : vector<16x256xf32> to vector<16x256xbf16>
    %cst_59 = arith.constant dense<0.000000e+00> : vector<16x256xf32>
    %115 = tpu.matmul %113, %15, %cst_59 {dimension_numbers = #tpu.dot_dimension_numbers<[1], [0], [0], [1], [0, 0, 1, 1], [], []>} : vector<16x128xbf16>, vector<128x256xbf16>, vector<16x256xf32> -> vector<16x256xf32>
    %cst_60 = arith.constant dense<0.000000e+00> : vector<16x16xf32>
    %116 = tpu.matmul %113, %113, %cst_60 {dimension_numbers = #tpu.dot_dimension_numbers<[1], [1], [0], [0], [0, 0, 1, 0], [], []>} : vector<16x128xbf16>, vector<16x128xbf16>, vector<16x16xf32> -> vector<16x16xf32>
    %117 = arith.truncf %116 : vector<16x16xf32> to vector<16x16xbf16>
    %cst_61 = arith.constant dense<0.000000e+00> : vector<16x256xf32>
    %118 = tpu.matmul %117, %114, %cst_61 {dimension_numbers = #tpu.dot_dimension_numbers<[1], [0], [0], [1], [0, 0, 1, 1], [], []>} : vector<16x16xbf16>, vector<16x256xbf16>, vector<16x256xf32> -> vector<16x256xf32>
    %119 = arith.mulf %102, %115 : vector<16x256xf32>
    %cst_62 = arith.constant 9.99999997E-7 : f32
    %120 = vector.broadcast %cst_62 : f32 to vector<16x256xf32>
    %121 = arith.addf %118, %120 : vector<16x256xf32>
    %122 = tpu.reciprocal %121 {approx = true} : vector<16x256xf32> -> vector<16x256xf32>
    %123 = arith.mulf %119, %122 : vector<16x256xf32>
    %124 = arith.truncf %123 : vector<16x256xf32> to vector<16x256xbf16>
    %cst_63 = arith.constant dense<0.000000e+00> : vector<16x128xf32>
    %125 = tpu.matmul %124, %15, %cst_63 {dimension_numbers = #tpu.dot_dimension_numbers<[1], [1], [0], [0], [0, 0, 1, 0], [], []>} : vector<16x256xbf16>, vector<128x256xbf16>, vector<16x128xf32> -> vector<16x128xf32>
    %cst_64 = arith.constant dense<0.000000e+00> : vector<16x16xf32>
    %126 = tpu.matmul %124, %124, %cst_64 {dimension_numbers = #tpu.dot_dimension_numbers<[1], [1], [0], [0], [0, 0, 1, 0], [], []>} : vector<16x256xbf16>, vector<16x256xbf16>, vector<16x16xf32> -> vector<16x16xf32>
    %127 = arith.truncf %126 : vector<16x16xf32> to vector<16x16xbf16>
    %cst_65 = arith.constant dense<0.000000e+00> : vector<16x128xf32>
    %128 = tpu.matmul %127, %113, %cst_65 {dimension_numbers = #tpu.dot_dimension_numbers<[1], [0], [0], [1], [0, 0, 1, 1], [], []>} : vector<16x16xbf16>, vector<16x128xbf16>, vector<16x128xf32> -> vector<16x128xf32>
    %129 = arith.mulf %112, %125 : vector<16x128xf32>
    %cst_66 = arith.constant 9.99999997E-7 : f32
    %130 = vector.broadcast %cst_66 : f32 to vector<16x128xf32>
    %131 = arith.addf %128, %130 : vector<16x128xf32>
    %132 = tpu.reciprocal %131 {approx = true} : vector<16x128xf32> -> vector<16x128xf32>
    %133 = arith.mulf %129, %132 : vector<16x128xf32>
    %c5_i32 = arith.constant 5 : i32
    %134 = arith.truncf %133 : vector<16x128xf32> to vector<16x128xbf16>
    %135 = arith.truncf %123 : vector<16x256xf32> to vector<16x256xbf16>
    %cst_67 = arith.constant dense<0.000000e+00> : vector<16x256xf32>
    %136 = tpu.matmul %134, %15, %cst_67 {dimension_numbers = #tpu.dot_dimension_numbers<[1], [0], [0], [1], [0, 0, 1, 1], [], []>} : vector<16x128xbf16>, vector<128x256xbf16>, vector<16x256xf32> -> vector<16x256xf32>
    %cst_68 = arith.constant dense<0.000000e+00> : vector<16x16xf32>
    %137 = tpu.matmul %134, %134, %cst_68 {dimension_numbers = #tpu.dot_dimension_numbers<[1], [1], [0], [0], [0, 0, 1, 0], [], []>} : vector<16x128xbf16>, vector<16x128xbf16>, vector<16x16xf32> -> vector<16x16xf32>
    %138 = arith.truncf %137 : vector<16x16xf32> to vector<16x16xbf16>
    %cst_69 = arith.constant dense<0.000000e+00> : vector<16x256xf32>
    %139 = tpu.matmul %138, %135, %cst_69 {dimension_numbers = #tpu.dot_dimension_numbers<[1], [0], [0], [1], [0, 0, 1, 1], [], []>} : vector<16x16xbf16>, vector<16x256xbf16>, vector<16x256xf32> -> vector<16x256xf32>
    %140 = arith.mulf %123, %136 : vector<16x256xf32>
    %cst_70 = arith.constant 9.99999997E-7 : f32
    %141 = vector.broadcast %cst_70 : f32 to vector<16x256xf32>
    %142 = arith.addf %139, %141 : vector<16x256xf32>
    %143 = tpu.reciprocal %142 {approx = true} : vector<16x256xf32> -> vector<16x256xf32>
    %144 = arith.mulf %140, %143 : vector<16x256xf32>
    %145 = arith.truncf %144 : vector<16x256xf32> to vector<16x256xbf16>
    %cst_71 = arith.constant dense<0.000000e+00> : vector<16x128xf32>
    %146 = tpu.matmul %145, %15, %cst_71 {dimension_numbers = #tpu.dot_dimension_numbers<[1], [1], [0], [0], [0, 0, 1, 0], [], []>} : vector<16x256xbf16>, vector<128x256xbf16>, vector<16x128xf32> -> vector<16x128xf32>
    %cst_72 = arith.constant dense<0.000000e+00> : vector<16x16xf32>
    %147 = tpu.matmul %145, %145, %cst_72 {dimension_numbers = #tpu.dot_dimension_numbers<[1], [1], [0], [0], [0, 0, 1, 0], [], []>} : vector<16x256xbf16>, vector<16x256xbf16>, vector<16x16xf32> -> vector<16x16xf32>
    %148 = arith.truncf %147 : vector<16x16xf32> to vector<16x16xbf16>
    %cst_73 = arith.constant dense<0.000000e+00> : vector<16x128xf32>
    %149 = tpu.matmul %148, %134, %cst_73 {dimension_numbers = #tpu.dot_dimension_numbers<[1], [0], [0], [1], [0, 0, 1, 1], [], []>} : vector<16x16xbf16>, vector<16x128xbf16>, vector<16x128xf32> -> vector<16x128xf32>
    %150 = arith.mulf %133, %146 : vector<16x128xf32>
    %cst_74 = arith.constant 9.99999997E-7 : f32
    %151 = vector.broadcast %cst_74 : f32 to vector<16x128xf32>
    %152 = arith.addf %149, %151 : vector<16x128xf32>
    %153 = tpu.reciprocal %152 {approx = true} : vector<16x128xf32> -> vector<16x128xf32>
    %154 = arith.mulf %150, %153 : vector<16x128xf32>
    %c6_i32 = arith.constant 6 : i32
    %155 = arith.truncf %154 : vector<16x128xf32> to vector<16x128xbf16>
    %156 = arith.truncf %144 : vector<16x256xf32> to vector<16x256xbf16>
    %cst_75 = arith.constant dense<0.000000e+00> : vector<16x256xf32>
    %157 = tpu.matmul %155, %15, %cst_75 {dimension_numbers = #tpu.dot_dimension_numbers<[1], [0], [0], [1], [0, 0, 1, 1], [], []>} : vector<16x128xbf16>, vector<128x256xbf16>, vector<16x256xf32> -> vector<16x256xf32>
    %cst_76 = arith.constant dense<0.000000e+00> : vector<16x16xf32>
    %158 = tpu.matmul %155, %155, %cst_76 {dimension_numbers = #tpu.dot_dimension_numbers<[1], [1], [0], [0], [0, 0, 1, 0], [], []>} : vector<16x128xbf16>, vector<16x128xbf16>, vector<16x16xf32> -> vector<16x16xf32>
    %159 = arith.truncf %158 : vector<16x16xf32> to vector<16x16xbf16>
    %cst_77 = arith.constant dense<0.000000e+00> : vector<16x256xf32>
    %160 = tpu.matmul %159, %156, %cst_77 {dimension_numbers = #tpu.dot_dimension_numbers<[1], [0], [0], [1], [0, 0, 1, 1], [], []>} : vector<16x16xbf16>, vector<16x256xbf16>, vector<16x256xf32> -> vector<16x256xf32>
    %161 = arith.mulf %144, %157 : vector<16x256xf32>
    %cst_78 = arith.constant 9.99999997E-7 : f32
    %162 = vector.broadcast %cst_78 : f32 to vector<16x256xf32>
    %163 = arith.addf %160, %162 : vector<16x256xf32>
    %164 = tpu.reciprocal %163 {approx = true} : vector<16x256xf32> -> vector<16x256xf32>
    %165 = arith.mulf %161, %164 : vector<16x256xf32>
    %166 = arith.truncf %165 : vector<16x256xf32> to vector<16x256xbf16>
    %cst_79 = arith.constant dense<0.000000e+00> : vector<16x128xf32>
    %167 = tpu.matmul %166, %15, %cst_79 {dimension_numbers = #tpu.dot_dimension_numbers<[1], [1], [0], [0], [0, 0, 1, 0], [], []>} : vector<16x256xbf16>, vector<128x256xbf16>, vector<16x128xf32> -> vector<16x128xf32>
    %cst_80 = arith.constant dense<0.000000e+00> : vector<16x16xf32>
    %168 = tpu.matmul %166, %166, %cst_80 {dimension_numbers = #tpu.dot_dimension_numbers<[1], [1], [0], [0], [0, 0, 1, 0], [], []>} : vector<16x256xbf16>, vector<16x256xbf16>, vector<16x16xf32> -> vector<16x16xf32>
    %169 = arith.truncf %168 : vector<16x16xf32> to vector<16x16xbf16>
    %cst_81 = arith.constant dense<0.000000e+00> : vector<16x128xf32>
    %170 = tpu.matmul %169, %155, %cst_81 {dimension_numbers = #tpu.dot_dimension_numbers<[1], [0], [0], [1], [0, 0, 1, 1], [], []>} : vector<16x16xbf16>, vector<16x128xbf16>, vector<16x128xf32> -> vector<16x128xf32>
    %171 = arith.mulf %154, %167 : vector<16x128xf32>
    %cst_82 = arith.constant 9.99999997E-7 : f32
    %172 = vector.broadcast %cst_82 : f32 to vector<16x128xf32>
    %173 = arith.addf %170, %172 : vector<16x128xf32>
    %174 = tpu.reciprocal %173 {approx = true} : vector<16x128xf32> -> vector<16x128xf32>
    %175 = arith.mulf %171, %174 : vector<16x128xf32>
    %176 = arith.truncf %175 : vector<16x128xf32> to vector<16x128xbf16>
    %177 = arith.truncf %165 : vector<16x256xf32> to vector<16x256xbf16>
    %cst_83 = arith.constant dense<0.000000e+00> : vector<16x256xf32>
    %178 = tpu.matmul %176, %15, %cst_83 {dimension_numbers = #tpu.dot_dimension_numbers<[1], [0], [0], [1], [0, 0, 1, 1], [], []>} : vector<16x128xbf16>, vector<128x256xbf16>, vector<16x256xf32> -> vector<16x256xf32>
    %cst_84 = arith.constant dense<0.000000e+00> : vector<16x16xf32>
    %179 = tpu.matmul %176, %176, %cst_84 {dimension_numbers = #tpu.dot_dimension_numbers<[1], [1], [0], [0], [0, 0, 1, 0], [], []>} : vector<16x128xbf16>, vector<16x128xbf16>, vector<16x16xf32> -> vector<16x16xf32>
    %180 = arith.truncf %179 : vector<16x16xf32> to vector<16x16xbf16>
    %cst_85 = arith.constant dense<0.000000e+00> : vector<16x256xf32>
    %181 = tpu.matmul %180, %177, %cst_85 {dimension_numbers = #tpu.dot_dimension_numbers<[1], [0], [0], [1], [0, 0, 1, 1], [], []>} : vector<16x16xbf16>, vector<16x256xbf16>, vector<16x256xf32> -> vector<16x256xf32>
    %182 = arith.mulf %165, %178 : vector<16x256xf32>
    %cst_86 = arith.constant 9.99999997E-7 : f32
    %183 = vector.broadcast %cst_86 : f32 to vector<16x256xf32>
    %184 = arith.addf %181, %183 : vector<16x256xf32>
    %185 = tpu.reciprocal %184 {approx = true} : vector<16x256xf32> -> vector<16x256xf32>
    %186 = arith.mulf %182, %185 : vector<16x256xf32>
    %187 = arith.truncf %186 : vector<16x256xf32> to vector<16x256xbf16>
    %c0_87 = arith.constant 0 : index
    %c0_88 = arith.constant 0 : index
    %188 = vector.load %arg10[%c0_87, %c0_88] : memref<16x256xbf16, #tpu.memory_space<vmem>>, vector<16x256xbf16>
    tpu.vector_store %arg10[%c0_87, %c0_88], %187 {strides = array<i32>} : memref<16x256xbf16, #tpu.memory_space<vmem>>, vector<16x256xbf16>,
    %cst_89 = arith.constant dense<0.000000e+00> : vector<128x16xf32>
    %189 = tpu.matmul %2, %176, %cst_89 {dimension_numbers = #tpu.dot_dimension_numbers<[1], [1], [0], [0], [0, 0, 1, 0], [], []>} : vector<128x128xbf16>, vector<16x128xbf16>, vector<128x16xf32> -> vector<128x16xf32>
    %190 = arith.truncf %189 : vector<128x16xf32> to vector<128x16xbf16>
    %c0_i32_90 = arith.constant 0 : i32
    %c2_i32_91 = arith.constant 2 : i32
    %191 = arith.addi %c0_i32_90, %c2_i32_91 : i32
    %c1_i32_92 = arith.constant 1 : i32
    scf.for %arg14 = %c0_i32_90 to %191 step %c1_i32_92  : i32 {
      %c1_i32_106 = arith.constant 1 : i32
      %204 = arith.muli %arg14, %c1_i32_106 : i32
      %c0_i32_107 = arith.constant 0 : i32
      %205 = arith.addi %c0_i32_107, %204 : i32
      %c1_i32_108 = arith.constant 1 : i32
      %206 = arith.andi %205, %c1_i32_108 : i32
      %c2_i32_109 = arith.constant 2 : i32
      %207 = arith.cmpi sge, %205, %c2_i32_109 : i32
      %208 = arith.extui %207 : i1 to i32
      %c0_i32_110 = arith.constant 0 : i32
      %209 = arith.cmpi ne, %208, %c0_i32_110 : i32
      scf.if %209 {
        %c2_i32_122 = arith.constant 2 : i32
        %236 = arith.subi %205, %c2_i32_122 : i32
        %c128_i32_123 = arith.constant 128 : i32
        %237 = arith.muli %236, %c128_i32_123 : i32
        %238 = tpu.assume_multiple %237, 128 : i32
        %c0_i32_124 = arith.constant 0 : i32
        %c0_i32_125 = arith.constant 0 : i32
        %239 = tpu.memref_slice %arg11[%206, %c0_i32_124, %c0_i32_125] : memref<2x128x128xbf16, #tpu.memory_space<vmem>> -> memref<1x128x128xbf16, #tpu.memory_space<vmem>>
        %240 = tpu.memref_squeeze %239 : memref<1x128x128xbf16, #tpu.memory_space<vmem>> -> memref<128x128xbf16, #tpu.memory_space<vmem>>
        %c0_i32_126 = arith.constant 0 : i32
        %241 = tpu.memref_slice %arg7[%arg0, %c0_i32_126, %238] : memref<2x128x256xbf16, #tpu.memory_space<any>> -> memref<1x128x128xbf16, #tpu.memory_space<any>>
        %242 = tpu.memref_squeeze %241 : memref<1x128x128xbf16, #tpu.memory_space<any>> -> memref<128x128xbf16, #tpu.memory_space<any>>
        %243 = tpu.memref_slice %arg13[%206] : memref<2x!tpu.dma_semaphore, #tpu.memory_space<semaphore_mem>> -> memref<1x!tpu.dma_semaphore, #tpu.memory_space<semaphore_mem>>
        %244 = tpu.memref_squeeze %243 : memref<1x!tpu.dma_semaphore, #tpu.memory_space<semaphore_mem>> -> memref<!tpu.dma_semaphore, #tpu.memory_space<semaphore_mem>>
        tpu.wait_dma2 semaphore(%244 : memref<!tpu.dma_semaphore, #tpu.memory_space<semaphore_mem>>) src(%240 : memref<128x128xbf16, #tpu.memory_space<vmem>>) dst(%242 : memref<128x128xbf16, #tpu.memory_space<any>>)
      } else {
      }
      %c128_i32_111 = arith.constant 128 : i32
      %210 = arith.muli %205, %c128_i32_111 : i32
      %211 = tpu.assume_multiple %210, 128 : i32
      %c0_112 = arith.constant 0 : index
      %212 = arith.index_cast %211 : i32 to index
      %213 = vector.load %arg10[%c0_112, %212] : memref<16x256xbf16, #tpu.memory_space<vmem>>, vector<16x128xbf16>
      %cst_113 = arith.constant dense<0.000000e+00> : vector<128x128xf32>
      %214 = tpu.matmul %190, %213, %cst_113 {dimension_numbers = #tpu.dot_dimension_numbers<[1], [0], [0], [1], [0, 0, 1, 1], [], []>} : vector<128x16xbf16>, vector<16x128xbf16>, vector<128x128xf32> -> vector<128x128xf32>
      %215 = vector.broadcast %3 : vector<128x1xf32> to vector<128x128xf32>
      %216 = arith.addf %214, %215 : vector<128x128xf32>
      %c0_114 = arith.constant 0 : index
      %217 = arith.index_cast %211 : i32 to index
      %218 = vector.load %arg8[%c0_114, %217] : memref<128x256xbf16, #tpu.memory_space<vmem>>, vector<128x128xbf16>
      %219 = arith.extf %218 : vector<128x128xbf16> to vector<128x128xf32>
      %220 = arith.addf %219, %216 : vector<128x128xf32>
      %cst_115 = arith.constant 0.000000e+00 : f32
      %221 = vector.broadcast %cst_115 : f32 to vector<128x128xf32>
      %222 = arith.maximumf %220, %221 : vector<128x128xf32>
      %223 = arith.truncf %222 : vector<128x128xf32> to vector<128x128xbf16>
      %224 = arith.index_cast %206 : i32 to index
      %c0_116 = arith.constant 0 : index
      %c0_117 = arith.constant 0 : index
      %225 = vector.load %arg11[%224, %c0_116, %c0_117] : memref<2x128x128xbf16, #tpu.memory_space<vmem>>, vector<1x128x128xbf16>
      %226 = vector.shape_cast %225 : vector<1x128x128xbf16> to vector<128x128xbf16>
      %227 = vector.shape_cast %223 : vector<128x128xbf16> to vector<1x128x128xbf16>
      tpu.vector_store %arg11[%224, %c0_116, %c0_117], %227 {strides = array<i32>} : memref<2x128x128xbf16, #tpu.memory_space<vmem>>, vector<1x128x128xbf16>,
      %c128_i32_118 = arith.constant 128 : i32
      %228 = arith.muli %205, %c128_i32_118 : i32
      %229 = tpu.assume_multiple %228, 128 : i32
      %c0_i32_119 = arith.constant 0 : i32
      %c0_i32_120 = arith.constant 0 : i32
      %230 = tpu.memref_slice %arg11[%206, %c0_i32_119, %c0_i32_120] : memref<2x128x128xbf16, #tpu.memory_space<vmem>> -> memref<1x128x128xbf16, #tpu.memory_space<vmem>>
      %231 = tpu.memref_squeeze %230 : memref<1x128x128xbf16, #tpu.memory_space<vmem>> -> memref<128x128xbf16, #tpu.memory_space<vmem>>
      %c0_i32_121 = arith.constant 0 : i32
      %232 = tpu.memref_slice %arg7[%arg0, %c0_i32_121, %229] : memref<2x128x256xbf16, #tpu.memory_space<any>> -> memref<1x128x128xbf16, #tpu.memory_space<any>>
      %233 = tpu.memref_squeeze %232 : memref<1x128x128xbf16, #tpu.memory_space<any>> -> memref<128x128xbf16, #tpu.memory_space<any>>
      %234 = tpu.memref_slice %arg13[%206] : memref<2x!tpu.dma_semaphore, #tpu.memory_space<semaphore_mem>> -> memref<1x!tpu.dma_semaphore, #tpu.memory_space<semaphore_mem>>
      %235 = tpu.memref_squeeze %234 : memref<1x!tpu.dma_semaphore, #tpu.memory_space<semaphore_mem>> -> memref<!tpu.dma_semaphore, #tpu.memory_space<semaphore_mem>>
      tpu.enqueue_dma source(%231 : memref<128x128xbf16, #tpu.memory_space<vmem>>) target(%233 : memref<128x128xbf16, #tpu.memory_space<any>>) target_semaphore(%235 : memref<!tpu.dma_semaphore, #tpu.memory_space<semaphore_mem>>)
    }
    %c2_i32_93 = arith.constant 2 : i32
    %c1_i32_94 = arith.constant 1 : i32
    %c1_i32_95 = arith.constant 1 : i32
    %c0_i32_96 = arith.constant 0 : i32
    %c0_i32_97 = arith.constant 0 : i32
    %192 = tpu.memref_slice %arg11[%c1_i32_94, %c0_i32_96, %c0_i32_97] : memref<2x128x128xbf16, #tpu.memory_space<vmem>> -> memref<1x128x128xbf16, #tpu.memory_space<vmem>>
    %193 = tpu.memref_squeeze %192 : memref<1x128x128xbf16, #tpu.memory_space<vmem>> -> memref<128x128xbf16, #tpu.memory_space<vmem>>
    %c0_i32_98 = arith.constant 0 : i32
    %c128_i32_99 = arith.constant 128 : i32
    %194 = tpu.memref_slice %arg7[%arg0, %c0_i32_98, %c128_i32_99] : memref<2x128x256xbf16, #tpu.memory_space<any>> -> memref<1x128x128xbf16, #tpu.memory_space<any>>
    %195 = tpu.memref_squeeze %194 : memref<1x128x128xbf16, #tpu.memory_space<any>> -> memref<128x128xbf16, #tpu.memory_space<any>>
    %196 = tpu.memref_slice %arg13[%c1_i32_95] : memref<2x!tpu.dma_semaphore, #tpu.memory_space<semaphore_mem>> -> memref<1x!tpu.dma_semaphore, #tpu.memory_space<semaphore_mem>>
    %197 = tpu.memref_squeeze %196 : memref<1x!tpu.dma_semaphore, #tpu.memory_space<semaphore_mem>> -> memref<!tpu.dma_semaphore, #tpu.memory_space<semaphore_mem>>
    tpu.wait_dma2 semaphore(%197 : memref<!tpu.dma_semaphore, #tpu.memory_space<semaphore_mem>>) src(%193 : memref<128x128xbf16, #tpu.memory_space<vmem>>) dst(%195 : memref<128x128xbf16, #tpu.memory_space<any>>)
    %c0_i32_100 = arith.constant 0 : i32
    %c0_i32_101 = arith.constant 0 : i32
    %c0_i32_102 = arith.constant 0 : i32
    %c0_i32_103 = arith.constant 0 : i32
    %198 = tpu.memref_slice %arg11[%c0_i32_100, %c0_i32_102, %c0_i32_103] : memref<2x128x128xbf16, #tpu.memory_space<vmem>> -> memref<1x128x128xbf16, #tpu.memory_space<vmem>>
    %199 = tpu.memref_squeeze %198 : memref<1x128x128xbf16, #tpu.memory_space<vmem>> -> memref<128x128xbf16, #tpu.memory_space<vmem>>
    %c0_i32_104 = arith.constant 0 : i32
    %c0_i32_105 = arith.constant 0 : i32
    %200 = tpu.memref_slice %arg7[%arg0, %c0_i32_104, %c0_i32_105] : memref<2x128x256xbf16, #tpu.memory_space<any>> -> memref<1x128x128xbf16, #tpu.memory_space<any>>
    %201 = tpu.memref_squeeze %200 : memref<1x128x128xbf16, #tpu.memory_space<any>> -> memref<128x128xbf16, #tpu.memory_space<any>>
    %202 = tpu.memref_slice %arg13[%c0_i32_101] : memref<2x!tpu.dma_semaphore, #tpu.memory_space<semaphore_mem>> -> memref<1x!tpu.dma_semaphore, #tpu.memory_space<semaphore_mem>>
    %203 = tpu.memref_squeeze %202 : memref<1x!tpu.dma_semaphore, #tpu.memory_space<semaphore_mem>> -> memref<!tpu.dma_semaphore, #tpu.memory_space<semaphore_mem>>
    tpu.wait_dma2 semaphore(%203 : memref<!tpu.dma_semaphore, #tpu.memory_space<semaphore_mem>>) src(%199 : memref<128x128xbf16, #tpu.memory_space<vmem>>) dst(%201 : memref<128x128xbf16, #tpu.memory_space<any>>)
    return
  }
  func.func @transform_1(%arg0: i32) -> (i32, i32, i32) {
    %c0_i32 = arith.constant 0 : i32
    %c0_i32_0 = arith.constant 0 : i32
    %c0_i32_1 = arith.constant 0 : i32
    return %arg0, %c0_i32, %c0_i32_0 : i32, i32, i32
  }
  func.func @transform_2(%arg0: i32) -> (i32, i32) {
    %c0_i32 = arith.constant 0 : i32
    %c0_i32_0 = arith.constant 0 : i32
    %c0_i32_1 = arith.constant 0 : i32
    return %c0_i32, %c0_i32_0 : i32, i32
  }
  func.func @transform_3(%arg0: i32) -> (i32, i32) {
    %c0_i32 = arith.constant 0 : i32
    %c0_i32_0 = arith.constant 0 : i32
    %c0_i32_1 = arith.constant 0 : i32
    return %c0_i32, %c0_i32_0 : i32, i32
  }
  func.func @transform_4(%arg0: i32) -> (i32, i32) {
    %c0_i32 = arith.constant 0 : i32
    %c0_i32_0 = arith.constant 0 : i32
    %c0_i32_1 = arith.constant 0 : i32
    return %c0_i32, %c0_i32_0 : i32, i32
  }
  func.func @transform_5(%arg0: i32) -> (i32, i32) {
    %c0_i32 = arith.constant 0 : i32
    %c0_i32_0 = arith.constant 0 : i32
    %c0_i32_1 = arith.constant 0 : i32
    return %c0_i32, %c0_i32_0 : i32, i32
  }
}

</mosaic_0001>

<llo_original>
// kernel: tpu_custom_call.1
$region0: #{tpu_custom_call.1}
  #allocation0 [shape = 'u32[]', space=smem, size = 0x4, offset = 0x4, fixed_abs, tag = 'smem constant byte address 0x4 - core index']
  #allocation1 [shape = 'u32[144,128]{1,0:T(1,128)}', space=vmem, size = 0x12000, scoped, tag = 'internal scratch']
  #allocation2 [shape = 'bf16[128,256]{1,0:T(8,128)(2,1)}', space=vmem, size = 0x10000, scoped, tag = 'scratch operand']
  #allocation3 [shape = 'bf16[128,256]{1,0:T(8,128)(2,1)}', space=vmem, size = 0x10000, scoped, tag = 'scratch operand']
  #allocation4 [shape = 'bf16[16,256]{1,0:T(8,128)(2,1)}', space=vmem, size = 0x2000, scoped, tag = 'scratch operand']
  #allocation5 [shape = 'bf16[2,128,128]{2,1,0:T(8,128)(2,1)}', space=vmem, size = 0x10000, scoped, tag = 'scratch operand']
  #allocation6 [shape = 's32[2]{0}', space=sflag, size = 0x8, scoped, tag = 'scratch operand']
  #allocation7 [shape = 's32[2]{0}', space=sflag, size = 0x8, scoped, tag = 'scratch operand']
  #allocation13 [shape = 's32[]', space=sflag, size = 0x4, offset = 0, fixed_abs, tag = 'sflag constant byte address 0x0 - dummy sync flag']
  #allocation14 [shape = 's32[]', space=sflag, size = 0x4, offset = 0, fixed_abs, tag = 'sflag constant byte address 0x0 - dummy sync flag']
  #allocation15 [shape = 's32[]', space=sflag, size = 0x4, offset = 0, fixed_abs, tag = 'sflag constant byte address 0x0 - dummy sync flag']
  #allocation16 [shape = 's32[]', space=sflag, size = 0x4, offset = 0, fixed_abs, tag = 'sflag constant byte address 0x0 - dummy sync flag']
  %s0 = inlined_call_operand.vmem [shape: bf16[2,128,256], index: 0, kind: input, shape index: {}]
  %s1 = inlined_call_operand.hbm [shape: f32[2,16,128], index: 1, kind: input, shape index: {}]
  %s2 = inlined_call_operand.hbm [shape: bf16[128,128], index: 2, kind: input, shape index: {}]
  %s3 = inlined_call_operand.vmem [shape: f32[128,1], index: 3, kind: input, shape index: {}]
  %s4 = inlined_call_operand.hbm [shape: bf16[128,128], index: 4, kind: input, shape index: {}]
  %s5 = inlined_call_operand.vmem [shape: f32[128,1], index: 5, kind: input, shape index: {}]
  %s6 = inlined_call_operand.hbm [shape: bf16[2,128,256], index: 6, kind: output, shape index: {}]
  %s7 = sld [smem:[#allocation0]]
  $region186: #{tpu_custom_call.1} parent=0
    _
  %s9 = ssub.s32 1, %s7
  %s10 = scalar_select 0, %s9, %s7
  $region1: #{tpu_custom_call.1} parent=0
    #allocation8 [shape = 'u8[16384]{0}', space=vmem, size = 0x4000, scoped, tag = 'input window, operand 1']
    #allocation9 [shape = 's32[2]{0}', space=sflag, size = 0x8, scoped, tag = 'scoped memory for tpu_custom_call.1']
    #allocation10 [shape = 'u8[32768]{0}', space=vmem, size = 0x8000, scoped, tag = 'input window, operand 2, single buffered']
    #allocation11 [shape = 's32[1]{0}', space=sflag, size = 0x4, scoped, tag = 'scoped memory for tpu_custom_call.1']
    #allocation12 [shape = 'u8[32768]{0}', space=vmem, size = 0x8000, scoped, tag = 'input window, operand 4, single buffered']
    %11 = vsyncpa [#allocation9], 0
    %s12 = scalar_lea.sflag [#allocation9], 1
    %13 = vsyncpa %s12, 0
    %14 = vsyncpa [#allocation11], 0
    loop: start=0, step=1, limit=3
    $region2: #{tpu_custom_call.1} parent=1 // loop_pre_header
      _
    $region3: #{tpu_custom_call.1} parent=1 // loop_header
      %s16 = sphi 0, %s20
      %p17 = scmp.ge.s32.totalorder %s16, 3
      %s25 = sphi 0, %s27
      %s28 = sphi 0, %s25
      %s38 = sphi 0, %s28
      %s42 = sphi 0, %s42
      %s44 = sphi 0, %s42
      %s52 = sphi 0, %s44
      %s56 = sphi 0, %s56
      %s58 = sphi 0, %s56
      %s66 = sphi 0, %s58
      %s70 = sphi 0, %s70
      %s72 = sphi 0, %s70
      %s80 = sphi 0, %s72
      %s84 = sphi 0, %s84
      %s86 = sphi 0, %s84
      %s94 = sphi 0, %s86
    $region4: #{tpu_custom_call.1} parent=1 // loop_header_branch
      %19 = sbr.rel (%p17) target = $region8
    $region5: #{tpu_custom_call.1} parent=1 // loop_body
      %s21 = ssub.s32 %s16, 1
      %s22 = sadd.s32 %s16, 1
      %s23 = ssub.s32 %s16, %s22
      %p24 = scmp.eq.s32.totalorder %s23, 0
      %s26 = sadd.s32 %s25, 1
      %s27 = scalar_select %p24, %s25, %s26
      %p29 = pneg %p24
      %p30 = scmp.eq.s32.totalorder %s16, 1
      %p31 = por %p29, %p30
      %p32 = scmp.ne.s32.totalorder %s25, %s28
      %p33 = scmp.eq.s32.totalorder %s16, 0
      %p34 = por %p32, %p33
      %p35 = scmp.ne.s32.totalorder %s25, %s28
      %p36 = scmp.eq.s32.totalorder %s21, 1
      %p37 = por %p35, %p36
      %p39 = scmp.ne.s32.totalorder %s28, %s38
      %p40 = scmp.eq.s32.totalorder %s21, 0
      %p41 = por %p39, %p40
      %s43 = sadd.s32 %s42, 1
      %p45 = scmp.eq.s32.totalorder %s16, 1
      %p46 = scmp.ne.s32.totalorder %s42, %s44
      %p47 = scmp.eq.s32.totalorder %s16, 0
      %p48 = por %p46, %p47
      %p49 = scmp.ne.s32.totalorder %s42, %s44
      %p50 = scmp.eq.s32.totalorder %s21, 1
      %p51 = por %p49, %p50
      %p53 = scmp.ne.s32.totalorder %s44, %s52
      %p54 = scmp.eq.s32.totalorder %s21, 0
      %p55 = por %p53, %p54
      %s57 = sadd.s32 %s56, 1
      %p59 = scmp.eq.s32.totalorder %s16, 1
      %p60 = scmp.ne.s32.totalorder %s56, %s58
      %p61 = scmp.eq.s32.totalorder %s16, 0
      %p62 = por %p60, %p61
      %p63 = scmp.ne.s32.totalorder %s56, %s58
      %p64 = scmp.eq.s32.totalorder %s21, 1
      %p65 = por %p63, %p64
      %p67 = scmp.ne.s32.totalorder %s58, %s66
      %p68 = scmp.eq.s32.totalorder %s21, 0
      %p69 = por %p67, %p68
      %s71 = sadd.s32 %s70, 1
      %p73 = scmp.eq.s32.totalorder %s16, 1
      %p74 = scmp.ne.s32.totalorder %s70, %s72
      %p75 = scmp.eq.s32.totalorder %s16, 0
      %p76 = por %p74, %p75
      %p77 = scmp.ne.s32.totalorder %s70, %s72
      %p78 = scmp.eq.s32.totalorder %s21, 1
      %p79 = por %p77, %p78
      %p81 = scmp.ne.s32.totalorder %s72, %s80
      %p82 = scmp.eq.s32.totalorder %s21, 0
      %p83 = por %p81, %p82
      %s85 = sadd.s32 %s84, 1
      %p87 = scmp.eq.s32.totalorder %s16, 1
      %p88 = scmp.ne.s32.totalorder %s84, %s86
      %p89 = scmp.eq.s32.totalorder %s16, 0
      %p90 = por %p88, %p89
      %p91 = scmp.ne.s32.totalorder %s84, %s86
      %p92 = scmp.eq.s32.totalorder %s21, 1
      %p93 = por %p91, %p92
      %p95 = scmp.ne.s32.totalorder %s86, %s94
      %p96 = scmp.eq.s32.totalorder %s21, 0
      %p97 = por %p95, %p96
      %p98 = scmp.le.s32.totalorder 1, %s16
      // Predicated region
      $region9: #{tpu_custom_call.1} parent=5 // pred_check
        %p99 = pneg %p98
      $region10: #{tpu_custom_call.1} parent=5 // pred_check_branch
        %101 = sbr.rel (%p99) target = $region12
      $region11: #{tpu_custom_call.1} parent=5 // pred_region
        %s102 = ssub.s32 %s16, 1
        // Predicated region
        $region13: #{tpu_custom_call.1} parent=11 // pred_check
          %p103 = pneg %p55
        $region14: #{tpu_custom_call.1} parent=11 // pred_check_branch
          %105 = sbr.rel (%p103) target = $region16
        $region15: #{tpu_custom_call.1} parent=11 // pred_region
          %s107 = ssub.s32 1024, 1024
          %108 = vsyncadd [#allocation11], %s107
          %s109 = sshll.u32 [#allocation10], 4
          %s110 = int_to_ptr.vmem [resolvable:$true] %s109
          %115 = dma.hbm_to_vmem [thread:$0]  %s2, 1024, %s110, [#allocation11], 64, 64, 4
        $region16: #{tpu_custom_call.1} parent=11 // pred_fallthru
          _
        // Predicated region
        $region17: #{tpu_custom_call.1} parent=11 // pred_check
          %p116 = pneg %p69
        $region18: #{tpu_custom_call.1} parent=11 // pred_check_branch
          %118 = sbr.rel (%p116) target = $region20
        $region19: #{tpu_custom_call.1} parent=11 // pred_region
          _
        $region20: #{tpu_custom_call.1} parent=11 // pred_fallthru
          _
        // Predicated region
        $region21: #{tpu_custom_call.1} parent=11 // pred_check
          %p119 = pneg %p83
        $region22: #{tpu_custom_call.1} parent=11 // pred_check_branch
          %121 = sbr.rel (%p119) target = $region24
        $region23: #{tpu_custom_call.1} parent=11 // pred_region
          %s123 = ssub.s32 1024, 1024
          %124 = vsyncadd [#allocation11], %s123
          %s125 = sshll.u32 [#allocation12], 4
          %s126 = int_to_ptr.vmem [resolvable:$true] %s125
          %131 = dma.hbm_to_vmem [thread:$0]  %s4, 1024, %s126, [#allocation11], 64, 64, 4
        $region24: #{tpu_custom_call.1} parent=11 // pred_fallthru
          _
        // Predicated region
        $region25: #{tpu_custom_call.1} parent=11 // pred_check
          %p132 = pneg %p97
        $region26: #{tpu_custom_call.1} parent=11 // pred_check_branch
          %134 = sbr.rel (%p132) target = $region28
        $region27: #{tpu_custom_call.1} parent=11 // pred_region
          _
        $region28: #{tpu_custom_call.1} parent=11 // pred_fallthru
          _
      $region12: #{tpu_custom_call.1} parent=5 // pred_fallthru
        _
      %p135 = scmp.lt.s32.totalorder %s16, 2
      // Predicated region
      $region29: #{tpu_custom_call.1} parent=5 // pred_check
        %p136 = pneg %p135
      $region30: #{tpu_custom_call.1} parent=5 // pred_check_branch
        %138 = sbr.rel (%p136) target = $region32
      $region31: #{tpu_custom_call.1} parent=5 // pred_region
        // Predicated region
        $region33: #{tpu_custom_call.1} parent=31 // pred_check
          %p139 = pneg %p34
        $region34: #{tpu_custom_call.1} parent=31 // pred_check_branch
          %141 = sbr.rel (%p139) target = $region36
        $region35: #{tpu_custom_call.1} parent=31 // pred_region
          %s142 = sand.u32 %s25, 1
          %s143 = scalar_lea.sflag [#allocation9], %s142
          %s144 = sand.u32 %s25, 1
          %s145 = smul.addr %s144, 16
          %s146 = scalar_lea.vmem [#allocation8], %s145
          %s148 = ssub.s32 256, 256
          %149 = vsyncadd %s143, %s148
          %s150 = smul.addr %s16, 2
          %s151 = smul.addr %s150, 128
          %s152 = scalar_lea.hbm %s1, %s151
          %s153 = sshll.u32 %s146, 4
          %s154 = int_to_ptr.vmem [resolvable:$true] %s153
          %159 = dma.hbm_to_vmem [thread:$0]  %s152, 256, %s154, %s143, 128, 128, 8
        $region36: #{tpu_custom_call.1} parent=31 // pred_fallthru
          _
      $region32: #{tpu_custom_call.1} parent=5 // pred_fallthru
        _
      %p160 = scmp.le.s32.totalorder 1, %s16
      // Predicated region
      $region37: #{tpu_custom_call.1} parent=5 // pred_check
        %p161 = pneg %p160
      $region38: #{tpu_custom_call.1} parent=5 // pred_check_branch
        %163 = sbr.rel (%p161) target = $region40
      $region39: #{tpu_custom_call.1} parent=5 // pred_region
        %s164 = ssub.s32 %s16, 1
        %s165 = sand.u32 %s28, 1
        %s166 = scalar_lea.sflag [#allocation9], %s165
        %s167 = sand.u32 %s28, 1
        %s168 = smul.addr %s167, 16
        %s169 = scalar_lea.vmem [#allocation8], %s168
        // Predicated region
        $region41: #{tpu_custom_call.1} parent=39 // pred_check
          %p170 = pneg %p41
        $region42: #{tpu_custom_call.1} parent=39 // pred_check_branch
          %172 = sbr.rel (%p170) target = $region44
        $region43: #{tpu_custom_call.1} parent=39 // pred_region
          %173 = dma.done %s166, 256
        $region44: #{tpu_custom_call.1} parent=39 // pred_fallthru
          _
        // Predicated region
        $region45: #{tpu_custom_call.1} parent=39 // pred_check
          %p174 = pneg %p55
        $region46: #{tpu_custom_call.1} parent=39 // pred_check_branch
          %176 = sbr.rel (%p174) target = $region48
        $region47: #{tpu_custom_call.1} parent=39 // pred_region
          %177 = dma.done [#allocation11], 1024
        $region48: #{tpu_custom_call.1} parent=39 // pred_fallthru
          _
        // Predicated region
        $region49: #{tpu_custom_call.1} parent=39 // pred_check
          %p178 = pneg %p83
        $region50: #{tpu_custom_call.1} parent=39 // pred_check_branch
          %180 = sbr.rel (%p178) target = $region52
        $region51: #{tpu_custom_call.1} parent=39 // pred_region
          %181 = dma.done [#allocation11], 1024
        $region52: #{tpu_custom_call.1} parent=39 // pred_fallthru
          _
        %s182 = sand.u32 %s28, 1
        %s183 = scalar_lea.sflag [#allocation9], %s182
        %s184 = sand.u32 %s28, 1
        %s185 = smul.addr %s184, 16
        %s186 = scalar_lea.vmem [#allocation8], %s185
        %p187 = pneg %p41
        %p188 = pneg %p37
        %p189 = pneg %p55
        %p190 = pneg %p51
        %p191 = pneg %p69
        %p192 = pneg %p65
        %p193 = pneg %p83
        %p194 = pneg %p79
        %p195 = pneg %p97
        %p196 = pneg %p93
        %v198 = vld [vmem:[#allocation10] sm:$0xf]
        %v199 = vld [vmem:[#allocation10 + $0x4] sm:$0xf]
        %v200 = vld [vmem:[#allocation10 + $0x8] sm:$0xf]
        %v201 = vld [vmem:[#allocation10 + $0xc] sm:$0xf]
        %v202 = vld [vmem:[#allocation10 + $0x10] sm:$0xf]
        %v203 = vld [vmem:[#allocation10 + $0x14] sm:$0xf]
        %v204 = vld [vmem:[#allocation10 + $0x18] sm:$0xf]
        %v205 = vld [vmem:[#allocation10 + $0x1c] sm:$0xf]
        %v206 = vld [vmem:[#allocation10 + $0x20] sm:$0xf]
        %v207 = vld [vmem:[#allocation10 + $0x24] sm:$0xf]
        %v208 = vld [vmem:[#allocation10 + $0x28] sm:$0xf]
        %v209 = vld [vmem:[#allocation10 + $0x2c] sm:$0xf]
        %v210 = vld [vmem:[#allocation10 + $0x30] sm:$0xf]
        %v211 = vld [vmem:[#allocation10 + $0x34] sm:$0xf]
        %v212 = vld [vmem:[#allocation10 + $0x38] sm:$0xf]
        %v213 = vld [vmem:[#allocation10 + $0x3c] sm:$0xf]
        %v214 = vld [vmem:[%s3] sm:$0xff]
        %v215 = vld [vmem:[%s3 + $0x8] sm:$0xff]
        %v216 = vld [vmem:[%s3 + $0x10] sm:$0xff]
        %v217 = vld [vmem:[%s3 + $0x18] sm:$0xff]
        %v218 = vld [vmem:[%s3 + $0x20] sm:$0xff]
        %v219 = vld [vmem:[%s3 + $0x28] sm:$0xff]
        %v220 = vld [vmem:[%s3 + $0x30] sm:$0xff]
        %v221 = vld [vmem:[%s3 + $0x38] sm:$0xff]
        %v222 = vld [vmem:[%s3 + $0x40] sm:$0xff]
        %v223 = vld [vmem:[%s3 + $0x48] sm:$0xff]
        %v224 = vld [vmem:[%s3 + $0x50] sm:$0xff]
        %v225 = vld [vmem:[%s3 + $0x58] sm:$0xff]
        %v226 = vld [vmem:[%s3 + $0x60] sm:$0xff]
        %v227 = vld [vmem:[%s3 + $0x68] sm:$0xff]
        %v228 = vld [vmem:[%s3 + $0x70] sm:$0xff]
        %v229 = vld [vmem:[%s3 + $0x78] sm:$0xff]
        %v230 = vld [vmem:[#allocation12] sm:$0xf]
        %v231 = vld [vmem:[#allocation12 + $0x4] sm:$0xf]
        %v232 = vld [vmem:[#allocation12 + $0x8] sm:$0xf]
        %v233 = vld [vmem:[#allocation12 + $0xc] sm:$0xf]
        %v234 = vld [vmem:[#allocation12 + $0x10] sm:$0xf]
        %v235 = vld [vmem:[#allocation12 + $0x14] sm:$0xf]
        %v236 = vld [vmem:[#allocation12 + $0x18] sm:$0xf]
        %v237 = vld [vmem:[#allocation12 + $0x1c] sm:$0xf]
        %v238 = vld [vmem:[#allocation12 + $0x20] sm:$0xf]
        %v239 = vld [vmem:[#allocation12 + $0x24] sm:$0xf]
        %v240 = vld [vmem:[#allocation12 + $0x28] sm:$0xf]
        %v241 = vld [vmem:[#allocation12 + $0x2c] sm:$0xf]
        %v242 = vld [vmem:[#allocation12 + $0x30] sm:$0xf]
        %v243 = vld [vmem:[#allocation12 + $0x34] sm:$0xf]
        %v244 = vld [vmem:[#allocation12 + $0x38] sm:$0xf]
        %v245 = vld [vmem:[#allocation12 + $0x3c] sm:$0xf]
        %v246 = vld [vmem:[%s5] sm:$0xff]
        %v247 = vld [vmem:[%s5 + $0x8] sm:$0xff]
        %v248 = vld [vmem:[%s5 + $0x10] sm:$0xff]
        %v249 = vld [vmem:[%s5 + $0x18] sm:$0xff]
        %v250 = vld [vmem:[%s5 + $0x20] sm:$0xff]
        %v251 = vld [vmem:[%s5 + $0x28] sm:$0xff]
        %v252 = vld [vmem:[%s5 + $0x30] sm:$0xff]
        %v253 = vld [vmem:[%s5 + $0x38] sm:$0xff]
        %v254 = vld [vmem:[%s5 + $0x40] sm:$0xff]
        %v255 = vld [vmem:[%s5 + $0x48] sm:$0xff]
        %v256 = vld [vmem:[%s5 + $0x50] sm:$0xff]
        %v257 = vld [vmem:[%s5 + $0x58] sm:$0xff]
        %v258 = vld [vmem:[%s5 + $0x60] sm:$0xff]
        %v259 = vld [vmem:[%s5 + $0x68] sm:$0xff]
        %v260 = vld [vmem:[%s5 + $0x70] sm:$0xff]
        %v261 = vld [vmem:[%s5 + $0x78] sm:$0xff]
        %s262 = smul.u32 %s21, 32
        %s263 = smul.addr %s262, 4
        %s264 = scalar_lea.vmem %s0, %s263
        %p266 = scmp.lt.u32.totalorder 4, 8
        %p267 = pneg %p266
        // Predicated region
        $region53: #{tpu_custom_call.1} parent=39 // pred_check
          _
        $region54: #{tpu_custom_call.1} parent=39 // pred_check_branch
          %269 = sbr.rel (%p266) target = $region56
        $region55: #{tpu_custom_call.1} parent=39 // pred_region
          %s315 = sand.u32 4, 7
          %p316 = scmp.eq.s32.totalorder %s315, 0
          %p317 = pneg %p316
          // Predicated region
          $region68: #{tpu_custom_call.1} parent=55 // pred_check
            _
          $region69: #{tpu_custom_call.1} parent=55 // pred_check_branch
            %319 = sbr.rel (%p316) target = $region71
          $region70: #{tpu_custom_call.1} parent=55 // pred_region
            %s320 = sand.u32 4, 7
            %s321 = ssub.s32 4, %s320
            %s322 = scalar_lea.vmem %s264, %s321
            %s323 = ssub.s32 4, %s320
            %s324 = scalar_lea.vmem [#allocation2], %s323
            loop: start=0, step=1, limit=1
            $region72: #{tpu_custom_call.1} parent=70 // loop_pre_header
              _
            $region73: #{tpu_custom_call.1} parent=70 // loop_header
              %s326 = sphi 0, %s330
              %p327 = scmp.ge.s32.totalorder %s326, 1
              %s331 = sphi %s264, %s264
              %s332 = sphi [#allocation2], [#allocation2]
            $region74: #{tpu_custom_call.1} parent=70 // loop_header_branch
              %329 = sbr.rel (%p327) target = $region78
            $region75: #{tpu_custom_call.1} parent=70 // loop_body
              _
            $region76: #{tpu_custom_call.1} parent=70 // loop_footer
              %s330 = sadd.s32 1, %s326
            $region77: #{tpu_custom_call.1} parent=70 // loop_footer_branch
              %325 = sbr.rel target = $region73
            $region78: #{tpu_custom_call.1} parent=70 // loop_exit
              _
            %s333 = sshll.u32 1, %s320
            %s334 = ssub.s32 %s333, 1
            loop: start=0, step=1, limit=1
            $region79: #{tpu_custom_call.1} parent=70 // loop_pre_header
              _
            $region80: #{tpu_custom_call.1} parent=70 // loop_header
              %s336 = sphi 0, %s340
              %p337 = scmp.ge.s32.totalorder %s336, 1
              %s341 = sphi %s322, %s322
              %s342 = sphi %s324, %s324
            $region81: #{tpu_custom_call.1} parent=70 // loop_header_branch
              %339 = sbr.rel (%p337) target = $region85
            $region82: #{tpu_custom_call.1} parent=70 // loop_body
              %v343 = vld [vmem:[%s341] sm:%s334]
              %344 = vst [vmem:[%s342] sm:%s334] %v343
              %v345 = vld [vmem:[%s341 + $0x8] sm:%s334]
              %346 = vst [vmem:[%s342 + $0x8] sm:%s334] %v345
              %v347 = vld [vmem:[%s341 + $0x10] sm:%s334]
              %348 = vst [vmem:[%s342 + $0x10] sm:%s334] %v347
              %v349 = vld [vmem:[%s341 + $0x18] sm:%s334]
              %350 = vst [vmem:[%s342 + $0x18] sm:%s334] %v349
              %v351 = vld [vmem:[%s341 + $0x20] sm:%s334]
              %352 = vst [vmem:[%s342 + $0x20] sm:%s334] %v351
              %v353 = vld [vmem:[%s341 + $0x28] sm:%s334]
              %354 = vst [vmem:[%s342 + $0x28] sm:%s334] %v353
              %v355 = vld [vmem:[%s341 + $0x30] sm:%s334]
              %356 = vst [vmem:[%s342 + $0x30] sm:%s334] %v355
              %v357 = vld [vmem:[%s341 + $0x38] sm:%s334]
              %358 = vst [vmem:[%s342 + $0x38] sm:%s334] %v357
              %v359 = vld [vmem:[%s341 + $0x40] sm:%s334]
              %360 = vst [vmem:[%s342 + $0x40] sm:%s334] %v359
              %v361 = vld [vmem:[%s341 + $0x48] sm:%s334]
              %362 = vst [vmem:[%s342 + $0x48] sm:%s334] %v361
              %v363 = vld [vmem:[%s341 + $0x50] sm:%s334]
              %364 = vst [vmem:[%s342 + $0x50] sm:%s334] %v363
              %v365 = vld [vmem:[%s341 + $0x58] sm:%s334]
              %366 = vst [vmem:[%s342 + $0x58] sm:%s334] %v365
              %v367 = vld [vmem:[%s341 + $0x60] sm:%s334]
              %368 = vst [vmem:[%s342 + $0x60] sm:%s334] %v367
              %v369 = vld [vmem:[%s341 + $0x68] sm:%s334]
              %370 = vst [vmem:[%s342 + $0x68] sm:%s334] %v369
              %v371 = vld [vmem:[%s341 + $0x70] sm:%s334]
              %372 = vst [vmem:[%s342 + $0x70] sm:%s334] %v371
              %v373 = vld [vmem:[%s341 + $0x78] sm:%s334]
              %374 = vst [vmem:[%s342 + $0x78] sm:%s334] %v373
            $region83: #{tpu_custom_call.1} parent=70 // loop_footer
              %s340 = sadd.s32 1, %s336
            $region84: #{tpu_custom_call.1} parent=70 // loop_footer_branch
              %335 = sbr.rel target = $region80
            $region85: #{tpu_custom_call.1} parent=70 // loop_exit
              _
          $region71: #{tpu_custom_call.1} parent=55 // pred_fallthru
            _
        $region56: #{tpu_custom_call.1} parent=39 // pred_fallthru
          _
        // Predicated region
        $region57: #{tpu_custom_call.1} parent=39 // pred_check
          %p270 = pneg %p266
        $region58: #{tpu_custom_call.1} parent=39 // pred_check_branch
          %272 = sbr.rel (%p270) target = $region60
        $region59: #{tpu_custom_call.1} parent=39 // pred_region
          %s273 = sshll.u32 1, 4
          %s274 = ssub.s32 %s273, 1
          loop: start=0, step=1, limit=1
          $region61: #{tpu_custom_call.1} parent=59 // loop_pre_header
            _
          $region62: #{tpu_custom_call.1} parent=59 // loop_header
            %s276 = sphi 0, %s280
            %p277 = scmp.ge.s32.totalorder %s276, 1
            %s281 = sphi %s264, %s264
            %s282 = sphi [#allocation2], [#allocation2]
          $region63: #{tpu_custom_call.1} parent=59 // loop_header_branch
            %279 = sbr.rel (%p277) target = $region67
          $region64: #{tpu_custom_call.1} parent=59 // loop_body
            %v283 = vld [vmem:[%s281] sm:%s274]
            %284 = vst [vmem:[%s282] sm:%s274] %v283
            %v285 = vld [vmem:[%s281 + $0x8] sm:%s274]
            %286 = vst [vmem:[%s282 + $0x8] sm:%s274] %v285
            %v287 = vld [vmem:[%s281 + $0x10] sm:%s274]
            %288 = vst [vmem:[%s282 + $0x10] sm:%s274] %v287
            %v289 = vld [vmem:[%s281 + $0x18] sm:%s274]
            %290 = vst [vmem:[%s282 + $0x18] sm:%s274] %v289
            %v291 = vld [vmem:[%s281 + $0x20] sm:%s274]
            %292 = vst [vmem:[%s282 + $0x20] sm:%s274] %v291
            %v293 = vld [vmem:[%s281 + $0x28] sm:%s274]
            %294 = vst [vmem:[%s282 + $0x28] sm:%s274] %v293
            %v295 = vld [vmem:[%s281 + $0x30] sm:%s274]
            %296 = vst [vmem:[%s282 + $0x30] sm:%s274] %v295
            %v297 = vld [vmem:[%s281 + $0x38] sm:%s274]
            %298 = vst [vmem:[%s282 + $0x38] sm:%s274] %v297
            %v299 = vld [vmem:[%s281 + $0x40] sm:%s274]
            %300 = vst [vmem:[%s282 + $0x40] sm:%s274] %v299
            %v301 = vld [vmem:[%s281 + $0x48] sm:%s274]
            %302 = vst [vmem:[%s282 + $0x48] sm:%s274] %v301
            %v303 = vld [vmem:[%s281 + $0x50] sm:%s274]
            %304 = vst [vmem:[%s282 + $0x50] sm:%s274] %v303
            %v305 = vld [vmem:[%s281 + $0x58] sm:%s274]
            %306 = vst [vmem:[%s282 + $0x58] sm:%s274] %v305
            %v307 = vld [vmem:[%s281 + $0x60] sm:%s274]
            %308 = vst [vmem:[%s282 + $0x60] sm:%s274] %v307
            %v309 = vld [vmem:[%s281 + $0x68] sm:%s274]
            %310 = vst [vmem:[%s282 + $0x68] sm:%s274] %v309
            %v311 = vld [vmem:[%s281 + $0x70] sm:%s274]
            %312 = vst [vmem:[%s282 + $0x70] sm:%s274] %v311
            %v313 = vld [vmem:[%s281 + $0x78] sm:%s274]
            %314 = vst [vmem:[%s282 + $0x78] sm:%s274] %v313
          $region65: #{tpu_custom_call.1} parent=59 // loop_footer
            %s280 = sadd.s32 1, %s276
          $region66: #{tpu_custom_call.1} parent=59 // loop_footer_branch
            %275 = sbr.rel target = $region62
          $region67: #{tpu_custom_call.1} parent=59 // loop_exit
            _
        $region60: #{tpu_custom_call.1} parent=39 // pred_fallthru
          _
        // Predicated region
        $region86: #{tpu_custom_call.1} parent=39 // pred_check
          _
        $region87: #{tpu_custom_call.1} parent=39 // pred_check_branch
          %377 = sbr.rel (0) target = $region89
        $region88: #{tpu_custom_call.1} parent=39 // pred_region
          %378 = vsyncadd [#allocation6], 1024
        $region89: #{tpu_custom_call.1} parent=39 // pred_fallthru
          _
        %s379 = sadd.s32 1, %s262
        %s380 = smul.addr %s379, 4
        %s381 = scalar_lea.vmem %s0, %s380
        %s382 = scalar_lea.vmem [#allocation2], 4
        %s383 = scalar_lea.sflag [#allocation6], 1
        %p385 = scmp.lt.u32.totalorder 4, 8
        %p386 = pneg %p385
        // Predicated region
        $region90: #{tpu_custom_call.1} parent=39 // pred_check
          _
        $region91: #{tpu_custom_call.1} parent=39 // pred_check_branch
          %388 = sbr.rel (%p385) target = $region93
        $region92: #{tpu_custom_call.1} parent=39 // pred_region
          %s434 = sand.u32 4, 7
          %p435 = scmp.eq.s32.totalorder %s434, 0
          %p436 = pneg %p435
          // Predicated region
          $region105: #{tpu_custom_call.1} parent=92 // pred_check
            _
          $region106: #{tpu_custom_call.1} parent=92 // pred_check_branch
            %438 = sbr.rel (%p435) target = $region108
          $region107: #{tpu_custom_call.1} parent=92 // pred_region
            %s439 = sand.u32 4, 7
            %s440 = ssub.s32 4, %s439
            %s441 = scalar_lea.vmem %s381, %s440
            %s442 = ssub.s32 4, %s439
            %s443 = scalar_lea.vmem %s382, %s442 [#allocation2]
            loop: start=0, step=1, limit=1
            $region109: #{tpu_custom_call.1} parent=107 // loop_pre_header
              _
            $region110: #{tpu_custom_call.1} parent=107 // loop_header
              %s445 = sphi 0, %s449
              %p446 = scmp.ge.s32.totalorder %s445, 1
              %s450 = sphi %s381, %s381
              %s451 = sphi %s382, %s382
            $region111: #{tpu_custom_call.1} parent=107 // loop_header_branch
              %448 = sbr.rel (%p446) target = $region115
            $region112: #{tpu_custom_call.1} parent=107 // loop_body
              _
            $region113: #{tpu_custom_call.1} parent=107 // loop_footer
              %s449 = sadd.s32 1, %s445
            $region114: #{tpu_custom_call.1} parent=107 // loop_footer_branch
              %444 = sbr.rel target = $region110
            $region115: #{tpu_custom_call.1} parent=107 // loop_exit
              _
            %s452 = sshll.u32 1, %s439
            %s453 = ssub.s32 %s452, 1
            loop: start=0, step=1, limit=1
            $region116: #{tpu_custom_call.1} parent=107 // loop_pre_header
              _
            $region117: #{tpu_custom_call.1} parent=107 // loop_header
              %s455 = sphi 0, %s459
              %p456 = scmp.ge.s32.totalorder %s455, 1
              %s460 = sphi %s441, %s441
              %s461 = sphi %s443, %s443
            $region118: #{tpu_custom_call.1} parent=107 // loop_header_branch
              %458 = sbr.rel (%p456) target = $region122
            $region119: #{tpu_custom_call.1} parent=107 // loop_body
              %v462 = vld [vmem:[%s460] sm:%s453]
              %463 = vst [vmem:[%s461] sm:%s453] %v462
              %v464 = vld [vmem:[%s460 + $0x8] sm:%s453]
              %465 = vst [vmem:[%s461 + $0x8] sm:%s453] %v464
              %v466 = vld [vmem:[%s460 + $0x10] sm:%s453]
              %467 = vst [vmem:[%s461 + $0x10] sm:%s453] %v466
              %v468 = vld [vmem:[%s460 + $0x18] sm:%s453]
              %469 = vst [vmem:[%s461 + $0x18] sm:%s453] %v468
              %v470 = vld [vmem:[%s460 + $0x20] sm:%s453]
              %471 = vst [vmem:[%s461 + $0x20] sm:%s453] %v470
              %v472 = vld [vmem:[%s460 + $0x28] sm:%s453]
              %473 = vst [vmem:[%s461 + $0x28] sm:%s453] %v472
              %v474 = vld [vmem:[%s460 + $0x30] sm:%s453]
              %475 = vst [vmem:[%s461 + $0x30] sm:%s453] %v474
              %v476 = vld [vmem:[%s460 + $0x38] sm:%s453]
              %477 = vst [vmem:[%s461 + $0x38] sm:%s453] %v476
              %v478 = vld [vmem:[%s460 + $0x40] sm:%s453]
              %479 = vst [vmem:[%s461 + $0x40] sm:%s453] %v478
              %v480 = vld [vmem:[%s460 + $0x48] sm:%s453]
              %481 = vst [vmem:[%s461 + $0x48] sm:%s453] %v480
              %v482 = vld [vmem:[%s460 + $0x50] sm:%s453]
              %483 = vst [vmem:[%s461 + $0x50] sm:%s453] %v482
              %v484 = vld [vmem:[%s460 + $0x58] sm:%s453]
              %485 = vst [vmem:[%s461 + $0x58] sm:%s453] %v484
              %v486 = vld [vmem:[%s460 + $0x60] sm:%s453]
              %487 = vst [vmem:[%s461 + $0x60] sm:%s453] %v486
              %v488 = vld [vmem:[%s460 + $0x68] sm:%s453]
              %489 = vst [vmem:[%s461 + $0x68] sm:%s453] %v488
              %v490 = vld [vmem:[%s460 + $0x70] sm:%s453]
              %491 = vst [vmem:[%s461 + $0x70] sm:%s453] %v490
              %v492 = vld [vmem:[%s460 + $0x78] sm:%s453]
              %493 = vst [vmem:[%s461 + $0x78] sm:%s453] %v492
            $region120: #{tpu_custom_call.1} parent=107 // loop_footer
              %s459 = sadd.s32 1, %s455
            $region121: #{tpu_custom_call.1} parent=107 // loop_footer_branch
              %454 = sbr.rel target = $region117
            $region122: #{tpu_custom_call.1} parent=107 // loop_exit
              _
          $region108: #{tpu_custom_call.1} parent=92 // pred_fallthru
            _
        $region93: #{tpu_custom_call.1} parent=39 // pred_fallthru
          _
        // Predicated region
        $region94: #{tpu_custom_call.1} parent=39 // pred_check
          %p389 = pneg %p385
        $region95: #{tpu_custom_call.1} parent=39 // pred_check_branch
          %391 = sbr.rel (%p389) target = $region97
        $region96: #{tpu_custom_call.1} parent=39 // pred_region
          %s392 = sshll.u32 1, 4
          %s393 = ssub.s32 %s392, 1
          loop: start=0, step=1, limit=1
          $region98: #{tpu_custom_call.1} parent=96 // loop_pre_header
            _
          $region99: #{tpu_custom_call.1} parent=96 // loop_header
            %s395 = sphi 0, %s399
            %p396 = scmp.ge.s32.totalorder %s395, 1
            %s400 = sphi %s381, %s381
            %s401 = sphi %s382, %s382
          $region100: #{tpu_custom_call.1} parent=96 // loop_header_branch
            %398 = sbr.rel (%p396) target = $region104
          $region101: #{tpu_custom_call.1} parent=96 // loop_body
            %v402 = vld [vmem:[%s400] sm:%s393]
            %403 = vst [vmem:[%s401] sm:%s393] %v402
            %v404 = vld [vmem:[%s400 + $0x8] sm:%s393]
            %405 = vst [vmem:[%s401 + $0x8] sm:%s393] %v404
            %v406 = vld [vmem:[%s400 + $0x10] sm:%s393]
            %407 = vst [vmem:[%s401 + $0x10] sm:%s393] %v406
            %v408 = vld [vmem:[%s400 + $0x18] sm:%s393]
            %409 = vst [vmem:[%s401 + $0x18] sm:%s393] %v408
            %v410 = vld [vmem:[%s400 + $0x20] sm:%s393]
            %411 = vst [vmem:[%s401 + $0x20] sm:%s393] %v410
            %v412 = vld [vmem:[%s400 + $0x28] sm:%s393]
            %413 = vst [vmem:[%s401 + $0x28] sm:%s393] %v412
            %v414 = vld [vmem:[%s400 + $0x30] sm:%s393]
            %415 = vst [vmem:[%s401 + $0x30] sm:%s393] %v414
            %v416 = vld [vmem:[%s400 + $0x38] sm:%s393]
            %417 = vst [vmem:[%s401 + $0x38] sm:%s393] %v416
            %v418 = vld [vmem:[%s400 + $0x40] sm:%s393]
            %419 = vst [vmem:[%s401 + $0x40] sm:%s393] %v418
            %v420 = vld [vmem:[%s400 + $0x48] sm:%s393]
            %421 = vst [vmem:[%s401 + $0x48] sm:%s393] %v420
            %v422 = vld [vmem:[%s400 + $0x50] sm:%s393]
            %423 = vst [vmem:[%s401 + $0x50] sm:%s393] %v422
            %v424 = vld [vmem:[%s400 + $0x58] sm:%s393]
            %425 = vst [vmem:[%s401 + $0x58] sm:%s393] %v424
            %v426 = vld [vmem:[%s400 + $0x60] sm:%s393]
            %427 = vst [vmem:[%s401 + $0x60] sm:%s393] %v426
            %v428 = vld [vmem:[%s400 + $0x68] sm:%s393]
            %429 = vst [vmem:[%s401 + $0x68] sm:%s393] %v428
            %v430 = vld [vmem:[%s400 + $0x70] sm:%s393]
            %431 = vst [vmem:[%s401 + $0x70] sm:%s393] %v430
            %v432 = vld [vmem:[%s400 + $0x78] sm:%s393]
            %433 = vst [vmem:[%s401 + $0x78] sm:%s393] %v432
          $region102: #{tpu_custom_call.1} parent=96 // loop_footer
            %s399 = sadd.s32 1, %s395
          $region103: #{tpu_custom_call.1} parent=96 // loop_footer_branch
            %394 = sbr.rel target = $region99
          $region104: #{tpu_custom_call.1} parent=96 // loop_exit
            _
        $region97: #{tpu_custom_call.1} parent=39 // pred_fallthru
          _
        // Predicated region
        $region123: #{tpu_custom_call.1} parent=39 // pred_check
          _
        $region124: #{tpu_custom_call.1} parent=39 // pred_check_branch
          %496 = sbr.rel (0) target = $region126
        $region125: #{tpu_custom_call.1} parent=39 // pred_region
          %497 = vsyncadd %s383, 1024
        $region126: #{tpu_custom_call.1} parent=39 // pred_fallthru
          _
        loop: start=0, step=1, limit=2
        $region127: #{tpu_custom_call.1} parent=39 // loop_pre_header
          _
        $region128: #{tpu_custom_call.1} parent=39 // loop_header
          %s499 = sphi 0, %s503
          %p500 = scmp.ge.s32.totalorder %s499, 2
        $region129: #{tpu_custom_call.1} parent=39 // loop_header_branch
          %502 = sbr.rel (%p500) target = $region133
        $region130: #{tpu_custom_call.1} parent=39 // loop_body
          %s504 = sand.u32 %s499, 1
          %s505 = smul.u32 %s499, 128
          %s506 = sshra.s32 %s505, 7
          %s507 = sand.u32 %s505, 127
          %s508 = smul.addr %s506, 4
          %s509 = scalar_lea.vmem [#allocation2], %s508
          %s510 = scalar_lea.sflag [#allocation6], %s504
          %s511 = smul.u32 4, 16
          %s512 = smul.u32 %s511, 1
          %s513 = sshll.u32 %s512, 4
          %514 = dma.done %s510, %s513
          %s515 = sadd.s32 %s499, 2
          %p516 = scmp.lt.s32.totalorder %s515, 2
          // Predicated region
          $region134: #{tpu_custom_call.1} parent=130 // pred_check
            %p517 = pneg %p516
          $region135: #{tpu_custom_call.1} parent=130 // pred_check_branch
            %519 = sbr.rel (%p517) target = $region137
          $region136: #{tpu_custom_call.1} parent=130 // pred_region
            %s520 = smul.u32 %s515, 128
            %s521 = sshra.s32 %s520, 7
            %s522 = sand.u32 %s520, 127
            %s523 = sadd.s32 %s521, %s262
            %s524 = smul.addr %s523, 4
            %s525 = scalar_lea.vmem %s0, %s524
            %s526 = smul.addr %s521, 4
            %s527 = scalar_lea.vmem [#allocation2], %s526
            %p529 = scmp.lt.u32.totalorder 4, 8
            %p530 = pneg %p529
            // Predicated region
            $region138: #{tpu_custom_call.1} parent=136 // pred_check
              _
            $region139: #{tpu_custom_call.1} parent=136 // pred_check_branch
              %532 = sbr.rel (%p529) target = $region141
            $region140: #{tpu_custom_call.1} parent=136 // pred_region
              %s578 = sand.u32 4, 7
              %p579 = scmp.eq.s32.totalorder %s578, 0
              %p580 = pneg %p579
              // Predicated region
              $region153: #{tpu_custom_call.1} parent=140 // pred_check
                _
              $region154: #{tpu_custom_call.1} parent=140 // pred_check_branch
                %582 = sbr.rel (%p579) target = $region156
              $region155: #{tpu_custom_call.1} parent=140 // pred_region
                %s583 = sand.u32 4, 7
                %s584 = ssub.s32 4, %s583
                %s585 = scalar_lea.vmem %s525, %s584
                %s586 = ssub.s32 4, %s583
                %s587 = scalar_lea.vmem %s527, %s586 [#allocation2]
                loop: start=0, step=1, limit=1
                $region157: #{tpu_custom_call.1} parent=155 // loop_pre_header
                  _
                $region158: #{tpu_custom_call.1} parent=155 // loop_header
                  %s589 = sphi 0, %s593
                  %p590 = scmp.ge.s32.totalorder %s589, 1
                  %s594 = sphi %s525, %s525
                  %s595 = sphi %s527, %s527
                $region159: #{tpu_custom_call.1} parent=155 // loop_header_branch
                  %592 = sbr.rel (%p590) target = $region163
                $region160: #{tpu_custom_call.1} parent=155 // loop_body
                  _
                $region161: #{tpu_custom_call.1} parent=155 // loop_footer
                  %s593 = sadd.s32 1, %s589
                $region162: #{tpu_custom_call.1} parent=155 // loop_footer_branch
                  %588 = sbr.rel target = $region158
                $region163: #{tpu_custom_call.1} parent=155 // loop_exit
                  _
                %s596 = sshll.u32 1, %s583
                %s597 = ssub.s32 %s596, 1
                loop: start=0, step=1, limit=1
                $region164: #{tpu_custom_call.1} parent=155 // loop_pre_header
                  _
                $region165: #{tpu_custom_call.1} parent=155 // loop_header
                  %s599 = sphi 0, %s603
                  %p600 = scmp.ge.s32.totalorder %s599, 1
                  %s604 = sphi %s585, %s585
                  %s605 = sphi %s587, %s587
                $region166: #{tpu_custom_call.1} parent=155 // loop_header_branch
                  %602 = sbr.rel (%p600) target = $region170
                $region167: #{tpu_custom_call.1} parent=155 // loop_body
                  %v606 = vld [vmem:[%s604] sm:%s597]
                  %607 = vst [vmem:[%s605] sm:%s597] %v606
                  %v608 = vld [vmem:[%s604 + $0x8] sm:%s597]
                  %609 = vst [vmem:[%s605 + $0x8] sm:%s597] %v608
                  %v610 = vld [vmem:[%s604 + $0x10] sm:%s597]
                  %611 = vst [vmem:[%s605 + $0x10] sm:%s597] %v610
                  %v612 = vld [vmem:[%s604 + $0x18] sm:%s597]
                  %613 = vst [vmem:[%s605 + $0x18] sm:%s597] %v612
                  %v614 = vld [vmem:[%s604 + $0x20] sm:%s597]
                  %615 = vst [vmem:[%s605 + $0x20] sm:%s597] %v614
                  %v616 = vld [vmem:[%s604 + $0x28] sm:%s597]
                  %617 = vst [vmem:[%s605 + $0x28] sm:%s597] %v616
                  %v618 = vld [vmem:[%s604 + $0x30] sm:%s597]
                  %619 = vst [vmem:[%s605 + $0x30] sm:%s597] %v618
                  %v620 = vld [vmem:[%s604 + $0x38] sm:%s597]
                  %621 = vst [vmem:[%s605 + $0x38] sm:%s597] %v620
                  %v622 = vld [vmem:[%s604 + $0x40] sm:%s597]
                  %623 = vst [vmem:[%s605 + $0x40] sm:%s597] %v622
                  %v624 = vld [vmem:[%s604 + $0x48] sm:%s597]
                  %625 = vst [vmem:[%s605 + $0x48] sm:%s597] %v624
                  %v626 = vld [vmem:[%s604 + $0x50] sm:%s597]
                  %627 = vst [vmem:[%s605 + $0x50] sm:%s597] %v626
                  %v628 = vld [vmem:[%s604 + $0x58] sm:%s597]
                  %629 = vst [vmem:[%s605 + $0x58] sm:%s597] %v628
                  %v630 = vld [vmem:[%s604 + $0x60] sm:%s597]
                  %631 = vst [vmem:[%s605 + $0x60] sm:%s597] %v630
                  %v632 = vld [vmem:[%s604 + $0x68] sm:%s597]
                  %633 = vst [vmem:[%s605 + $0x68] sm:%s597] %v632
                  %v634 = vld [vmem:[%s604 + $0x70] sm:%s597]
                  %635 = vst [vmem:[%s605 + $0x70] sm:%s597] %v634
                  %v636 = vld [vmem:[%s604 + $0x78] sm:%s597]
                  %637 = vst [vmem:[%s605 + $0x78] sm:%s597] %v636
                $region168: #{tpu_custom_call.1} parent=155 // loop_footer
                  %s603 = sadd.s32 1, %s599
                $region169: #{tpu_custom_call.1} parent=155 // loop_footer_branch
                  %598 = sbr.rel target = $region165
                $region170: #{tpu_custom_call.1} parent=155 // loop_exit
                  _
              $region156: #{tpu_custom_call.1} parent=140 // pred_fallthru
                _
            $region141: #{tpu_custom_call.1} parent=136 // pred_fallthru
              _
            // Predicated region
            $region142: #{tpu_custom_call.1} parent=136 // pred_check
              %p533 = pneg %p529
            $region143: #{tpu_custom_call.1} parent=136 // pred_check_branch
              %535 = sbr.rel (%p533) target = $region145
            $region144: #{tpu_custom_call.1} parent=136 // pred_region
              %s536 = sshll.u32 1, 4
              %s537 = ssub.s32 %s536, 1
              loop: start=0, step=1, limit=1
              $region146: #{tpu_custom_call.1} parent=144 // loop_pre_header
                _
              $region147: #{tpu_custom_call.1} parent=144 // loop_header
                %s539 = sphi 0, %s543
                %p540 = scmp.ge.s32.totalorder %s539, 1
                %s544 = sphi %s525, %s525
                %s545 = sphi %s527, %s527
              $region148: #{tpu_custom_call.1} parent=144 // loop_header_branch
                %542 = sbr.rel (%p540) target = $region152
              $region149: #{tpu_custom_call.1} parent=144 // loop_body
                %v546 = vld [vmem:[%s544] sm:%s537]
                %547 = vst [vmem:[%s545] sm:%s537] %v546
                %v548 = vld [vmem:[%s544 + $0x8] sm:%s537]
                %549 = vst [vmem:[%s545 + $0x8] sm:%s537] %v548
                %v550 = vld [vmem:[%s544 + $0x10] sm:%s537]
                %551 = vst [vmem:[%s545 + $0x10] sm:%s537] %v550
                %v552 = vld [vmem:[%s544 + $0x18] sm:%s537]
                %553 = vst [vmem:[%s545 + $0x18] sm:%s537] %v552
                %v554 = vld [vmem:[%s544 + $0x20] sm:%s537]
                %555 = vst [vmem:[%s545 + $0x20] sm:%s537] %v554
                %v556 = vld [vmem:[%s544 + $0x28] sm:%s537]
                %557 = vst [vmem:[%s545 + $0x28] sm:%s537] %v556
                %v558 = vld [vmem:[%s544 + $0x30] sm:%s537]
                %559 = vst [vmem:[%s545 + $0x30] sm:%s537] %v558
                %v560 = vld [vmem:[%s544 + $0x38] sm:%s537]
                %561 = vst [vmem:[%s545 + $0x38] sm:%s537] %v560
                %v562 = vld [vmem:[%s544 + $0x40] sm:%s537]
                %563 = vst [vmem:[%s545 + $0x40] sm:%s537] %v562
                %v564 = vld [vmem:[%s544 + $0x48] sm:%s537]
                %565 = vst [vmem:[%s545 + $0x48] sm:%s537] %v564
                %v566 = vld [vmem:[%s544 + $0x50] sm:%s537]
                %567 = vst [vmem:[%s545 + $0x50] sm:%s537] %v566
                %v568 = vld [vmem:[%s544 + $0x58] sm:%s537]
                %569 = vst [vmem:[%s545 + $0x58] sm:%s537] %v568
                %v570 = vld [vmem:[%s544 + $0x60] sm:%s537]
                %571 = vst [vmem:[%s545 + $0x60] sm:%s537] %v570
                %v572 = vld [vmem:[%s544 + $0x68] sm:%s537]
                %573 = vst [vmem:[%s545 + $0x68] sm:%s537] %v572
                %v574 = vld [vmem:[%s544 + $0x70] sm:%s537]
                %575 = vst [vmem:[%s545 + $0x70] sm:%s537] %v574
                %v576 = vld [vmem:[%s544 + $0x78] sm:%s537]
                %577 = vst [vmem:[%s545 + $0x78] sm:%s537] %v576
              $region150: #{tpu_custom_call.1} parent=144 // loop_footer
                %s543 = sadd.s32 1, %s539
              $region151: #{tpu_custom_call.1} parent=144 // loop_footer_branch
                %538 = sbr.rel target = $region147
              $region152: #{tpu_custom_call.1} parent=144 // loop_exit
                _
            $region145: #{tpu_custom_call.1} parent=136 // pred_fallthru
              _
            // Predicated region
            $region171: #{tpu_custom_call.1} parent=136 // pred_check
              _
            $region172: #{tpu_custom_call.1} parent=136 // pred_check_branch
              %640 = sbr.rel (0) target = $region174
            $region173: #{tpu_custom_call.1} parent=136 // pred_region
              %641 = vsyncadd %s510, 1024
            $region174: #{tpu_custom_call.1} parent=136 // pred_fallthru
              _
          $region137: #{tpu_custom_call.1} parent=130 // pred_fallthru
            _
          %v642 = vld [vmem:[%s509] sm:$0xf]
          %v643 = vld [vmem:[%s509 + $0x8] sm:$0xf]
          %v644 = vld [vmem:[%s509 + $0x10] sm:$0xf]
          %v645 = vld [vmem:[%s509 + $0x18] sm:$0xf]
          %v646 = vld [vmem:[%s509 + $0x20] sm:$0xf]
          %v647 = vld [vmem:[%s509 + $0x28] sm:$0xf]
          %v648 = vld [vmem:[%s509 + $0x30] sm:$0xf]
          %v649 = vld [vmem:[%s509 + $0x38] sm:$0xf]
          %v650 = vld [vmem:[%s509 + $0x40] sm:$0xf]
          %v651 = vld [vmem:[%s509 + $0x48] sm:$0xf]
          %v652 = vld [vmem:[%s509 + $0x50] sm:$0xf]
          %v653 = vld [vmem:[%s509 + $0x58] sm:$0xf]
          %v654 = vld [vmem:[%s509 + $0x60] sm:$0xf]
          %v655 = vld [vmem:[%s509 + $0x68] sm:$0xf]
          %v656 = vld [vmem:[%s509 + $0x70] sm:$0xf]
          %v657 = vld [vmem:[%s509 + $0x78] sm:$0xf]
          %659 = vset.pattern.permute.xlu0 0
          %660 = vperm.xlu0 %659, %v214
          %v661 = vpop.permute.xlu0 %660
          %664 = vset.pattern.permute.xlu0 0
          %665 = vperm.xlu0 %664, %v215
          %v666 = vpop.permute.xlu0 %665
          %669 = vset.pattern.permute.xlu0 0
          %670 = vperm.xlu0 %669, %v216
          %v671 = vpop.permute.xlu0 %670
          %674 = vset.pattern.permute.xlu0 0
          %675 = vperm.xlu0 %674, %v217
          %v676 = vpop.permute.xlu0 %675
          %679 = vset.pattern.permute.xlu0 0
          %680 = vperm.xlu0 %679, %v218
          %v681 = vpop.permute.xlu0 %680
          %684 = vset.pattern.permute.xlu0 0
          %685 = vperm.xlu0 %684, %v219
          %v686 = vpop.permute.xlu0 %685
          %689 = vset.pattern.permute.xlu0 0
          %690 = vperm.xlu0 %689, %v220
          %v691 = vpop.permute.xlu0 %690
          %694 = vset.pattern.permute.xlu0 0
          %695 = vperm.xlu0 %694, %v221
          %v696 = vpop.permute.xlu0 %695
          %699 = vset.pattern.permute.xlu0 0
          %700 = vperm.xlu0 %699, %v222
          %v701 = vpop.permute.xlu0 %700
          %704 = vset.pattern.permute.xlu0 0
          %705 = vperm.xlu0 %704, %v223
          %v706 = vpop.permute.xlu0 %705
          %709 = vset.pattern.permute.xlu0 0
          %710 = vperm.xlu0 %709, %v224
          %v711 = vpop.permute.xlu0 %710
          %714 = vset.pattern.permute.xlu0 0
          %715 = vperm.xlu0 %714, %v225
          %v716 = vpop.permute.xlu0 %715
          %719 = vset.pattern.permute.xlu0 0
          %720 = vperm.xlu0 %719, %v226
          %v721 = vpop.permute.xlu0 %720
          %724 = vset.pattern.permute.xlu0 0
          %725 = vperm.xlu0 %724, %v227
          %v726 = vpop.permute.xlu0 %725
          %729 = vset.pattern.permute.xlu0 0
          %730 = vperm.xlu0 %729, %v228
          %v731 = vpop.permute.xlu0 %730
          %734 = vset.pattern.permute.xlu0 0
          %735 = vperm.xlu0 %734, %v229
          %v736 = vpop.permute.xlu0 %735
          %v754 = vunpack.c.l.b16 %v198
          %v755 = vunpack.c.l.b16 %v199
          %v756 = vunpack.c.l.b16 %v200
          %v757 = vunpack.c.l.b16 %v201
          %v758 = vunpack.c.l.b16 %v202
          %v759 = vunpack.c.l.b16 %v203
          %v760 = vunpack.c.l.b16 %v204
          %v761 = vunpack.c.l.b16 %v205
          %v762 = vunpack.c.l.b16 %v206
          %v763 = vunpack.c.l.b16 %v207
          %v764 = vunpack.c.l.b16 %v208
          %v765 = vunpack.c.l.b16 %v209
          %v766 = vunpack.c.l.b16 %v210
          %v767 = vunpack.c.l.b16 %v211
          %v768 = vunpack.c.l.b16 %v212
          %v769 = vunpack.c.l.b16 %v213
          %v770 = vpack.c.b16 %v755, %v754
          %v771 = vpack.c.b16 %v757, %v756
          %v772 = vpack.c.b16 %v759, %v758
          %v773 = vpack.c.b16 %v761, %v760
          %v774 = vpack.c.b16 %v763, %v762
          %v775 = vpack.c.b16 %v765, %v764
          %v776 = vpack.c.b16 %v767, %v766
          %v777 = vpack.c.b16 %v769, %v768
          %v802 = vunpack.c.l.b16 %v642
          %v803 = vunpack.c.l.b16 %v643
          %v804 = vunpack.c.l.b16 %v644
          %v805 = vunpack.c.l.b16 %v645
          %v806 = vunpack.c.l.b16 %v646
          %v807 = vunpack.c.l.b16 %v647
          %v808 = vunpack.c.l.b16 %v648
          %v809 = vunpack.c.l.b16 %v649
          %v810 = vunpack.c.l.b16 %v650
          %v811 = vunpack.c.l.b16 %v651
          %v812 = vunpack.c.l.b16 %v652
          %v813 = vunpack.c.l.b16 %v653
          %v814 = vunpack.c.l.b16 %v654
          %v815 = vunpack.c.l.b16 %v655
          %v816 = vunpack.c.l.b16 %v656
          %v817 = vunpack.c.l.b16 %v657
          %v818 = vpack.c.b16 %v803, %v802
          %v819 = vpack.c.b16 %v805, %v804
          %v820 = vpack.c.b16 %v807, %v806
          %v821 = vpack.c.b16 %v809, %v808
          %v822 = vpack.c.b16 %v811, %v810
          %v823 = vpack.c.b16 %v813, %v812
          %v824 = vpack.c.b16 %v815, %v814
          %v825 = vpack.c.b16 %v817, %v816
          %834 = vmatprep.subr.bf16.mxu0 0
          %835 = vmatpush1.bf16.msra.mxu0 %v825
          %836 = vmatprep.subr.bf16.mxu0 0
          %837 = vmatpush1.bf16.msra.mxu0 %v824
          %838 = vmatprep.subr.bf16.mxu0 0
          %839 = vmatpush1.bf16.msra.mxu0 %v823
          %840 = vmatprep.subr.bf16.mxu0 0
          %841 = vmatpush1.bf16.msra.mxu0 %v822
          %842 = vmatprep.subr.bf16.mxu0 0
          %843 = vmatpush1.bf16.msra.mxu0 %v821
          %844 = vmatprep.subr.bf16.mxu0 0
          %845 = vmatpush1.bf16.msra.mxu0 %v820
          %846 = vmatprep.subr.bf16.mxu0 0
          %847 = vmatpush1.bf16.msra.mxu0 %v819
          %848 = vmatprep.subr.bf16.mxu0 0
          %849 = vmatpush1.bf16.msra.mxu0 %v818
          %850 = vmatprep.subr.bf16.mxu0 0
          %851 = vmatpush2.bf16.msra.mxu0 0
          %852 = vmatprep.subr.bf16.mxu0 0
          %853 = vmatpush2.bf16.msra.mxu0 0
          %854 = vmatprep.subr.bf16.mxu0 0
          %855 = vmatpush2.bf16.msra.mxu0 0
          %856 = vmatprep.subr.bf16.mxu0 0
          %857 = vmatpush2.bf16.msra.mxu0 0
          %858 = vmatprep.subr.bf16.mxu0 0
          %859 = vmatpush2.bf16.msra.mxu0 0
          %860 = vmatprep.subr.bf16.mxu0 0
          %861 = vmatpush2.bf16.msra.mxu0 0
          %862 = vmatprep.subr.bf16.mxu0 0
          %863 = vmatpush2.bf16.msra.mxu0 0
          %864 = vmatprep.subr.bf16.mxu0 0
          %865 = vmatpush2.bf16.msra.mxu0 0
          %866 = vmatprep.mubr.bf16.mxu0 0
          %867 = vmatmul.mubr.bf16.gmra.mxu0 %v770
          %v868 = vpop.f32.mrf.mxu0
          %v869 = vadd.f32 %v661, %v868
          %v870 = vpop.f32.mrf.mxu0
          %v871 = vpop.f32.mrf.mxu0
          %v872 = vadd.f32 %v666, %v871
          %v873 = vpop.f32.mrf.mxu0
          %874 = vmatprep.mubr.bf16.mxu0 0
          %875 = vmatmul.mubr.bf16.gmra.mxu0 %v771
          %v876 = vpop.f32.mrf.mxu0
          %v877 = vadd.f32 %v671, %v876
          %v878 = vpop.f32.mrf.mxu0
          %v879 = vpop.f32.mrf.mxu0
          %v880 = vadd.f32 %v676, %v879
          %v881 = vpop.f32.mrf.mxu0
          %882 = vmatprep.mubr.bf16.mxu0 0
          %883 = vmatmul.mubr.bf16.gmra.mxu0 %v772
          %v884 = vpop.f32.mrf.mxu0
          %v885 = vadd.f32 %v681, %v884
          %v886 = vpop.f32.mrf.mxu0
          %v887 = vpop.f32.mrf.mxu0
          %v888 = vadd.f32 %v686, %v887
          %v889 = vpop.f32.mrf.mxu0
          %890 = vmatprep.mubr.bf16.mxu0 0
          %891 = vmatmul.mubr.bf16.gmra.mxu0 %v773
          %v892 = vpop.f32.mrf.mxu0
          %v893 = vadd.f32 %v691, %v892
          %v894 = vpop.f32.mrf.mxu0
          %v895 = vpop.f32.mrf.mxu0
          %v896 = vadd.f32 %v696, %v895
          %v897 = vpop.f32.mrf.mxu0
          %898 = vmatprep.mubr.bf16.mxu0 0
          %899 = vmatmul.mubr.bf16.gmra.mxu0 %v774
          %v900 = vpop.f32.mrf.mxu0
          %v901 = vadd.f32 %v701, %v900
          %v902 = vpop.f32.mrf.mxu0
          %v903 = vpop.f32.mrf.mxu0
          %v904 = vadd.f32 %v706, %v903
          %v905 = vpop.f32.mrf.mxu0
          %906 = vmatprep.mubr.bf16.mxu0 0
          %907 = vmatmul.mubr.bf16.gmra.mxu0 %v775
          %v908 = vpop.f32.mrf.mxu0
          %v909 = vadd.f32 %v711, %v908
          %v910 = vpop.f32.mrf.mxu0
          %v911 = vpop.f32.mrf.mxu0
          %v912 = vadd.f32 %v716, %v911
          %v913 = vpop.f32.mrf.mxu0
          %914 = vmatprep.mubr.bf16.mxu0 0
          %915 = vmatmul.mubr.bf16.gmra.mxu0 %v776
          %v916 = vpop.f32.mrf.mxu0
          %v917 = vadd.f32 %v721, %v916
          %v918 = vpop.f32.mrf.mxu0
          %v919 = vpop.f32.mrf.mxu0
          %v920 = vadd.f32 %v726, %v919
          %v921 = vpop.f32.mrf.mxu0
          %922 = vmatprep.mubr.bf16.mxu0 0
          %923 = vmatmul.mubr.bf16.gmra.mxu0 %v777
          %v924 = vpop.f32.mrf.mxu0
          %v925 = vadd.f32 %v731, %v924
          %v926 = vpop.f32.mrf.mxu0
          %v927 = vpop.f32.mrf.mxu0
          %v928 = vadd.f32 %v736, %v927
          %v929 = vpop.f32.mrf.mxu0
          %930 = vdwg.mxu0
          %v931 = vmax.f32 %v869, 0.0
          %v932 = vmax.f32 %v872, 0.0
          %v933 = vmax.f32 %v877, 0.0
          %v934 = vmax.f32 %v880, 0.0
          %v935 = vmax.f32 %v885, 0.0
          %v936 = vmax.f32 %v888, 0.0
          %v937 = vmax.f32 %v893, 0.0
          %v938 = vmax.f32 %v896, 0.0
          %v939 = vmax.f32 %v901, 0.0
          %v940 = vmax.f32 %v904, 0.0
          %v941 = vmax.f32 %v909, 0.0
          %v942 = vmax.f32 %v912, 0.0
          %v943 = vmax.f32 %v917, 0.0
          %v944 = vmax.f32 %v920, 0.0
          %v945 = vmax.f32 %v925, 0.0
          %v946 = vmax.f32 %v928, 0.0
          %v947 = vpack.c.bf16 %v932, %v931
          %v948 = vpack.c.bf16 %v934, %v933
          %v949 = vpack.c.bf16 %v936, %v935
          %v950 = vpack.c.bf16 %v938, %v937
          %v951 = vpack.c.bf16 %v940, %v939
          %v952 = vpack.c.bf16 %v942, %v941
          %v953 = vpack.c.bf16 %v944, %v943
          %v954 = vpack.c.bf16 %v946, %v945
          %v963 = vunpack.c.l.b16 %v947
          %v964 = vunpack.c.h.b16 %v947
          %v965 = vunpack.c.l.b16 %v948
          %v966 = vunpack.c.h.b16 %v948
          %v967 = vunpack.c.l.b16 %v949
          %v968 = vunpack.c.h.b16 %v949
          %v969 = vunpack.c.l.b16 %v950
          %v970 = vunpack.c.h.b16 %v950
          %v971 = vunpack.c.l.b16 %v951
          %v972 = vunpack.c.h.b16 %v951
          %v973 = vunpack.c.l.b16 %v952
          %v974 = vunpack.c.h.b16 %v952
          %v975 = vunpack.c.l.b16 %v953
          %v976 = vunpack.c.h.b16 %v953
          %v977 = vunpack.c.l.b16 %v954
          %v978 = vunpack.c.h.b16 %v954
          %v979 = vpack.c.b16 %v963, %v963
          %v980 = vpack.c.b16 %v964, %v964
          %v981 = vpack.c.b16 %v965, %v965
          %v982 = vpack.c.b16 %v966, %v966
          %v983 = vpack.c.b16 %v967, %v967
          %v984 = vpack.c.b16 %v968, %v968
          %v985 = vpack.c.b16 %v969, %v969
          %v986 = vpack.c.b16 %v970, %v970
          %v987 = vpack.c.b16 %v971, %v971
          %v988 = vpack.c.b16 %v972, %v972
          %v989 = vpack.c.b16 %v973, %v973
          %v990 = vpack.c.b16 %v974, %v974
          %v991 = vpack.c.b16 %v975, %v975
          %v992 = vpack.c.b16 %v976, %v976
          %v993 = vpack.c.b16 %v977, %v977
          %v994 = vpack.c.b16 %v978, %v978
          %s1011 = smul.addr %s506, 4
          %s1012 = scalar_lea.vmem [#allocation3], %s1011
          %1013 = vst [vmem:[%s1012] sm:$0xf] %v979
          %1014 = vst [vmem:[%s1012 + $0x8] sm:$0xf] %v980
          %1015 = vst [vmem:[%s1012 + $0x10] sm:$0xf] %v981
          %1016 = vst [vmem:[%s1012 + $0x18] sm:$0xf] %v982
          %1017 = vst [vmem:[%s1012 + $0x20] sm:$0xf] %v983
          %1018 = vst [vmem:[%s1012 + $0x28] sm:$0xf] %v984
          %1019 = vst [vmem:[%s1012 + $0x30] sm:$0xf] %v985
          %1020 = vst [vmem:[%s1012 + $0x38] sm:$0xf] %v986
          %1021 = vst [vmem:[%s1012 + $0x40] sm:$0xf] %v987
          %1022 = vst [vmem:[%s1012 + $0x48] sm:$0xf] %v988
          %1023 = vst [vmem:[%s1012 + $0x50] sm:$0xf] %v989
          %1024 = vst [vmem:[%s1012 + $0x58] sm:$0xf] %v990
          %1025 = vst [vmem:[%s1012 + $0x60] sm:$0xf] %v991
          %1026 = vst [vmem:[%s1012 + $0x68] sm:$0xf] %v992
          %1027 = vst [vmem:[%s1012 + $0x70] sm:$0xf] %v993
          %1028 = vst [vmem:[%s1012 + $0x78] sm:$0xf] %v994
        $region131: #{tpu_custom_call.1} parent=39 // loop_footer
          %s503 = sadd.s32 1, %s499
        $region132: #{tpu_custom_call.1} parent=39 // loop_footer_branch
          %498 = sbr.rel target = $region128
        $region133: #{tpu_custom_call.1} parent=39 // loop_exit
          _
        %v1029 = vld [vmem:[#allocation3] sm:$0xff]
        %v1030 = vld [vmem:[#allocation3 + $0x8] sm:$0xff]
        %v1031 = vld [vmem:[#allocation3 + $0x10] sm:$0xff]
        %v1032 = vld [vmem:[#allocation3 + $0x18] sm:$0xff]
        %v1033 = vld [vmem:[#allocation3 + $0x20] sm:$0xff]
        %v1034 = vld [vmem:[#allocation3 + $0x28] sm:$0xff]
        %v1035 = vld [vmem:[#allocation3 + $0x30] sm:$0xff]
        %v1036 = vld [vmem:[#allocation3 + $0x38] sm:$0xff]
        %v1037 = vld [vmem:[#allocation3 + $0x40] sm:$0xff]
        %v1038 = vld [vmem:[#allocation3 + $0x48] sm:$0xff]
        %v1039 = vld [vmem:[#allocation3 + $0x50] sm:$0xff]
        %v1040 = vld [vmem:[#allocation3 + $0x58] sm:$0xff]
        %v1041 = vld [vmem:[#allocation3 + $0x60] sm:$0xff]
        %v1042 = vld [vmem:[#allocation3 + $0x68] sm:$0xff]
        %v1043 = vld [vmem:[#allocation3 + $0x70] sm:$0xff]
        %v1044 = vld [vmem:[#allocation3 + $0x78] sm:$0xff]
        %v1045 = vld [vmem:[%s169] sm:$0xff]
        %v1046 = vld [vmem:[%s169 + $0x8] sm:$0xff]
        %v1047 = vpack.c.bf16 %v1046, %v1045
        %v1064 = vunpack.c.l.b16 %v1029
        %v1065 = vunpack.c.h.b16 %v1029
        %v1066 = vunpack.c.l.b16 %v1030
        %v1067 = vunpack.c.h.b16 %v1030
        %v1068 = vunpack.c.l.b16 %v1031
        %v1069 = vunpack.c.h.b16 %v1031
        %v1070 = vunpack.c.l.b16 %v1032
        %v1071 = vunpack.c.h.b16 %v1032
        %v1072 = vunpack.c.l.b16 %v1033
        %v1073 = vunpack.c.h.b16 %v1033
        %v1074 = vunpack.c.l.b16 %v1034
        %v1075 = vunpack.c.h.b16 %v1034
        %v1076 = vunpack.c.l.b16 %v1035
        %v1077 = vunpack.c.h.b16 %v1035
        %v1078 = vunpack.c.l.b16 %v1036
        %v1079 = vunpack.c.h.b16 %v1036
        %v1080 = vunpack.c.l.b16 %v1037
        %v1081 = vunpack.c.h.b16 %v1037
        %v1082 = vunpack.c.l.b16 %v1038
        %v1083 = vunpack.c.h.b16 %v1038
        %v1084 = vunpack.c.l.b16 %v1039
        %v1085 = vunpack.c.h.b16 %v1039
        %v1086 = vunpack.c.l.b16 %v1040
        %v1087 = vunpack.c.h.b16 %v1040
        %v1088 = vunpack.c.l.b16 %v1041
        %v1089 = vunpack.c.h.b16 %v1041
        %v1090 = vunpack.c.l.b16 %v1042
        %v1091 = vunpack.c.h.b16 %v1042
        %v1092 = vunpack.c.l.b16 %v1043
        %v1093 = vunpack.c.h.b16 %v1043
        %v1094 = vunpack.c.l.b16 %v1044
        %v1095 = vunpack.c.h.b16 %v1044
        %v1096 = vpack.c.b16 %v1066, %v1064
        %v1097 = vpack.c.b16 %v1067, %v1065
        %v1098 = vpack.c.b16 %v1070, %v1068
        %v1099 = vpack.c.b16 %v1071, %v1069
        %v1100 = vpack.c.b16 %v1074, %v1072
        %v1101 = vpack.c.b16 %v1075, %v1073
        %v1102 = vpack.c.b16 %v1078, %v1076
        %v1103 = vpack.c.b16 %v1079, %v1077
        %v1104 = vpack.c.b16 %v1082, %v1080
        %v1105 = vpack.c.b16 %v1083, %v1081
        %v1106 = vpack.c.b16 %v1086, %v1084
        %v1107 = vpack.c.b16 %v1087, %v1085
        %v1108 = vpack.c.b16 %v1090, %v1088
        %v1109 = vpack.c.b16 %v1091, %v1089
        %v1110 = vpack.c.b16 %v1094, %v1092
        %v1111 = vpack.c.b16 %v1095, %v1093
        %1128 = vmatprep.subr.bf16.mxu0 %v1111
        %1129 = vmatpush1.bf16.msra.mxu0 %v1110
        %1130 = vmatprep.subr.bf16.mxu0 %v1109
        %1131 = vmatpush1.bf16.msra.mxu0 %v1108
        %1132 = vmatprep.subr.bf16.mxu0 %v1107
        %1133 = vmatpush1.bf16.msra.mxu0 %v1106
        %1134 = vmatprep.subr.bf16.mxu0 %v1105
        %1135 = vmatpush1.bf16.msra.mxu0 %v1104
        %1136 = vmatprep.subr.bf16.mxu0 %v1103
        %1137 = vmatpush1.bf16.msra.mxu0 %v1102
        %1138 = vmatprep.subr.bf16.mxu0 %v1101
        %1139 = vmatpush1.bf16.msra.mxu0 %v1100
        %1140 = vmatprep.subr.bf16.mxu0 %v1099
        %1141 = vmatpush1.bf16.msra.mxu0 %v1098
        %1142 = vmatprep.subr.bf16.mxu0 %v1097
        %1143 = vmatpush1.bf16.msra.mxu0 %v1096
        %1144 = vmatprep.subr.bf16.mxu0 0
        %1145 = vmatpush2.bf16.msra.mxu0 0
        %1146 = vmatprep.subr.bf16.mxu0 0
        %1147 = vmatpush2.bf16.msra.mxu0 0
        %1148 = vmatprep.subr.bf16.mxu0 0
        %1149 = vmatpush2.bf16.msra.mxu0 0
        %1150 = vmatprep.subr.bf16.mxu0 0
        %1151 = vmatpush2.bf16.msra.mxu0 0
        %1152 = vmatprep.subr.bf16.mxu0 0
        %1153 = vmatpush2.bf16.msra.mxu0 0
        %1154 = vmatprep.subr.bf16.mxu0 0
        %1155 = vmatpush2.bf16.msra.mxu0 0
        %1156 = vmatprep.subr.bf16.mxu0 0
        %1157 = vmatpush2.bf16.msra.mxu0 0
        %1158 = vmatprep.subr.bf16.mxu0 0
        %1159 = vmatpush2.bf16.msra.mxu0 0
        %1160 = vmatprep.mubr.bf16.mxu0 0
        %1161 = vmatmul.mubr.bf16.gmra.mxu0 %v1047
        %v1162 = vpop.f32.mrf.mxu0
        %v1163 = vadd.f32 0.0, %v1162
        %v1164 = vpop.f32.mrf.mxu0
        %v1165 = vadd.f32 0.0, %v1164
        %v1166 = vpop.f32.mrf.mxu0
        %v1167 = vadd.f32 0.0, %v1166
        %v1168 = vpop.f32.mrf.mxu0
        %v1169 = vadd.f32 0.0, %v1168
        %1170 = vdwg.mxu0
        %v1171 = vmax.f32 %v1163, %v1167
        %v1172 = vrot.slane %v1171, 4
        %v1173 = vmax.f32 %v1171, %v1172
        %v1174 = vrot.slane %v1173, 2
        %v1175 = vmax.f32 %v1173, %v1174
        %v1176 = vrot.slane %v1175, 1
        %v1177 = vmax.f32 %v1175, %v1176
        %v1178 = vmax.f32 %v1165, %v1169
        %v1179 = vrot.slane %v1178, 4
        %v1180 = vmax.f32 %v1178, %v1179
        %v1181 = vrot.slane %v1180, 2
        %v1182 = vmax.f32 %v1180, %v1181
        %v1183 = vrot.slane %v1182, 1
        %v1184 = vmax.f32 %v1182, %v1183
        %v1185 = vsub.f32 %v1163, %v1177
        %v1186 = vsub.f32 %v1165, %v1184
        %v1187 = vsub.f32 %v1167, %v1177
        %v1188 = vsub.f32 %v1169, %v1184
        %v1189 = vmul.f32 %v1185, 1.442695
        %v1190 = vpow.pop %v1189
        %v1191 = vmul.f32 %v1186, 1.442695
        %v1192 = vpow.pop %v1191
        %v1193 = vmul.f32 %v1187, 1.442695
        %v1194 = vpow.pop %v1193
        %v1195 = vmul.f32 %v1188, 1.442695
        %v1196 = vpow.pop %v1195
        %v1197 = vadd.f32 %v1190, %v1194
        %v1198 = vrot.slane %v1197, 4
        %v1199 = vadd.f32 %v1197, %v1198
        %v1200 = vrot.slane %v1199, 2
        %v1201 = vadd.f32 %v1199, %v1200
        %v1202 = vrot.slane %v1201, 1
        %v1203 = vadd.f32 %v1201, %v1202
        %v1204 = vadd.f32 %v1192, %v1196
        %v1205 = vrot.slane %v1204, 4
        %v1206 = vadd.f32 %v1204, %v1205
        %v1207 = vrot.slane %v1206, 2
        %v1208 = vadd.f32 %v1206, %v1207
        %v1209 = vrot.slane %v1208, 1
        %v1210 = vadd.f32 %v1208, %v1209
        %v1211 = vrcp.pop %v1203
        %v1212 = vmul.f32 %v1190, %v1211
        %v1213 = vrcp.pop %v1210
        %v1214 = vmul.f32 %v1192, %v1213
        %v1215 = vmul.f32 %v1194, %v1211
        %v1216 = vmul.f32 %v1196, %v1213
        %v1217 = vpack.c.bf16 %v1215, %v1212
        %v1218 = vpack.c.bf16 %v1216, %v1214
        %1219 = vmatprep.subr.bf16.mxu0 0
        %1220 = vmatpush1.bf16.xpose.msra.mxu0 0
        %1221 = vmatprep.subr.bf16.mxu0 0
        %1222 = vmatpush1.bf16.xpose.msra.mxu0 0
        %1223 = vmatprep.subr.bf16.mxu0 0
        %1224 = vmatpush1.bf16.xpose.msra.mxu0 0
        %1225 = vmatprep.subr.bf16.mxu0 0
        %1226 = vmatpush1.bf16.xpose.msra.mxu0 0
        %1227 = vmatprep.subr.bf16.mxu0 0
        %1228 = vmatpush1.bf16.xpose.msra.mxu0 0
        %1229 = vmatprep.subr.bf16.mxu0 0
        %1230 = vmatpush1.bf16.xpose.msra.mxu0 0
        %1231 = vmatprep.subr.bf16.mxu0 0
        %1232 = vmatpush1.bf16.xpose.msra.mxu0 0
        %1233 = vmatprep.subr.bf16.mxu0 0
        %1234 = vmatpush1.bf16.xpose.msra.mxu0 %v1047
        %1235 = vmatprep.subr.bf16.mxu0 0
        %1236 = vmatpush2.bf16.xpose.msra.mxu0 0
        %1237 = vmatprep.subr.bf16.mxu0 0
        %1238 = vmatpush2.bf16.xpose.msra.mxu0 0
        %1239 = vmatprep.subr.bf16.mxu0 0
        %1240 = vmatpush2.bf16.xpose.msra.mxu0 0
        %1241 = vmatprep.subr.bf16.mxu0 0
        %1242 = vmatpush2.bf16.xpose.msra.mxu0 0
        %1243 = vmatprep.subr.bf16.mxu0 0
        %1244 = vmatpush2.bf16.xpose.msra.mxu0 0
        %1245 = vmatprep.subr.bf16.mxu0 0
        %1246 = vmatpush2.bf16.xpose.msra.mxu0 0
        %1247 = vmatprep.subr.bf16.mxu0 0
        %1248 = vmatpush2.bf16.xpose.msra.mxu0 0
        %1249 = vmatprep.subr.bf16.mxu0 0
        %1250 = vmatpush2.bf16.xpose.msra.mxu0 0
        %1251 = vmatprep.mubr.bf16.mxu0 0
        %1252 = vmatmul.mubr.bf16.gmra.mxu0 %v1047
        %v1253 = vpop.f32.mrf.mxu0
        %v1254 = vadd.f32 0.0, %v1253
        %v1255 = vpop.f32.mrf.mxu0
        %v1256 = vpop.f32.mrf.mxu0
        %v1257 = vadd.f32 0.0, %v1256
        %v1258 = vpop.f32.mrf.mxu0
        %1259 = vdwg.mxu0
        %v1260 = vpack.c.bf16 %v1257, %v1254
        %v1261 = vmul.f32 %v1212, %v1163
        %v1262 = vmul.f32 %v1214, %v1165
        %v1263 = vmul.f32 %v1215, %v1167
        %v1264 = vmul.f32 %v1216, %v1169
        %vm1265 = vcmask 130048
        %v1267 = vsel %vm1265, %v1260, 0
        %1269 = vmatprep.subr.bf16.mxu0 0
        %1270 = vmatpush1.bf16.msra.mxu0 0
        %1271 = vmatprep.subr.bf16.mxu0 0
        %1272 = vmatpush1.bf16.msra.mxu0 0
        %1273 = vmatprep.subr.bf16.mxu0 0
        %1274 = vmatpush1.bf16.msra.mxu0 0
        %1275 = vmatprep.subr.bf16.mxu0 0
        %1276 = vmatpush1.bf16.msra.mxu0 0
        %1277 = vmatprep.subr.bf16.mxu0 0
        %1278 = vmatpush1.bf16.msra.mxu0 0
        %1279 = vmatprep.subr.bf16.mxu0 0
        %1280 = vmatpush1.bf16.msra.mxu0 0
        %1281 = vmatprep.subr.bf16.mxu0 0
        %1282 = vmatpush1.bf16.msra.mxu0 0
        %1283 = vmatprep.subr.bf16.mxu0 %v1218
        %1284 = vmatpush1.bf16.msra.mxu0 %v1217
        %1285 = vmatprep.subr.bf16.mxu0 0
        %1286 = vmatpush2.bf16.msra.mxu0 0
        %1287 = vmatprep.subr.bf16.mxu0 0
        %1288 = vmatpush2.bf16.msra.mxu0 0
        %1289 = vmatprep.subr.bf16.mxu0 0
        %1290 = vmatpush2.bf16.msra.mxu0 0
        %1291 = vmatprep.subr.bf16.mxu0 0
        %1292 = vmatpush2.bf16.msra.mxu0 0
        %1293 = vmatprep.subr.bf16.mxu0 0
        %1294 = vmatpush2.bf16.msra.mxu0 0
        %1295 = vmatprep.subr.bf16.mxu0 0
        %1296 = vmatpush2.bf16.msra.mxu0 0
        %1297 = vmatprep.subr.bf16.mxu0 0
        %1298 = vmatpush2.bf16.msra.mxu0 0
        %1299 = vmatprep.subr.bf16.mxu0 0
        %1300 = vmatpush2.bf16.msra.mxu0 0
        %1301 = vmatprep.mubr.bf16.mxu0 0
        %1302 = vmatmul.mubr.bf16.gmra.mxu0 %v1267
        %v1303 = vpop.f32.mrf.mxu0
        %v1304 = vadd.f32 1e-06, %v1303
        %v1305 = vpop.f32.mrf.mxu0
        %v1306 = vadd.f32 1e-06, %v1305
        %v1307 = vpop.f32.mrf.mxu0
        %v1308 = vadd.f32 1e-06, %v1307
        %v1309 = vpop.f32.mrf.mxu0
        %v1310 = vadd.f32 1e-06, %v1309
        %1311 = vdwg.mxu0
        %v1312 = vrcp.pop %v1304
        %v1313 = vrcp.pop %v1306
        %v1314 = vrcp.pop %v1308
        %v1315 = vrcp.pop %v1310
        %v1316 = vmul.f32 %v1261, %v1312
        %v1317 = vmul.f32 %v1262, %v1313
        %v1318 = vmul.f32 %v1263, %v1314
        %v1319 = vmul.f32 %v1264, %v1315
        %v1320 = vpack.c.bf16 %v1318, %v1316
        %v1321 = vpack.c.bf16 %v1319, %v1317
        %1322 = vmatprep.subr.bf16.mxu0 %v1111
        %1323 = vmatpush1.bf16.xpose.msra.mxu0 %v1110
        %1324 = vmatprep.subr.bf16.mxu0 %v1109
        %1325 = vmatpush1.bf16.xpose.msra.mxu0 %v1108
        %1326 = vmatprep.subr.bf16.mxu0 %v1107
        %1327 = vmatpush1.bf16.xpose.msra.mxu0 %v1106
        %1328 = vmatprep.subr.bf16.mxu0 %v1105
        %1329 = vmatpush1.bf16.xpose.msra.mxu0 %v1104
        %1330 = vmatprep.subr.bf16.mxu0 %v1103
        %1331 = vmatpush1.bf16.xpose.msra.mxu0 %v1102
        %1332 = vmatprep.subr.bf16.mxu0 %v1101
        %1333 = vmatpush1.bf16.xpose.msra.mxu0 %v1100
        %1334 = vmatprep.subr.bf16.mxu0 %v1099
        %1335 = vmatpush1.bf16.xpose.msra.mxu0 %v1098
        %1336 = vmatprep.subr.bf16.mxu0 %v1097
        %1337 = vmatpush1.bf16.xpose.msra.mxu0 %v1096
        %1338 = vmatprep.subr.bf16.mxu0 0
        %1339 = vmatpush2.bf16.xpose.msra.mxu0 0
        %1340 = vmatprep.subr.bf16.mxu0 0
        %1341 = vmatpush2.bf16.xpose.msra.mxu0 0
        %1342 = vmatprep.subr.bf16.mxu0 0
        %1343 = vmatpush2.bf16.xpose.msra.mxu0 0
        %1344 = vmatprep.subr.bf16.mxu0 0
        %1345 = vmatpush2.bf16.xpose.msra.mxu0 0
        %1346 = vmatprep.subr.bf16.mxu0 0
        %1347 = vmatpush2.bf16.xpose.msra.mxu0 0
        %1348 = vmatprep.subr.bf16.mxu0 0
        %1349 = vmatpush2.bf16.xpose.msra.mxu0 0
        %1350 = vmatprep.subr.bf16.mxu0 0
        %1351 = vmatpush2.bf16.xpose.msra.mxu0 0
        %1352 = vmatprep.subr.bf16.mxu0 0
        %1353 = vmatpush2.bf16.xpose.msra.mxu0 0
        %1354 = vmatprep.mubr.bf16.mxu0 %v1321
        %1355 = vmatmul.mubr.bf16.gmra.mxu0 %v1320
        %v1356 = vpop.f32.mrf.mxu0
        %v1357 = vadd.f32 0.0, %v1356
        %v1358 = vpop.f32.mrf.mxu0
        %v1359 = vpop.f32.mrf.mxu0
        %v1360 = vadd.f32 0.0, %v1359
        %v1361 = vpop.f32.mrf.mxu0
        %1362 = vdwg.mxu0
        %1363 = vmatprep.subr.bf16.mxu0 0
        %1364 = vmatpush1.bf16.xpose.msra.mxu0 0
        %1365 = vmatprep.subr.bf16.mxu0 0
        %1366 = vmatpush1.bf16.xpose.msra.mxu0 0
        %1367 = vmatprep.subr.bf16.mxu0 0
        %1368 = vmatpush1.bf16.xpose.msra.mxu0 0
        %1369 = vmatprep.subr.bf16.mxu0 0
        %1370 = vmatpush1.bf16.xpose.msra.mxu0 0
        %1371 = vmatprep.subr.bf16.mxu0 0
        %1372 = vmatpush1.bf16.xpose.msra.mxu0 0
        %1373 = vmatprep.subr.bf16.mxu0 0
        %1374 = vmatpush1.bf16.xpose.msra.mxu0 0
        %1375 = vmatprep.subr.bf16.mxu0 0
        %1376 = vmatpush1.bf16.xpose.msra.mxu0 0
        %1377 = vmatprep.subr.bf16.mxu0 %v1321
        %1378 = vmatpush1.bf16.xpose.msra.mxu0 %v1320
        %1379 = vmatprep.subr.bf16.mxu0 0
        %1380 = vmatpush2.bf16.xpose.msra.mxu0 0
        %1381 = vmatprep.subr.bf16.mxu0 0
        %1382 = vmatpush2.bf16.xpose.msra.mxu0 0
        %1383 = vmatprep.subr.bf16.mxu0 0
        %1384 = vmatpush2.bf16.xpose.msra.mxu0 0
        %1385 = vmatprep.subr.bf16.mxu0 0
        %1386 = vmatpush2.bf16.xpose.msra.mxu0 0
        %1387 = vmatprep.subr.bf16.mxu0 0
        %1388 = vmatpush2.bf16.xpose.msra.mxu0 0
        %1389 = vmatprep.subr.bf16.mxu0 0
        %1390 = vmatpush2.bf16.xpose.msra.mxu0 0
        %1391 = vmatprep.subr.bf16.mxu0 0
        %1392 = vmatpush2.bf16.xpose.msra.mxu0 0
        %1393 = vmatprep.subr.bf16.mxu0 0
        %1394 = vmatpush2.bf16.xpose.msra.mxu0 0
        %1395 = vmatprep.mubr.bf16.mxu0 %v1321
        %1396 = vmatmul.mubr.bf16.gmra.mxu0 %v1320
        %v1397 = vpop.f32.mrf.mxu0
        %v1398 = vadd.f32 0.0, %v1397
        %v1399 = vpop.f32.mrf.mxu0
        %v1400 = vpop.f32.mrf.mxu0
        %v1401 = vadd.f32 0.0, %v1400
        %v1402 = vpop.f32.mrf.mxu0
        %1403 = vdwg.mxu0
        %v1404 = vpack.c.bf16 %v1401, %v1398
        %v1405 = vmul.f32 %v1045, %v1357
        %v1406 = vmul.f32 %v1046, %v1360
        %v1408 = vsel %vm1265, %v1404, 0
        %1410 = vmatprep.subr.bf16.mxu0 0
        %1411 = vmatpush1.bf16.msra.mxu0 0
        %1412 = vmatprep.subr.bf16.mxu0 0
        %1413 = vmatpush1.bf16.msra.mxu0 0
        %1414 = vmatprep.subr.bf16.mxu0 0
        %1415 = vmatpush1.bf16.msra.mxu0 0
        %1416 = vmatprep.subr.bf16.mxu0 0
        %1417 = vmatpush1.bf16.msra.mxu0 0
        %1418 = vmatprep.subr.bf16.mxu0 0
        %1419 = vmatpush1.bf16.msra.mxu0 0
        %1420 = vmatprep.subr.bf16.mxu0 0
        %1421 = vmatpush1.bf16.msra.mxu0 0
        %1422 = vmatprep.subr.bf16.mxu0 0
        %1423 = vmatpush1.bf16.msra.mxu0 0
        %1424 = vmatprep.subr.bf16.mxu0 0
        %1425 = vmatpush1.bf16.msra.mxu0 %v1047
        %1426 = vmatprep.subr.bf16.mxu0 0
        %1427 = vmatpush2.bf16.msra.mxu0 0
        %1428 = vmatprep.subr.bf16.mxu0 0
        %1429 = vmatpush2.bf16.msra.mxu0 0
        %1430 = vmatprep.subr.bf16.mxu0 0
        %1431 = vmatpush2.bf16.msra.mxu0 0
        %1432 = vmatprep.subr.bf16.mxu0 0
        %1433 = vmatpush2.bf16.msra.mxu0 0
        %1434 = vmatprep.subr.bf16.mxu0 0
        %1435 = vmatpush2.bf16.msra.mxu0 0
        %1436 = vmatprep.subr.bf16.mxu0 0
        %1437 = vmatpush2.bf16.msra.mxu0 0
        %1438 = vmatprep.subr.bf16.mxu0 0
        %1439 = vmatpush2.bf16.msra.mxu0 0
        %1440 = vmatprep.subr.bf16.mxu0 0
        %1441 = vmatpush2.bf16.msra.mxu0 0
        %1442 = vmatprep.mubr.bf16.mxu0 0
        %1443 = vmatmul.mubr.bf16.gmra.mxu0 %v1408
        %v1444 = vpop.f32.mrf.mxu0
        %v1445 = vadd.f32 1e-06, %v1444
        %v1446 = vpop.f32.mrf.mxu0
        %v1447 = vpop.f32.mrf.mxu0
        %v1448 = vadd.f32 1e-06, %v1447
        %v1449 = vpop.f32.mrf.mxu0
        %1450 = vdwg.mxu0
        %v1451 = vrcp.pop %v1445
        %v1452 = vrcp.pop %v1448
        %v1453 = vmul.f32 %v1405, %v1451
        %v1454 = vmul.f32 %v1406, %v1452
        %v1455 = vpack.c.bf16 %v1454, %v1453
        %1456 = vmatprep.subr.bf16.mxu0 %v1111
        %1457 = vmatpush1.bf16.msra.mxu0 %v1110
        %1458 = vmatprep.subr.bf16.mxu0 %v1109
        %1459 = vmatpush1.bf16.msra.mxu0 %v1108
        %1460 = vmatprep.subr.bf16.mxu0 %v1107
        %1461 = vmatpush1.bf16.msra.mxu0 %v1106
        %1462 = vmatprep.subr.bf16.mxu0 %v1105
        %1463 = vmatpush1.bf16.msra.mxu0 %v1104
        %1464 = vmatprep.subr.bf16.mxu0 %v1103
        %1465 = vmatpush1.bf16.msra.mxu0 %v1102
        %1466 = vmatprep.subr.bf16.mxu0 %v1101
        %1467 = vmatpush1.bf16.msra.mxu0 %v1100
        %1468 = vmatprep.subr.bf16.mxu0 %v1099
        %1469 = vmatpush1.bf16.msra.mxu0 %v1098
        %1470 = vmatprep.subr.bf16.mxu0 %v1097
        %1471 = vmatpush1.bf16.msra.mxu0 %v1096
        %1472 = vmatprep.subr.bf16.mxu0 0
        %1473 = vmatpush2.bf16.msra.mxu0 0
        %1474 = vmatprep.subr.bf16.mxu0 0
        %1475 = vmatpush2.bf16.msra.mxu0 0
        %1476 = vmatprep.subr.bf16.mxu0 0
        %1477 = vmatpush2.bf16.msra.mxu0 0
        %1478 = vmatprep.subr.bf16.mxu0 0
        %1479 = vmatpush2.bf16.msra.mxu0 0
        %1480 = vmatprep.subr.bf16.mxu0 0
        %1481 = vmatpush2.bf16.msra.mxu0 0
        %1482 = vmatprep.subr.bf16.mxu0 0
        %1483 = vmatpush2.bf16.msra.mxu0 0
        %1484 = vmatprep.subr.bf16.mxu0 0
        %1485 = vmatpush2.bf16.msra.mxu0 0
        %1486 = vmatprep.subr.bf16.mxu0 0
        %1487 = vmatpush2.bf16.msra.mxu0 0
        %1488 = vmatprep.mubr.bf16.mxu0 0
        %1489 = vmatmul.mubr.bf16.gmra.mxu0 %v1455
        %v1490 = vpop.f32.mrf.mxu0
        %v1491 = vadd.f32 0.0, %v1490
        %v1492 = vpop.f32.mrf.mxu0
        %v1493 = vadd.f32 0.0, %v1492
        %v1494 = vpop.f32.mrf.mxu0
        %v1495 = vadd.f32 0.0, %v1494
        %v1496 = vpop.f32.mrf.mxu0
        %v1497 = vadd.f32 0.0, %v1496
        %1498 = vdwg.mxu0
        %1499 = vmatprep.subr.bf16.mxu0 0
        %1500 = vmatpush1.bf16.xpose.msra.mxu0 0
        %1501 = vmatprep.subr.bf16.mxu0 0
        %1502 = vmatpush1.bf16.xpose.msra.mxu0 0
        %1503 = vmatprep.subr.bf16.mxu0 0
        %1504 = vmatpush1.bf16.xpose.msra.mxu0 0
        %1505 = vmatprep.subr.bf16.mxu0 0
        %1506 = vmatpush1.bf16.xpose.msra.mxu0 0
        %1507 = vmatprep.subr.bf16.mxu0 0
        %1508 = vmatpush1.bf16.xpose.msra.mxu0 0
        %1509 = vmatprep.subr.bf16.mxu0 0
        %1510 = vmatpush1.bf16.xpose.msra.mxu0 0
        %1511 = vmatprep.subr.bf16.mxu0 0
        %1512 = vmatpush1.bf16.xpose.msra.mxu0 0
        %1513 = vmatprep.subr.bf16.mxu0 0
        %1514 = vmatpush1.bf16.xpose.msra.mxu0 %v1455
        %1515 = vmatprep.subr.bf16.mxu0 0
        %1516 = vmatpush2.bf16.xpose.msra.mxu0 0
        %1517 = vmatprep.subr.bf16.mxu0 0
        %1518 = vmatpush2.bf16.xpose.msra.mxu0 0
        %1519 = vmatprep.subr.bf16.mxu0 0
        %1520 = vmatpush2.bf16.xpose.msra.mxu0 0
        %1521 = vmatprep.subr.bf16.mxu0 0
        %1522 = vmatpush2.bf16.xpose.msra.mxu0 0
        %1523 = vmatprep.subr.bf16.mxu0 0
        %1524 = vmatpush2.bf16.xpose.msra.mxu0 0
        %1525 = vmatprep.subr.bf16.mxu0 0
        %1526 = vmatpush2.bf16.xpose.msra.mxu0 0
        %1527 = vmatprep.subr.bf16.mxu0 0
        %1528 = vmatpush2.bf16.xpose.msra.mxu0 0
        %1529 = vmatprep.subr.bf16.mxu0 0
        %1530 = vmatpush2.bf16.xpose.msra.mxu0 0
        %1531 = vmatprep.mubr.bf16.mxu0 0
        %1532 = vmatmul.mubr.bf16.gmra.mxu0 %v1455
        %v1533 = vpop.f32.mrf.mxu0
        %v1534 = vadd.f32 0.0, %v1533
        %v1535 = vpop.f32.mrf.mxu0
        %v1536 = vpop.f32.mrf.mxu0
        %v1537 = vadd.f32 0.0, %v1536
        %v1538 = vpop.f32.mrf.mxu0
        %1539 = vdwg.mxu0
        %v1540 = vpack.c.bf16 %v1537, %v1534
        %v1541 = vmul.f32 %v1316, %v1491
        %v1542 = vmul.f32 %v1317, %v1493
        %v1543 = vmul.f32 %v1318, %v1495
        %v1544 = vmul.f32 %v1319, %v1497
        %v1546 = vsel %vm1265, %v1540, 0
        %1548 = vmatprep.subr.bf16.mxu0 0
        %1549 = vmatpush1.bf16.msra.mxu0 0
        %1550 = vmatprep.subr.bf16.mxu0 0
        %1551 = vmatpush1.bf16.msra.mxu0 0
        %1552 = vmatprep.subr.bf16.mxu0 0
        %1553 = vmatpush1.bf16.msra.mxu0 0
        %1554 = vmatprep.subr.bf16.mxu0 0
        %1555 = vmatpush1.bf16.msra.mxu0 0
        %1556 = vmatprep.subr.bf16.mxu0 0
        %1557 = vmatpush1.bf16.msra.mxu0 0
        %1558 = vmatprep.subr.bf16.mxu0 0
        %1559 = vmatpush1.bf16.msra.mxu0 0
        %1560 = vmatprep.subr.bf16.mxu0 0
        %1561 = vmatpush1.bf16.msra.mxu0 0
        %1562 = vmatprep.subr.bf16.mxu0 %v1321
        %1563 = vmatpush1.bf16.msra.mxu0 %v1320
        %1564 = vmatprep.subr.bf16.mxu0 0
        %1565 = vmatpush2.bf16.msra.mxu0 0
        %1566 = vmatprep.subr.bf16.mxu0 0
        %1567 = vmatpush2.bf16.msra.mxu0 0
        %1568 = vmatprep.subr.bf16.mxu0 0
        %1569 = vmatpush2.bf16.msra.mxu0 0
        %1570 = vmatprep.subr.bf16.mxu0 0
        %1571 = vmatpush2.bf16.msra.mxu0 0
        %1572 = vmatprep.subr.bf16.mxu0 0
        %1573 = vmatpush2.bf16.msra.mxu0 0
        %1574 = vmatprep.subr.bf16.mxu0 0
        %1575 = vmatpush2.bf16.msra.mxu0 0
        %1576 = vmatprep.subr.bf16.mxu0 0
        %1577 = vmatpush2.bf16.msra.mxu0 0
        %1578 = vmatprep.subr.bf16.mxu0 0
        %1579 = vmatpush2.bf16.msra.mxu0 0
        %1580 = vmatprep.mubr.bf16.mxu0 0
        %1581 = vmatmul.mubr.bf16.gmra.mxu0 %v1546
        %v1582 = vpop.f32.mrf.mxu0
        %v1583 = vadd.f32 1e-06, %v1582
        %v1584 = vpop.f32.mrf.mxu0
        %v1585 = vadd.f32 1e-06, %v1584
        %v1586 = vpop.f32.mrf.mxu0
        %v1587 = vadd.f32 1e-06, %v1586
        %v1588 = vpop.f32.mrf.mxu0
        %v1589 = vadd.f32 1e-06, %v1588
        %1590 = vdwg.mxu0
        %v1591 = vrcp.pop %v1583
        %v1592 = vrcp.pop %v1585
        %v1593 = vrcp.pop %v1587
        %v1594 = vrcp.pop %v1589
        %v1595 = vmul.f32 %v1541, %v1591
        %v1596 = vmul.f32 %v1542, %v1592
        %v1597 = vmul.f32 %v1543, %v1593
        %v1598 = vmul.f32 %v1544, %v1594
        %v1599 = vpack.c.bf16 %v1597, %v1595
        %v1600 = vpack.c.bf16 %v1598, %v1596
        %1601 = vmatprep.subr.bf16.mxu0 %v1111
        %1602 = vmatpush1.bf16.xpose.msra.mxu0 %v1110
        %1603 = vmatprep.subr.bf16.mxu0 %v1109
        %1604 = vmatpush1.bf16.xpose.msra.mxu0 %v1108
        %1605 = vmatprep.subr.bf16.mxu0 %v1107
        %1606 = vmatpush1.bf16.xpose.msra.mxu0 %v1106
        %1607 = vmatprep.subr.bf16.mxu0 %v1105
        %1608 = vmatpush1.bf16.xpose.msra.mxu0 %v1104
        %1609 = vmatprep.subr.bf16.mxu0 %v1103
        %1610 = vmatpush1.bf16.xpose.msra.mxu0 %v1102
        %1611 = vmatprep.subr.bf16.mxu0 %v1101
        %1612 = vmatpush1.bf16.xpose.msra.mxu0 %v1100
        %1613 = vmatprep.subr.bf16.mxu0 %v1099
        %1614 = vmatpush1.bf16.xpose.msra.mxu0 %v1098
        %1615 = vmatprep.subr.bf16.mxu0 %v1097
        %1616 = vmatpush1.bf16.xpose.msra.mxu0 %v1096
        %1617 = vmatprep.subr.bf16.mxu0 0
        %1618 = vmatpush2.bf16.xpose.msra.mxu0 0
        %1619 = vmatprep.subr.bf16.mxu0 0
        %1620 = vmatpush2.bf16.xpose.msra.mxu0 0
        %1621 = vmatprep.subr.bf16.mxu0 0
        %1622 = vmatpush2.bf16.xpose.msra.mxu0 0
        %1623 = vmatprep.subr.bf16.mxu0 0
        %1624 = vmatpush2.bf16.xpose.msra.mxu0 0
        %1625 = vmatprep.subr.bf16.mxu0 0
        %1626 = vmatpush2.bf16.xpose.msra.mxu0 0
        %1627 = vmatprep.subr.bf16.mxu0 0
        %1628 = vmatpush2.bf16.xpose.msra.mxu0 0
        %1629 = vmatprep.subr.bf16.mxu0 0
        %1630 = vmatpush2.bf16.xpose.msra.mxu0 0
        %1631 = vmatprep.subr.bf16.mxu0 0
        %1632 = vmatpush2.bf16.xpose.msra.mxu0 0
        %1633 = vmatprep.mubr.bf16.mxu0 %v1600
        %1634 = vmatmul.mubr.bf16.gmra.mxu0 %v1599
        %v1635 = vpop.f32.mrf.mxu0
        %v1636 = vadd.f32 0.0, %v1635
        %v1637 = vpop.f32.mrf.mxu0
        %v1638 = vpop.f32.mrf.mxu0
        %v1639 = vadd.f32 0.0, %v1638
        %v1640 = vpop.f32.mrf.mxu0
        %1641 = vdwg.mxu0
        %1642 = vmatprep.subr.bf16.mxu0 0
        %1643 = vmatpush1.bf16.xpose.msra.mxu0 0
        %1644 = vmatprep.subr.bf16.mxu0 0
        %1645 = vmatpush1.bf16.xpose.msra.mxu0 0
        %1646 = vmatprep.subr.bf16.mxu0 0
        %1647 = vmatpush1.bf16.xpose.msra.mxu0 0
        %1648 = vmatprep.subr.bf16.mxu0 0
        %1649 = vmatpush1.bf16.xpose.msra.mxu0 0
        %1650 = vmatprep.subr.bf16.mxu0 0
        %1651 = vmatpush1.bf16.xpose.msra.mxu0 0
        %1652 = vmatprep.subr.bf16.mxu0 0
        %1653 = vmatpush1.bf16.xpose.msra.mxu0 0
        %1654 = vmatprep.subr.bf16.mxu0 0
        %1655 = vmatpush1.bf16.xpose.msra.mxu0 0
        %1656 = vmatprep.subr.bf16.mxu0 %v1600
        %1657 = vmatpush1.bf16.xpose.msra.mxu0 %v1599
        %1658 = vmatprep.subr.bf16.mxu0 0
        %1659 = vmatpush2.bf16.xpose.msra.mxu0 0
        %1660 = vmatprep.subr.bf16.mxu0 0
        %1661 = vmatpush2.bf16.xpose.msra.mxu0 0
        %1662 = vmatprep.subr.bf16.mxu0 0
        %1663 = vmatpush2.bf16.xpose.msra.mxu0 0
        %1664 = vmatprep.subr.bf16.mxu0 0
        %1665 = vmatpush2.bf16.xpose.msra.mxu0 0
        %1666 = vmatprep.subr.bf16.mxu0 0
        %1667 = vmatpush2.bf16.xpose.msra.mxu0 0
        %1668 = vmatprep.subr.bf16.mxu0 0
        %1669 = vmatpush2.bf16.xpose.msra.mxu0 0
        %1670 = vmatprep.subr.bf16.mxu0 0
        %1671 = vmatpush2.bf16.xpose.msra.mxu0 0
        %1672 = vmatprep.subr.bf16.mxu0 0
        %1673 = vmatpush2.bf16.xpose.msra.mxu0 0
        %1674 = vmatprep.mubr.bf16.mxu0 %v1600
        %1675 = vmatmul.mubr.bf16.gmra.mxu0 %v1599
        %v1676 = vpop.f32.mrf.mxu0
        %v1677 = vadd.f32 0.0, %v1676
        %v1678 = vpop.f32.mrf.mxu0
        %v1679 = vpop.f32.mrf.mxu0
        %v1680 = vadd.f32 0.0, %v1679
        %v1681 = vpop.f32.mrf.mxu0
        %1682 = vdwg.mxu0
        %v1683 = vpack.c.bf16 %v1680, %v1677
        %v1684 = vmul.f32 %v1453, %v1636
        %v1685 = vmul.f32 %v1454, %v1639
        %v1687 = vsel %vm1265, %v1683, 0
        %1689 = vmatprep.subr.bf16.mxu0 0
        %1690 = vmatpush1.bf16.msra.mxu0 0
        %1691 = vmatprep.subr.bf16.mxu0 0
        %1692 = vmatpush1.bf16.msra.mxu0 0
        %1693 = vmatprep.subr.bf16.mxu0 0
        %1694 = vmatpush1.bf16.msra.mxu0 0
        %1695 = vmatprep.subr.bf16.mxu0 0
        %1696 = vmatpush1.bf16.msra.mxu0 0
        %1697 = vmatprep.subr.bf16.mxu0 0
        %1698 = vmatpush1.bf16.msra.mxu0 0
        %1699 = vmatprep.subr.bf16.mxu0 0
        %1700 = vmatpush1.bf16.msra.mxu0 0
        %1701 = vmatprep.subr.bf16.mxu0 0
        %1702 = vmatpush1.bf16.msra.mxu0 0
        %1703 = vmatprep.subr.bf16.mxu0 0
        %1704 = vmatpush1.bf16.msra.mxu0 %v1455
        %1705 = vmatprep.subr.bf16.mxu0 0
        %1706 = vmatpush2.bf16.msra.mxu0 0
        %1707 = vmatprep.subr.bf16.mxu0 0
        %1708 = vmatpush2.bf16.msra.mxu0 0
        %1709 = vmatprep.subr.bf16.mxu0 0
        %1710 = vmatpush2.bf16.msra.mxu0 0
        %1711 = vmatprep.subr.bf16.mxu0 0
        %1712 = vmatpush2.bf16.msra.mxu0 0
        %1713 = vmatprep.subr.bf16.mxu0 0
        %1714 = vmatpush2.bf16.msra.mxu0 0
        %1715 = vmatprep.subr.bf16.mxu0 0
        %1716 = vmatpush2.bf16.msra.mxu0 0
        %1717 = vmatprep.subr.bf16.mxu0 0
        %1718 = vmatpush2.bf16.msra.mxu0 0
        %1719 = vmatprep.subr.bf16.mxu0 0
        %1720 = vmatpush2.bf16.msra.mxu0 0
        %1721 = vmatprep.mubr.bf16.mxu0 0
        %1722 = vmatmul.mubr.bf16.gmra.mxu0 %v1687
        %v1723 = vpop.f32.mrf.mxu0
        %v1724 = vadd.f32 1e-06, %v1723
        %v1725 = vpop.f32.mrf.mxu0
        %v1726 = vpop.f32.mrf.mxu0
        %v1727 = vadd.f32 1e-06, %v1726
        %v1728 = vpop.f32.mrf.mxu0
        %1729 = vdwg.mxu0
        %v1730 = vrcp.pop %v1724
        %v1731 = vrcp.pop %v1727
        %v1732 = vmul.f32 %v1684, %v1730
        %v1733 = vmul.f32 %v1685, %v1731
        %v1734 = vpack.c.bf16 %v1733, %v1732
        %1735 = vmatprep.subr.bf16.mxu0 %v1111
        %1736 = vmatpush1.bf16.msra.mxu0 %v1110
        %1737 = vmatprep.subr.bf16.mxu0 %v1109
        %1738 = vmatpush1.bf16.msra.mxu0 %v1108
        %1739 = vmatprep.subr.bf16.mxu0 %v1107
        %1740 = vmatpush1.bf16.msra.mxu0 %v1106
        %1741 = vmatprep.subr.bf16.mxu0 %v1105
        %1742 = vmatpush1.bf16.msra.mxu0 %v1104
        %1743 = vmatprep.subr.bf16.mxu0 %v1103
        %1744 = vmatpush1.bf16.msra.mxu0 %v1102
        %1745 = vmatprep.subr.bf16.mxu0 %v1101
        %1746 = vmatpush1.bf16.msra.mxu0 %v1100
        %1747 = vmatprep.subr.bf16.mxu0 %v1099
        %1748 = vmatpush1.bf16.msra.mxu0 %v1098
        %1749 = vmatprep.subr.bf16.mxu0 %v1097
        %1750 = vmatpush1.bf16.msra.mxu0 %v1096
        %1751 = vmatprep.subr.bf16.mxu0 0
        %1752 = vmatpush2.bf16.msra.mxu0 0
        %1753 = vmatprep.subr.bf16.mxu0 0
        %1754 = vmatpush2.bf16.msra.mxu0 0
        %1755 = vmatprep.subr.bf16.mxu0 0
        %1756 = vmatpush2.bf16.msra.mxu0 0
        %1757 = vmatprep.subr.bf16.mxu0 0
        %1758 = vmatpush2.bf16.msra.mxu0 0
        %1759 = vmatprep.subr.bf16.mxu0 0
        %1760 = vmatpush2.bf16.msra.mxu0 0
        %1761 = vmatprep.subr.bf16.mxu0 0
        %1762 = vmatpush2.bf16.msra.mxu0 0
        %1763 = vmatprep.subr.bf16.mxu0 0
        %1764 = vmatpush2.bf16.msra.mxu0 0
        %1765 = vmatprep.subr.bf16.mxu0 0
        %1766 = vmatpush2.bf16.msra.mxu0 0
        %1767 = vmatprep.mubr.bf16.mxu0 0
        %1768 = vmatmul.mubr.bf16.gmra.mxu0 %v1734
        %v1769 = vpop.f32.mrf.mxu0
        %v1770 = vadd.f32 0.0, %v1769
        %v1771 = vpop.f32.mrf.mxu0
        %v1772 = vadd.f32 0.0, %v1771
        %v1773 = vpop.f32.mrf.mxu0
        %v1774 = vadd.f32 0.0, %v1773
        %v1775 = vpop.f32.mrf.mxu0
        %v1776 = vadd.f32 0.0, %v1775
        %1777 = vdwg.mxu0
        %1778 = vmatprep.subr.bf16.mxu0 0
        %1779 = vmatpush1.bf16.xpose.msra.mxu0 0
        %1780 = vmatprep.subr.bf16.mxu0 0
        %1781 = vmatpush1.bf16.xpose.msra.mxu0 0
        %1782 = vmatprep.subr.bf16.mxu0 0
        %1783 = vmatpush1.bf16.xpose.msra.mxu0 0
        %1784 = vmatprep.subr.bf16.mxu0 0
        %1785 = vmatpush1.bf16.xpose.msra.mxu0 0
        %1786 = vmatprep.subr.bf16.mxu0 0
        %1787 = vmatpush1.bf16.xpose.msra.mxu0 0
        %1788 = vmatprep.subr.bf16.mxu0 0
        %1789 = vmatpush1.bf16.xpose.msra.mxu0 0
        %1790 = vmatprep.subr.bf16.mxu0 0
        %1791 = vmatpush1.bf16.xpose.msra.mxu0 0
        %1792 = vmatprep.subr.bf16.mxu0 0
        %1793 = vmatpush1.bf16.xpose.msra.mxu0 %v1734
        %1794 = vmatprep.subr.bf16.mxu0 0
        %1795 = vmatpush2.bf16.xpose.msra.mxu0 0
        %1796 = vmatprep.subr.bf16.mxu0 0
        %1797 = vmatpush2.bf16.xpose.msra.mxu0 0
        %1798 = vmatprep.subr.bf16.mxu0 0
        %1799 = vmatpush2.bf16.xpose.msra.mxu0 0
        %1800 = vmatprep.subr.bf16.mxu0 0
        %1801 = vmatpush2.bf16.xpose.msra.mxu0 0
        %1802 = vmatprep.subr.bf16.mxu0 0
        %1803 = vmatpush2.bf16.xpose.msra.mxu0 0
        %1804 = vmatprep.subr.bf16.mxu0 0
        %1805 = vmatpush2.bf16.xpose.msra.mxu0 0
        %1806 = vmatprep.subr.bf16.mxu0 0
        %1807 = vmatpush2.bf16.xpose.msra.mxu0 0
        %1808 = vmatprep.subr.bf16.mxu0 0
        %1809 = vmatpush2.bf16.xpose.msra.mxu0 0
        %1810 = vmatprep.mubr.bf16.mxu0 0
        %1811 = vmatmul.mubr.bf16.gmra.mxu0 %v1734
        %v1812 = vpop.f32.mrf.mxu0
        %v1813 = vadd.f32 0.0, %v1812
        %v1814 = vpop.f32.mrf.mxu0
        %v1815 = vpop.f32.mrf.mxu0
        %v1816 = vadd.f32 0.0, %v1815
        %v1817 = vpop.f32.mrf.mxu0
        %1818 = vdwg.mxu0
        %v1819 = vpack.c.bf16 %v1816, %v1813
        %v1820 = vmul.f32 %v1595, %v1770
        %v1821 = vmul.f32 %v1596, %v1772
        %v1822 = vmul.f32 %v1597, %v1774
        %v1823 = vmul.f32 %v1598, %v1776
        %v1825 = vsel %vm1265, %v1819, 0
        %1827 = vmatprep.subr.bf16.mxu0 0
        %1828 = vmatpush1.bf16.msra.mxu0 0
        %1829 = vmatprep.subr.bf16.mxu0 0
        %1830 = vmatpush1.bf16.msra.mxu0 0
        %1831 = vmatprep.subr.bf16.mxu0 0
        %1832 = vmatpush1.bf16.msra.mxu0 0
        %1833 = vmatprep.subr.bf16.mxu0 0
        %1834 = vmatpush1.bf16.msra.mxu0 0
        %1835 = vmatprep.subr.bf16.mxu0 0
        %1836 = vmatpush1.bf16.msra.mxu0 0
        %1837 = vmatprep.subr.bf16.mxu0 0
        %1838 = vmatpush1.bf16.msra.mxu0 0
        %1839 = vmatprep.subr.bf16.mxu0 0
        %1840 = vmatpush1.bf16.msra.mxu0 0
        %1841 = vmatprep.subr.bf16.mxu0 %v1600
        %1842 = vmatpush1.bf16.msra.mxu0 %v1599
        %1843 = vmatprep.subr.bf16.mxu0 0
        %1844 = vmatpush2.bf16.msra.mxu0 0
        %1845 = vmatprep.subr.bf16.mxu0 0
        %1846 = vmatpush2.bf16.msra.mxu0 0
        %1847 = vmatprep.subr.bf16.mxu0 0
        %1848 = vmatpush2.bf16.msra.mxu0 0
        %1849 = vmatprep.subr.bf16.mxu0 0
        %1850 = vmatpush2.bf16.msra.mxu0 0
        %1851 = vmatprep.subr.bf16.mxu0 0
        %1852 = vmatpush2.bf16.msra.mxu0 0
        %1853 = vmatprep.subr.bf16.mxu0 0
        %1854 = vmatpush2.bf16.msra.mxu0 0
        %1855 = vmatprep.subr.bf16.mxu0 0
        %1856 = vmatpush2.bf16.msra.mxu0 0
        %1857 = vmatprep.subr.bf16.mxu0 0
        %1858 = vmatpush2.bf16.msra.mxu0 0
        %1859 = vmatprep.mubr.bf16.mxu0 0
        %1860 = vmatmul.mubr.bf16.gmra.mxu0 %v1825
        %v1861 = vpop.f32.mrf.mxu0
        %v1862 = vadd.f32 1e-06, %v1861
        %v1863 = vpop.f32.mrf.mxu0
        %v1864 = vadd.f32 1e-06, %v1863
        %v1865 = vpop.f32.mrf.mxu0
        %v1866 = vadd.f32 1e-06, %v1865
        %v1867 = vpop.f32.mrf.mxu0
        %v1868 = vadd.f32 1e-06, %v1867
        %1869 = vdwg.mxu0
        %v1870 = vrcp.pop %v1862
        %v1871 = vrcp.pop %v1864
        %v1872 = vrcp.pop %v1866
        %v1873 = vrcp.pop %v1868
        %v1874 = vmul.f32 %v1820, %v1870
        %v1875 = vmul.f32 %v1821, %v1871
        %v1876 = vmul.f32 %v1822, %v1872
        %v1877 = vmul.f32 %v1823, %v1873
        %v1878 = vpack.c.bf16 %v1876, %v1874
        %v1879 = vpack.c.bf16 %v1877, %v1875
        %1880 = vmatprep.subr.bf16.mxu0 %v1111
        %1881 = vmatpush1.bf16.xpose.msra.mxu0 %v1110
        %1882 = vmatprep.subr.bf16.mxu0 %v1109
        %1883 = vmatpush1.bf16.xpose.msra.mxu0 %v1108
        %1884 = vmatprep.subr.bf16.mxu0 %v1107
        %1885 = vmatpush1.bf16.xpose.msra.mxu0 %v1106
        %1886 = vmatprep.subr.bf16.mxu0 %v1105
        %1887 = vmatpush1.bf16.xpose.msra.mxu0 %v1104
        %1888 = vmatprep.subr.bf16.mxu0 %v1103
        %1889 = vmatpush1.bf16.xpose.msra.mxu0 %v1102
        %1890 = vmatprep.subr.bf16.mxu0 %v1101
        %1891 = vmatpush1.bf16.xpose.msra.mxu0 %v1100
        %1892 = vmatprep.subr.bf16.mxu0 %v1099
        %1893 = vmatpush1.bf16.xpose.msra.mxu0 %v1098
        %1894 = vmatprep.subr.bf16.mxu0 %v1097
        %1895 = vmatpush1.bf16.xpose.msra.mxu0 %v1096
        %1896 = vmatprep.subr.bf16.mxu0 0
        %1897 = vmatpush2.bf16.xpose.msra.mxu0 0
        %1898 = vmatprep.subr.bf16.mxu0 0
        %1899 = vmatpush2.bf16.xpose.msra.mxu0 0
        %1900 = vmatprep.subr.bf16.mxu0 0
        %1901 = vmatpush2.bf16.xpose.msra.mxu0 0
        %1902 = vmatprep.subr.bf16.mxu0 0
        %1903 = vmatpush2.bf16.xpose.msra.mxu0 0
        %1904 = vmatprep.subr.bf16.mxu0 0
        %1905 = vmatpush2.bf16.xpose.msra.mxu0 0
        %1906 = vmatprep.subr.bf16.mxu0 0
        %1907 = vmatpush2.bf16.xpose.msra.mxu0 0
        %1908 = vmatprep.subr.bf16.mxu0 0
        %1909 = vmatpush2.bf16.xpose.msra.mxu0 0
        %1910 = vmatprep.subr.bf16.mxu0 0
        %1911 = vmatpush2.bf16.xpose.msra.mxu0 0
        %1912 = vmatprep.mubr.bf16.mxu0 %v1879
        %1913 = vmatmul.mubr.bf16.gmra.mxu0 %v1878
        %v1914 = vpop.f32.mrf.mxu0
        %v1915 = vadd.f32 0.0, %v1914
        %v1916 = vpop.f32.mrf.mxu0
        %v1917 = vpop.f32.mrf.mxu0
        %v1918 = vadd.f32 0.0, %v1917
        %v1919 = vpop.f32.mrf.mxu0
        %1920 = vdwg.mxu0
        %1921 = vmatprep.subr.bf16.mxu0 0
        %1922 = vmatpush1.bf16.xpose.msra.mxu0 0
        %1923 = vmatprep.subr.bf16.mxu0 0
        %1924 = vmatpush1.bf16.xpose.msra.mxu0 0
        %1925 = vmatprep.subr.bf16.mxu0 0
        %1926 = vmatpush1.bf16.xpose.msra.mxu0 0
        %1927 = vmatprep.subr.bf16.mxu0 0
        %1928 = vmatpush1.bf16.xpose.msra.mxu0 0
        %1929 = vmatprep.subr.bf16.mxu0 0
        %1930 = vmatpush1.bf16.xpose.msra.mxu0 0
        %1931 = vmatprep.subr.bf16.mxu0 0
        %1932 = vmatpush1.bf16.xpose.msra.mxu0 0
        %1933 = vmatprep.subr.bf16.mxu0 0
        %1934 = vmatpush1.bf16.xpose.msra.mxu0 0
        %1935 = vmatprep.subr.bf16.mxu0 %v1879
        %1936 = vmatpush1.bf16.xpose.msra.mxu0 %v1878
        %1937 = vmatprep.subr.bf16.mxu0 0
        %1938 = vmatpush2.bf16.xpose.msra.mxu0 0
        %1939 = vmatprep.subr.bf16.mxu0 0
        %1940 = vmatpush2.bf16.xpose.msra.mxu0 0
        %1941 = vmatprep.subr.bf16.mxu0 0
        %1942 = vmatpush2.bf16.xpose.msra.mxu0 0
        %1943 = vmatprep.subr.bf16.mxu0 0
        %1944 = vmatpush2.bf16.xpose.msra.mxu0 0
        %1945 = vmatprep.subr.bf16.mxu0 0
        %1946 = vmatpush2.bf16.xpose.msra.mxu0 0
        %1947 = vmatprep.subr.bf16.mxu0 0
        %1948 = vmatpush2.bf16.xpose.msra.mxu0 0
        %1949 = vmatprep.subr.bf16.mxu0 0
        %1950 = vmatpush2.bf16.xpose.msra.mxu0 0
        %1951 = vmatprep.subr.bf16.mxu0 0
        %1952 = vmatpush2.bf16.xpose.msra.mxu0 0
        %1953 = vmatprep.mubr.bf16.mxu0 %v1879
        %1954 = vmatmul.mubr.bf16.gmra.mxu0 %v1878
        %v1955 = vpop.f32.mrf.mxu0
        %v1956 = vadd.f32 0.0, %v1955
        %v1957 = vpop.f32.mrf.mxu0
        %v1958 = vpop.f32.mrf.mxu0
        %v1959 = vadd.f32 0.0, %v1958
        %v1960 = vpop.f32.mrf.mxu0
        %1961 = vdwg.mxu0
        %v1962 = vpack.c.bf16 %v1959, %v1956
        %v1963 = vmul.f32 %v1732, %v1915
        %v1964 = vmul.f32 %v1733, %v1918
        %v1966 = vsel %vm1265, %v1962, 0
        %1968 = vmatprep.subr.bf16.mxu0 0
        %1969 = vmatpush1.bf16.msra.mxu0 0
        %1970 = vmatprep.subr.bf16.mxu0 0
        %1971 = vmatpush1.bf16.msra.mxu0 0
        %1972 = vmatprep.subr.bf16.mxu0 0
        %1973 = vmatpush1.bf16.msra.mxu0 0
        %1974 = vmatprep.subr.bf16.mxu0 0
        %1975 = vmatpush1.bf16.msra.mxu0 0
        %1976 = vmatprep.subr.bf16.mxu0 0
        %1977 = vmatpush1.bf16.msra.mxu0 0
        %1978 = vmatprep.subr.bf16.mxu0 0
        %1979 = vmatpush1.bf16.msra.mxu0 0
        %1980 = vmatprep.subr.bf16.mxu0 0
        %1981 = vmatpush1.bf16.msra.mxu0 0
        %1982 = vmatprep.subr.bf16.mxu0 0
        %1983 = vmatpush1.bf16.msra.mxu0 %v1734
        %1984 = vmatprep.subr.bf16.mxu0 0
        %1985 = vmatpush2.bf16.msra.mxu0 0
        %1986 = vmatprep.subr.bf16.mxu0 0
        %1987 = vmatpush2.bf16.msra.mxu0 0
        %1988 = vmatprep.subr.bf16.mxu0 0
        %1989 = vmatpush2.bf16.msra.mxu0 0
        %1990 = vmatprep.subr.bf16.mxu0 0
        %1991 = vmatpush2.bf16.msra.mxu0 0
        %1992 = vmatprep.subr.bf16.mxu0 0
        %1993 = vmatpush2.bf16.msra.mxu0 0
        %1994 = vmatprep.subr.bf16.mxu0 0
        %1995 = vmatpush2.bf16.msra.mxu0 0
        %1996 = vmatprep.subr.bf16.mxu0 0
        %1997 = vmatpush2.bf16.msra.mxu0 0
        %1998 = vmatprep.subr.bf16.mxu0 0
        %1999 = vmatpush2.bf16.msra.mxu0 0
        %2000 = vmatprep.mubr.bf16.mxu0 0
        %2001 = vmatmul.mubr.bf16.gmra.mxu0 %v1966
        %v2002 = vpop.f32.mrf.mxu0
        %v2003 = vadd.f32 1e-06, %v2002
        %v2004 = vpop.f32.mrf.mxu0
        %v2005 = vpop.f32.mrf.mxu0
        %v2006 = vadd.f32 1e-06, %v2005
        %v2007 = vpop.f32.mrf.mxu0
        %2008 = vdwg.mxu0
        %v2009 = vrcp.pop %v2003
        %v2010 = vrcp.pop %v2006
        %v2011 = vmul.f32 %v1963, %v2009
        %v2012 = vmul.f32 %v1964, %v2010
        %v2013 = vpack.c.bf16 %v2012, %v2011
        %2014 = vmatprep.subr.bf16.mxu0 %v1111
        %2015 = vmatpush1.bf16.msra.mxu0 %v1110
        %2016 = vmatprep.subr.bf16.mxu0 %v1109
        %2017 = vmatpush1.bf16.msra.mxu0 %v1108
        %2018 = vmatprep.subr.bf16.mxu0 %v1107
        %2019 = vmatpush1.bf16.msra.mxu0 %v1106
        %2020 = vmatprep.subr.bf16.mxu0 %v1105
        %2021 = vmatpush1.bf16.msra.mxu0 %v1104
        %2022 = vmatprep.subr.bf16.mxu0 %v1103
        %2023 = vmatpush1.bf16.msra.mxu0 %v1102
        %2024 = vmatprep.subr.bf16.mxu0 %v1101
        %2025 = vmatpush1.bf16.msra.mxu0 %v1100
        %2026 = vmatprep.subr.bf16.mxu0 %v1099
        %2027 = vmatpush1.bf16.msra.mxu0 %v1098
        %2028 = vmatprep.subr.bf16.mxu0 %v1097
        %2029 = vmatpush1.bf16.msra.mxu0 %v1096
        %2030 = vmatprep.subr.bf16.mxu0 0
        %2031 = vmatpush2.bf16.msra.mxu0 0
        %2032 = vmatprep.subr.bf16.mxu0 0
        %2033 = vmatpush2.bf16.msra.mxu0 0
        %2034 = vmatprep.subr.bf16.mxu0 0
        %2035 = vmatpush2.bf16.msra.mxu0 0
        %2036 = vmatprep.subr.bf16.mxu0 0
        %2037 = vmatpush2.bf16.msra.mxu0 0
        %2038 = vmatprep.subr.bf16.mxu0 0
        %2039 = vmatpush2.bf16.msra.mxu0 0
        %2040 = vmatprep.subr.bf16.mxu0 0
        %2041 = vmatpush2.bf16.msra.mxu0 0
        %2042 = vmatprep.subr.bf16.mxu0 0
        %2043 = vmatpush2.bf16.msra.mxu0 0
        %2044 = vmatprep.subr.bf16.mxu0 0
        %2045 = vmatpush2.bf16.msra.mxu0 0
        %2046 = vmatprep.mubr.bf16.mxu0 0
        %2047 = vmatmul.mubr.bf16.gmra.mxu0 %v2013
        %v2048 = vpop.f32.mrf.mxu0
        %v2049 = vadd.f32 0.0, %v2048
        %v2050 = vpop.f32.mrf.mxu0
        %v2051 = vadd.f32 0.0, %v2050
        %v2052 = vpop.f32.mrf.mxu0
        %v2053 = vadd.f32 0.0, %v2052
        %v2054 = vpop.f32.mrf.mxu0
        %v2055 = vadd.f32 0.0, %v2054
        %2056 = vdwg.mxu0
        %2057 = vmatprep.subr.bf16.mxu0 0
        %2058 = vmatpush1.bf16.xpose.msra.mxu0 0
        %2059 = vmatprep.subr.bf16.mxu0 0
        %2060 = vmatpush1.bf16.xpose.msra.mxu0 0
        %2061 = vmatprep.subr.bf16.mxu0 0
        %2062 = vmatpush1.bf16.xpose.msra.mxu0 0
        %2063 = vmatprep.subr.bf16.mxu0 0
        %2064 = vmatpush1.bf16.xpose.msra.mxu0 0
        %2065 = vmatprep.subr.bf16.mxu0 0
        %2066 = vmatpush1.bf16.xpose.msra.mxu0 0
        %2067 = vmatprep.subr.bf16.mxu0 0
        %2068 = vmatpush1.bf16.xpose.msra.mxu0 0
        %2069 = vmatprep.subr.bf16.mxu0 0
        %2070 = vmatpush1.bf16.xpose.msra.mxu0 0
        %2071 = vmatprep.subr.bf16.mxu0 0
        %2072 = vmatpush1.bf16.xpose.msra.mxu0 %v2013
        %2073 = vmatprep.subr.bf16.mxu0 0
        %2074 = vmatpush2.bf16.xpose.msra.mxu0 0
        %2075 = vmatprep.subr.bf16.mxu0 0
        %2076 = vmatpush2.bf16.xpose.msra.mxu0 0
        %2077 = vmatprep.subr.bf16.mxu0 0
        %2078 = vmatpush2.bf16.xpose.msra.mxu0 0
        %2079 = vmatprep.subr.bf16.mxu0 0
        %2080 = vmatpush2.bf16.xpose.msra.mxu0 0
        %2081 = vmatprep.subr.bf16.mxu0 0
        %2082 = vmatpush2.bf16.xpose.msra.mxu0 0
        %2083 = vmatprep.subr.bf16.mxu0 0
        %2084 = vmatpush2.bf16.xpose.msra.mxu0 0
        %2085 = vmatprep.subr.bf16.mxu0 0
        %2086 = vmatpush2.bf16.xpose.msra.mxu0 0
        %2087 = vmatprep.subr.bf16.mxu0 0
        %2088 = vmatpush2.bf16.xpose.msra.mxu0 0
        %2089 = vmatprep.mubr.bf16.mxu0 0
        %2090 = vmatmul.mubr.bf16.gmra.mxu0 %v2013
        %v2091 = vpop.f32.mrf.mxu0
        %v2092 = vadd.f32 0.0, %v2091
        %v2093 = vpop.f32.mrf.mxu0
        %v2094 = vpop.f32.mrf.mxu0
        %v2095 = vadd.f32 0.0, %v2094
        %v2096 = vpop.f32.mrf.mxu0
        %2097 = vdwg.mxu0
        %v2098 = vpack.c.bf16 %v2095, %v2092
        %v2099 = vmul.f32 %v1874, %v2049
        %v2100 = vmul.f32 %v1875, %v2051
        %v2101 = vmul.f32 %v1876, %v2053
        %v2102 = vmul.f32 %v1877, %v2055
        %v2104 = vsel %vm1265, %v2098, 0
        %2106 = vmatprep.subr.bf16.mxu0 0
        %2107 = vmatpush1.bf16.msra.mxu0 0
        %2108 = vmatprep.subr.bf16.mxu0 0
        %2109 = vmatpush1.bf16.msra.mxu0 0
        %2110 = vmatprep.subr.bf16.mxu0 0
        %2111 = vmatpush1.bf16.msra.mxu0 0
        %2112 = vmatprep.subr.bf16.mxu0 0
        %2113 = vmatpush1.bf16.msra.mxu0 0
        %2114 = vmatprep.subr.bf16.mxu0 0
        %2115 = vmatpush1.bf16.msra.mxu0 0
        %2116 = vmatprep.subr.bf16.mxu0 0
        %2117 = vmatpush1.bf16.msra.mxu0 0
        %2118 = vmatprep.subr.bf16.mxu0 0
        %2119 = vmatpush1.bf16.msra.mxu0 0
        %2120 = vmatprep.subr.bf16.mxu0 %v1879
        %2121 = vmatpush1.bf16.msra.mxu0 %v1878
        %2122 = vmatprep.subr.bf16.mxu0 0
        %2123 = vmatpush2.bf16.msra.mxu0 0
        %2124 = vmatprep.subr.bf16.mxu0 0
        %2125 = vmatpush2.bf16.msra.mxu0 0
        %2126 = vmatprep.subr.bf16.mxu0 0
        %2127 = vmatpush2.bf16.msra.mxu0 0
        %2128 = vmatprep.subr.bf16.mxu0 0
        %2129 = vmatpush2.bf16.msra.mxu0 0
        %2130 = vmatprep.subr.bf16.mxu0 0
        %2131 = vmatpush2.bf16.msra.mxu0 0
        %2132 = vmatprep.subr.bf16.mxu0 0
        %2133 = vmatpush2.bf16.msra.mxu0 0
        %2134 = vmatprep.subr.bf16.mxu0 0
        %2135 = vmatpush2.bf16.msra.mxu0 0
        %2136 = vmatprep.subr.bf16.mxu0 0
        %2137 = vmatpush2.bf16.msra.mxu0 0
        %2138 = vmatprep.mubr.bf16.mxu0 0
        %2139 = vmatmul.mubr.bf16.gmra.mxu0 %v2104
        %v2140 = vpop.f32.mrf.mxu0
        %v2141 = vadd.f32 1e-06, %v2140
        %v2142 = vpop.f32.mrf.mxu0
        %v2143 = vadd.f32 1e-06, %v2142
        %v2144 = vpop.f32.mrf.mxu0
        %v2145 = vadd.f32 1e-06, %v2144
        %v2146 = vpop.f32.mrf.mxu0
        %v2147 = vadd.f32 1e-06, %v2146
        %2148 = vdwg.mxu0
        %v2149 = vrcp.pop %v2141
        %v2150 = vrcp.pop %v2143
        %v2151 = vrcp.pop %v2145
        %v2152 = vrcp.pop %v2147
        %v2153 = vmul.f32 %v2099, %v2149
        %v2154 = vmul.f32 %v2100, %v2150
        %v2155 = vmul.f32 %v2101, %v2151
        %v2156 = vmul.f32 %v2102, %v2152
        %v2157 = vpack.c.bf16 %v2155, %v2153
        %v2158 = vpack.c.bf16 %v2156, %v2154
        %2159 = vmatprep.subr.bf16.mxu0 %v1111
        %2160 = vmatpush1.bf16.xpose.msra.mxu0 %v1110
        %2161 = vmatprep.subr.bf16.mxu0 %v1109
        %2162 = vmatpush1.bf16.xpose.msra.mxu0 %v1108
        %2163 = vmatprep.subr.bf16.mxu0 %v1107
        %2164 = vmatpush1.bf16.xpose.msra.mxu0 %v1106
        %2165 = vmatprep.subr.bf16.mxu0 %v1105
        %2166 = vmatpush1.bf16.xpose.msra.mxu0 %v1104
        %2167 = vmatprep.subr.bf16.mxu0 %v1103
        %2168 = vmatpush1.bf16.xpose.msra.mxu0 %v1102
        %2169 = vmatprep.subr.bf16.mxu0 %v1101
        %2170 = vmatpush1.bf16.xpose.msra.mxu0 %v1100
        %2171 = vmatprep.subr.bf16.mxu0 %v1099
        %2172 = vmatpush1.bf16.xpose.msra.mxu0 %v1098
        %2173 = vmatprep.subr.bf16.mxu0 %v1097
        %2174 = vmatpush1.bf16.xpose.msra.mxu0 %v1096
        %2175 = vmatprep.subr.bf16.mxu0 0
        %2176 = vmatpush2.bf16.xpose.msra.mxu0 0
        %2177 = vmatprep.subr.bf16.mxu0 0
        %2178 = vmatpush2.bf16.xpose.msra.mxu0 0
        %2179 = vmatprep.subr.bf16.mxu0 0
        %2180 = vmatpush2.bf16.xpose.msra.mxu0 0
        %2181 = vmatprep.subr.bf16.mxu0 0
        %2182 = vmatpush2.bf16.xpose.msra.mxu0 0
        %2183 = vmatprep.subr.bf16.mxu0 0
        %2184 = vmatpush2.bf16.xpose.msra.mxu0 0
        %2185 = vmatprep.subr.bf16.mxu0 0
        %2186 = vmatpush2.bf16.xpose.msra.mxu0 0
        %2187 = vmatprep.subr.bf16.mxu0 0
        %2188 = vmatpush2.bf16.xpose.msra.mxu0 0
        %2189 = vmatprep.subr.bf16.mxu0 0
        %2190 = vmatpush2.bf16.xpose.msra.mxu0 0
        %2191 = vmatprep.mubr.bf16.mxu0 %v2158
        %2192 = vmatmul.mubr.bf16.gmra.mxu0 %v2157
        %v2193 = vpop.f32.mrf.mxu0
        %v2194 = vadd.f32 0.0, %v2193
        %v2195 = vpop.f32.mrf.mxu0
        %v2196 = vpop.f32.mrf.mxu0
        %v2197 = vadd.f32 0.0, %v2196
        %v2198 = vpop.f32.mrf.mxu0
        %2199 = vdwg.mxu0
        %2200 = vmatprep.subr.bf16.mxu0 0
        %2201 = vmatpush1.bf16.xpose.msra.mxu0 0
        %2202 = vmatprep.subr.bf16.mxu0 0
        %2203 = vmatpush1.bf16.xpose.msra.mxu0 0
        %2204 = vmatprep.subr.bf16.mxu0 0
        %2205 = vmatpush1.bf16.xpose.msra.mxu0 0
        %2206 = vmatprep.subr.bf16.mxu0 0
        %2207 = vmatpush1.bf16.xpose.msra.mxu0 0
        %2208 = vmatprep.subr.bf16.mxu0 0
        %2209 = vmatpush1.bf16.xpose.msra.mxu0 0
        %2210 = vmatprep.subr.bf16.mxu0 0
        %2211 = vmatpush1.bf16.xpose.msra.mxu0 0
        %2212 = vmatprep.subr.bf16.mxu0 0
        %2213 = vmatpush1.bf16.xpose.msra.mxu0 0
        %2214 = vmatprep.subr.bf16.mxu0 %v2158
        %2215 = vmatpush1.bf16.xpose.msra.mxu0 %v2157
        %2216 = vmatprep.subr.bf16.mxu0 0
        %2217 = vmatpush2.bf16.xpose.msra.mxu0 0
        %2218 = vmatprep.subr.bf16.mxu0 0
        %2219 = vmatpush2.bf16.xpose.msra.mxu0 0
        %2220 = vmatprep.subr.bf16.mxu0 0
        %2221 = vmatpush2.bf16.xpose.msra.mxu0 0
        %2222 = vmatprep.subr.bf16.mxu0 0
        %2223 = vmatpush2.bf16.xpose.msra.mxu0 0
        %2224 = vmatprep.subr.bf16.mxu0 0
        %2225 = vmatpush2.bf16.xpose.msra.mxu0 0
        %2226 = vmatprep.subr.bf16.mxu0 0
        %2227 = vmatpush2.bf16.xpose.msra.mxu0 0
        %2228 = vmatprep.subr.bf16.mxu0 0
        %2229 = vmatpush2.bf16.xpose.msra.mxu0 0
        %2230 = vmatprep.subr.bf16.mxu0 0
        %2231 = vmatpush2.bf16.xpose.msra.mxu0 0
        %2232 = vmatprep.mubr.bf16.mxu0 %v2158
        %2233 = vmatmul.mubr.bf16.gmra.mxu0 %v2157
        %v2234 = vpop.f32.mrf.mxu0
        %v2235 = vadd.f32 0.0, %v2234
        %v2236 = vpop.f32.mrf.mxu0
        %v2237 = vpop.f32.mrf.mxu0
        %v2238 = vadd.f32 0.0, %v2237
        %v2239 = vpop.f32.mrf.mxu0
        %2240 = vdwg.mxu0
        %v2241 = vpack.c.bf16 %v2238, %v2235
        %v2242 = vmul.f32 %v2011, %v2194
        %v2243 = vmul.f32 %v2012, %v2197
        %v2245 = vsel %vm1265, %v2241, 0
        %2247 = vmatprep.subr.bf16.mxu0 0
        %2248 = vmatpush1.bf16.msra.mxu0 0
        %2249 = vmatprep.subr.bf16.mxu0 0
        %2250 = vmatpush1.bf16.msra.mxu0 0
        %2251 = vmatprep.subr.bf16.mxu0 0
        %2252 = vmatpush1.bf16.msra.mxu0 0
        %2253 = vmatprep.subr.bf16.mxu0 0
        %2254 = vmatpush1.bf16.msra.mxu0 0
        %2255 = vmatprep.subr.bf16.mxu0 0
        %2256 = vmatpush1.bf16.msra.mxu0 0
        %2257 = vmatprep.subr.bf16.mxu0 0
        %2258 = vmatpush1.bf16.msra.mxu0 0
        %2259 = vmatprep.subr.bf16.mxu0 0
        %2260 = vmatpush1.bf16.msra.mxu0 0
        %2261 = vmatprep.subr.bf16.mxu0 0
        %2262 = vmatpush1.bf16.msra.mxu0 %v2013
        %2263 = vmatprep.subr.bf16.mxu0 0
        %2264 = vmatpush2.bf16.msra.mxu0 0
        %2265 = vmatprep.subr.bf16.mxu0 0
        %2266 = vmatpush2.bf16.msra.mxu0 0
        %2267 = vmatprep.subr.bf16.mxu0 0
        %2268 = vmatpush2.bf16.msra.mxu0 0
        %2269 = vmatprep.subr.bf16.mxu0 0
        %2270 = vmatpush2.bf16.msra.mxu0 0
        %2271 = vmatprep.subr.bf16.mxu0 0
        %2272 = vmatpush2.bf16.msra.mxu0 0
        %2273 = vmatprep.subr.bf16.mxu0 0
        %2274 = vmatpush2.bf16.msra.mxu0 0
        %2275 = vmatprep.subr.bf16.mxu0 0
        %2276 = vmatpush2.bf16.msra.mxu0 0
        %2277 = vmatprep.subr.bf16.mxu0 0
        %2278 = vmatpush2.bf16.msra.mxu0 0
        %2279 = vmatprep.mubr.bf16.mxu0 0
        %2280 = vmatmul.mubr.bf16.gmra.mxu0 %v2245
        %v2281 = vpop.f32.mrf.mxu0
        %v2282 = vadd.f32 1e-06, %v2281
        %v2283 = vpop.f32.mrf.mxu0
        %v2284 = vpop.f32.mrf.mxu0
        %v2285 = vadd.f32 1e-06, %v2284
        %v2286 = vpop.f32.mrf.mxu0
        %2287 = vdwg.mxu0
        %v2288 = vrcp.pop %v2282
        %v2289 = vrcp.pop %v2285
        %v2290 = vmul.f32 %v2242, %v2288
        %v2291 = vmul.f32 %v2243, %v2289
        %v2292 = vpack.c.bf16 %v2291, %v2290
        %2293 = vmatprep.subr.bf16.mxu0 %v1111
        %2294 = vmatpush1.bf16.msra.mxu0 %v1110
        %2295 = vmatprep.subr.bf16.mxu0 %v1109
        %2296 = vmatpush1.bf16.msra.mxu0 %v1108
        %2297 = vmatprep.subr.bf16.mxu0 %v1107
        %2298 = vmatpush1.bf16.msra.mxu0 %v1106
        %2299 = vmatprep.subr.bf16.mxu0 %v1105
        %2300 = vmatpush1.bf16.msra.mxu0 %v1104
        %2301 = vmatprep.subr.bf16.mxu0 %v1103
        %2302 = vmatpush1.bf16.msra.mxu0 %v1102
        %2303 = vmatprep.subr.bf16.mxu0 %v1101
        %2304 = vmatpush1.bf16.msra.mxu0 %v1100
        %2305 = vmatprep.subr.bf16.mxu0 %v1099
        %2306 = vmatpush1.bf16.msra.mxu0 %v1098
        %2307 = vmatprep.subr.bf16.mxu0 %v1097
        %2308 = vmatpush1.bf16.msra.mxu0 %v1096
        %2309 = vmatprep.subr.bf16.mxu0 0
        %2310 = vmatpush2.bf16.msra.mxu0 0
        %2311 = vmatprep.subr.bf16.mxu0 0
        %2312 = vmatpush2.bf16.msra.mxu0 0
        %2313 = vmatprep.subr.bf16.mxu0 0
        %2314 = vmatpush2.bf16.msra.mxu0 0
        %2315 = vmatprep.subr.bf16.mxu0 0
        %2316 = vmatpush2.bf16.msra.mxu0 0
        %2317 = vmatprep.subr.bf16.mxu0 0
        %2318 = vmatpush2.bf16.msra.mxu0 0
        %2319 = vmatprep.subr.bf16.mxu0 0
        %2320 = vmatpush2.bf16.msra.mxu0 0
        %2321 = vmatprep.subr.bf16.mxu0 0
        %2322 = vmatpush2.bf16.msra.mxu0 0
        %2323 = vmatprep.subr.bf16.mxu0 0
        %2324 = vmatpush2.bf16.msra.mxu0 0
        %2325 = vmatprep.mubr.bf16.mxu0 0
        %2326 = vmatmul.mubr.bf16.gmra.mxu0 %v2292
        %v2327 = vpop.f32.mrf.mxu0
        %v2328 = vadd.f32 0.0, %v2327
        %v2329 = vpop.f32.mrf.mxu0
        %v2330 = vadd.f32 0.0, %v2329
        %v2331 = vpop.f32.mrf.mxu0
        %v2332 = vadd.f32 0.0, %v2331
        %v2333 = vpop.f32.mrf.mxu0
        %v2334 = vadd.f32 0.0, %v2333
        %2335 = vdwg.mxu0
        %2336 = vmatprep.subr.bf16.mxu0 0
        %2337 = vmatpush1.bf16.xpose.msra.mxu0 0
        %2338 = vmatprep.subr.bf16.mxu0 0
        %2339 = vmatpush1.bf16.xpose.msra.mxu0 0
        %2340 = vmatprep.subr.bf16.mxu0 0
        %2341 = vmatpush1.bf16.xpose.msra.mxu0 0
        %2342 = vmatprep.subr.bf16.mxu0 0
        %2343 = vmatpush1.bf16.xpose.msra.mxu0 0
        %2344 = vmatprep.subr.bf16.mxu0 0
        %2345 = vmatpush1.bf16.xpose.msra.mxu0 0
        %2346 = vmatprep.subr.bf16.mxu0 0
        %2347 = vmatpush1.bf16.xpose.msra.mxu0 0
        %2348 = vmatprep.subr.bf16.mxu0 0
        %2349 = vmatpush1.bf16.xpose.msra.mxu0 0
        %2350 = vmatprep.subr.bf16.mxu0 0
        %2351 = vmatpush1.bf16.xpose.msra.mxu0 %v2292
        %2352 = vmatprep.subr.bf16.mxu0 0
        %2353 = vmatpush2.bf16.xpose.msra.mxu0 0
        %2354 = vmatprep.subr.bf16.mxu0 0
        %2355 = vmatpush2.bf16.xpose.msra.mxu0 0
        %2356 = vmatprep.subr.bf16.mxu0 0
        %2357 = vmatpush2.bf16.xpose.msra.mxu0 0
        %2358 = vmatprep.subr.bf16.mxu0 0
        %2359 = vmatpush2.bf16.xpose.msra.mxu0 0
        %2360 = vmatprep.subr.bf16.mxu0 0
        %2361 = vmatpush2.bf16.xpose.msra.mxu0 0
        %2362 = vmatprep.subr.bf16.mxu0 0
        %2363 = vmatpush2.bf16.xpose.msra.mxu0 0
        %2364 = vmatprep.subr.bf16.mxu0 0
        %2365 = vmatpush2.bf16.xpose.msra.mxu0 0
        %2366 = vmatprep.subr.bf16.mxu0 0
        %2367 = vmatpush2.bf16.xpose.msra.mxu0 0
        %2368 = vmatprep.mubr.bf16.mxu0 0
        %2369 = vmatmul.mubr.bf16.gmra.mxu0 %v2292
        %v2370 = vpop.f32.mrf.mxu0
        %v2371 = vadd.f32 0.0, %v2370
        %v2372 = vpop.f32.mrf.mxu0
        %v2373 = vpop.f32.mrf.mxu0
        %v2374 = vadd.f32 0.0, %v2373
        %v2375 = vpop.f32.mrf.mxu0
        %2376 = vdwg.mxu0
        %v2377 = vpack.c.bf16 %v2374, %v2371
        %v2378 = vmul.f32 %v2153, %v2328
        %v2379 = vmul.f32 %v2154, %v2330
        %v2380 = vmul.f32 %v2155, %v2332
        %v2381 = vmul.f32 %v2156, %v2334
        %v2383 = vsel %vm1265, %v2377, 0
        %2385 = vmatprep.subr.bf16.mxu0 0
        %2386 = vmatpush1.bf16.msra.mxu0 0
        %2387 = vmatprep.subr.bf16.mxu0 0
        %2388 = vmatpush1.bf16.msra.mxu0 0
        %2389 = vmatprep.subr.bf16.mxu0 0
        %2390 = vmatpush1.bf16.msra.mxu0 0
        %2391 = vmatprep.subr.bf16.mxu0 0
        %2392 = vmatpush1.bf16.msra.mxu0 0
        %2393 = vmatprep.subr.bf16.mxu0 0
        %2394 = vmatpush1.bf16.msra.mxu0 0
        %2395 = vmatprep.subr.bf16.mxu0 0
        %2396 = vmatpush1.bf16.msra.mxu0 0
        %2397 = vmatprep.subr.bf16.mxu0 0
        %2398 = vmatpush1.bf16.msra.mxu0 0
        %2399 = vmatprep.subr.bf16.mxu0 %v2158
        %2400 = vmatpush1.bf16.msra.mxu0 %v2157
        %2401 = vmatprep.subr.bf16.mxu0 0
        %2402 = vmatpush2.bf16.msra.mxu0 0
        %2403 = vmatprep.subr.bf16.mxu0 0
        %2404 = vmatpush2.bf16.msra.mxu0 0
        %2405 = vmatprep.subr.bf16.mxu0 0
        %2406 = vmatpush2.bf16.msra.mxu0 0
        %2407 = vmatprep.subr.bf16.mxu0 0
        %2408 = vmatpush2.bf16.msra.mxu0 0
        %2409 = vmatprep.subr.bf16.mxu0 0
        %2410 = vmatpush2.bf16.msra.mxu0 0
        %2411 = vmatprep.subr.bf16.mxu0 0
        %2412 = vmatpush2.bf16.msra.mxu0 0
        %2413 = vmatprep.subr.bf16.mxu0 0
        %2414 = vmatpush2.bf16.msra.mxu0 0
        %2415 = vmatprep.subr.bf16.mxu0 0
        %2416 = vmatpush2.bf16.msra.mxu0 0
        %2417 = vmatprep.mubr.bf16.mxu0 0
        %2418 = vmatmul.mubr.bf16.gmra.mxu0 %v2383
        %v2419 = vpop.f32.mrf.mxu0
        %v2420 = vadd.f32 1e-06, %v2419
        %v2421 = vpop.f32.mrf.mxu0
        %v2422 = vadd.f32 1e-06, %v2421
        %v2423 = vpop.f32.mrf.mxu0
        %v2424 = vadd.f32 1e-06, %v2423
        %v2425 = vpop.f32.mrf.mxu0
        %v2426 = vadd.f32 1e-06, %v2425
        %2427 = vdwg.mxu0
        %v2428 = vrcp.pop %v2420
        %v2429 = vrcp.pop %v2422
        %v2430 = vrcp.pop %v2424
        %v2431 = vrcp.pop %v2426
        %v2432 = vmul.f32 %v2378, %v2428
        %v2433 = vmul.f32 %v2379, %v2429
        %v2434 = vmul.f32 %v2380, %v2430
        %v2435 = vmul.f32 %v2381, %v2431
        %v2436 = vpack.c.bf16 %v2434, %v2432
        %v2437 = vpack.c.bf16 %v2435, %v2433
        %2438 = vmatprep.subr.bf16.mxu0 %v1111
        %2439 = vmatpush1.bf16.xpose.msra.mxu0 %v1110
        %2440 = vmatprep.subr.bf16.mxu0 %v1109
        %2441 = vmatpush1.bf16.xpose.msra.mxu0 %v1108
        %2442 = vmatprep.subr.bf16.mxu0 %v1107
        %2443 = vmatpush1.bf16.xpose.msra.mxu0 %v1106
        %2444 = vmatprep.subr.bf16.mxu0 %v1105
        %2445 = vmatpush1.bf16.xpose.msra.mxu0 %v1104
        %2446 = vmatprep.subr.bf16.mxu0 %v1103
        %2447 = vmatpush1.bf16.xpose.msra.mxu0 %v1102
        %2448 = vmatprep.subr.bf16.mxu0 %v1101
        %2449 = vmatpush1.bf16.xpose.msra.mxu0 %v1100
        %2450 = vmatprep.subr.bf16.mxu0 %v1099
        %2451 = vmatpush1.bf16.xpose.msra.mxu0 %v1098
        %2452 = vmatprep.subr.bf16.mxu0 %v1097
        %2453 = vmatpush1.bf16.xpose.msra.mxu0 %v1096
        %2454 = vmatprep.subr.bf16.mxu0 0
        %2455 = vmatpush2.bf16.xpose.msra.mxu0 0
        %2456 = vmatprep.subr.bf16.mxu0 0
        %2457 = vmatpush2.bf16.xpose.msra.mxu0 0
        %2458 = vmatprep.subr.bf16.mxu0 0
        %2459 = vmatpush2.bf16.xpose.msra.mxu0 0
        %2460 = vmatprep.subr.bf16.mxu0 0
        %2461 = vmatpush2.bf16.xpose.msra.mxu0 0
        %2462 = vmatprep.subr.bf16.mxu0 0
        %2463 = vmatpush2.bf16.xpose.msra.mxu0 0
        %2464 = vmatprep.subr.bf16.mxu0 0
        %2465 = vmatpush2.bf16.xpose.msra.mxu0 0
        %2466 = vmatprep.subr.bf16.mxu0 0
        %2467 = vmatpush2.bf16.xpose.msra.mxu0 0
        %2468 = vmatprep.subr.bf16.mxu0 0
        %2469 = vmatpush2.bf16.xpose.msra.mxu0 0
        %2470 = vmatprep.mubr.bf16.mxu0 %v2437
        %2471 = vmatmul.mubr.bf16.gmra.mxu0 %v2436
        %v2472 = vpop.f32.mrf.mxu0
        %v2473 = vadd.f32 0.0, %v2472
        %v2474 = vpop.f32.mrf.mxu0
        %v2475 = vpop.f32.mrf.mxu0
        %v2476 = vadd.f32 0.0, %v2475
        %v2477 = vpop.f32.mrf.mxu0
        %2478 = vdwg.mxu0
        %2479 = vmatprep.subr.bf16.mxu0 0
        %2480 = vmatpush1.bf16.xpose.msra.mxu0 0
        %2481 = vmatprep.subr.bf16.mxu0 0
        %2482 = vmatpush1.bf16.xpose.msra.mxu0 0
        %2483 = vmatprep.subr.bf16.mxu0 0
        %2484 = vmatpush1.bf16.xpose.msra.mxu0 0
        %2485 = vmatprep.subr.bf16.mxu0 0
        %2486 = vmatpush1.bf16.xpose.msra.mxu0 0
        %2487 = vmatprep.subr.bf16.mxu0 0
        %2488 = vmatpush1.bf16.xpose.msra.mxu0 0
        %2489 = vmatprep.subr.bf16.mxu0 0
        %2490 = vmatpush1.bf16.xpose.msra.mxu0 0
        %2491 = vmatprep.subr.bf16.mxu0 0
        %2492 = vmatpush1.bf16.xpose.msra.mxu0 0
        %2493 = vmatprep.subr.bf16.mxu0 %v2437
        %2494 = vmatpush1.bf16.xpose.msra.mxu0 %v2436
        %2495 = vmatprep.subr.bf16.mxu0 0
        %2496 = vmatpush2.bf16.xpose.msra.mxu0 0
        %2497 = vmatprep.subr.bf16.mxu0 0
        %2498 = vmatpush2.bf16.xpose.msra.mxu0 0
        %2499 = vmatprep.subr.bf16.mxu0 0
        %2500 = vmatpush2.bf16.xpose.msra.mxu0 0
        %2501 = vmatprep.subr.bf16.mxu0 0
        %2502 = vmatpush2.bf16.xpose.msra.mxu0 0
        %2503 = vmatprep.subr.bf16.mxu0 0
        %2504 = vmatpush2.bf16.xpose.msra.mxu0 0
        %2505 = vmatprep.subr.bf16.mxu0 0
        %2506 = vmatpush2.bf16.xpose.msra.mxu0 0
        %2507 = vmatprep.subr.bf16.mxu0 0
        %2508 = vmatpush2.bf16.xpose.msra.mxu0 0
        %2509 = vmatprep.subr.bf16.mxu0 0
        %2510 = vmatpush2.bf16.xpose.msra.mxu0 0
        %2511 = vmatprep.mubr.bf16.mxu0 %v2437
        %2512 = vmatmul.mubr.bf16.gmra.mxu0 %v2436
        %v2513 = vpop.f32.mrf.mxu0
        %v2514 = vadd.f32 0.0, %v2513
        %v2515 = vpop.f32.mrf.mxu0
        %v2516 = vpop.f32.mrf.mxu0
        %v2517 = vadd.f32 0.0, %v2516
        %v2518 = vpop.f32.mrf.mxu0
        %2519 = vdwg.mxu0
        %v2520 = vpack.c.bf16 %v2517, %v2514
        %v2521 = vmul.f32 %v2290, %v2473
        %v2522 = vmul.f32 %v2291, %v2476
        %v2524 = vsel %vm1265, %v2520, 0
        %2526 = vmatprep.subr.bf16.mxu0 0
        %2527 = vmatpush1.bf16.msra.mxu0 0
        %2528 = vmatprep.subr.bf16.mxu0 0
        %2529 = vmatpush1.bf16.msra.mxu0 0
        %2530 = vmatprep.subr.bf16.mxu0 0
        %2531 = vmatpush1.bf16.msra.mxu0 0
        %2532 = vmatprep.subr.bf16.mxu0 0
        %2533 = vmatpush1.bf16.msra.mxu0 0
        %2534 = vmatprep.subr.bf16.mxu0 0
        %2535 = vmatpush1.bf16.msra.mxu0 0
        %2536 = vmatprep.subr.bf16.mxu0 0
        %2537 = vmatpush1.bf16.msra.mxu0 0
        %2538 = vmatprep.subr.bf16.mxu0 0
        %2539 = vmatpush1.bf16.msra.mxu0 0
        %2540 = vmatprep.subr.bf16.mxu0 0
        %2541 = vmatpush1.bf16.msra.mxu0 %v2292
        %2542 = vmatprep.subr.bf16.mxu0 0
        %2543 = vmatpush2.bf16.msra.mxu0 0
        %2544 = vmatprep.subr.bf16.mxu0 0
        %2545 = vmatpush2.bf16.msra.mxu0 0
        %2546 = vmatprep.subr.bf16.mxu0 0
        %2547 = vmatpush2.bf16.msra.mxu0 0
        %2548 = vmatprep.subr.bf16.mxu0 0
        %2549 = vmatpush2.bf16.msra.mxu0 0
        %2550 = vmatprep.subr.bf16.mxu0 0
        %2551 = vmatpush2.bf16.msra.mxu0 0
        %2552 = vmatprep.subr.bf16.mxu0 0
        %2553 = vmatpush2.bf16.msra.mxu0 0
        %2554 = vmatprep.subr.bf16.mxu0 0
        %2555 = vmatpush2.bf16.msra.mxu0 0
        %2556 = vmatprep.subr.bf16.mxu0 0
        %2557 = vmatpush2.bf16.msra.mxu0 0
        %2558 = vmatprep.mubr.bf16.mxu0 0
        %2559 = vmatmul.mubr.bf16.gmra.mxu0 %v2524
        %v2560 = vpop.f32.mrf.mxu0
        %v2561 = vadd.f32 1e-06, %v2560
        %v2562 = vpop.f32.mrf.mxu0
        %v2563 = vpop.f32.mrf.mxu0
        %v2564 = vadd.f32 1e-06, %v2563
        %v2565 = vpop.f32.mrf.mxu0
        %2566 = vdwg.mxu0
        %v2567 = vrcp.pop %v2561
        %v2568 = vrcp.pop %v2564
        %v2569 = vmul.f32 %v2521, %v2567
        %v2570 = vmul.f32 %v2522, %v2568
        %v2571 = vpack.c.bf16 %v2570, %v2569
        %2572 = vmatprep.subr.bf16.mxu0 %v1111
        %2573 = vmatpush1.bf16.msra.mxu0 %v1110
        %2574 = vmatprep.subr.bf16.mxu0 %v1109
        %2575 = vmatpush1.bf16.msra.mxu0 %v1108
        %2576 = vmatprep.subr.bf16.mxu0 %v1107
        %2577 = vmatpush1.bf16.msra.mxu0 %v1106
        %2578 = vmatprep.subr.bf16.mxu0 %v1105
        %2579 = vmatpush1.bf16.msra.mxu0 %v1104
        %2580 = vmatprep.subr.bf16.mxu0 %v1103
        %2581 = vmatpush1.bf16.msra.mxu0 %v1102
        %2582 = vmatprep.subr.bf16.mxu0 %v1101
        %2583 = vmatpush1.bf16.msra.mxu0 %v1100
        %2584 = vmatprep.subr.bf16.mxu0 %v1099
        %2585 = vmatpush1.bf16.msra.mxu0 %v1098
        %2586 = vmatprep.subr.bf16.mxu0 %v1097
        %2587 = vmatpush1.bf16.msra.mxu0 %v1096
        %2588 = vmatprep.subr.bf16.mxu0 0
        %2589 = vmatpush2.bf16.msra.mxu0 0
        %2590 = vmatprep.subr.bf16.mxu0 0
        %2591 = vmatpush2.bf16.msra.mxu0 0
        %2592 = vmatprep.subr.bf16.mxu0 0
        %2593 = vmatpush2.bf16.msra.mxu0 0
        %2594 = vmatprep.subr.bf16.mxu0 0
        %2595 = vmatpush2.bf16.msra.mxu0 0
        %2596 = vmatprep.subr.bf16.mxu0 0
        %2597 = vmatpush2.bf16.msra.mxu0 0
        %2598 = vmatprep.subr.bf16.mxu0 0
        %2599 = vmatpush2.bf16.msra.mxu0 0
        %2600 = vmatprep.subr.bf16.mxu0 0
        %2601 = vmatpush2.bf16.msra.mxu0 0
        %2602 = vmatprep.subr.bf16.mxu0 0
        %2603 = vmatpush2.bf16.msra.mxu0 0
        %2604 = vmatprep.mubr.bf16.mxu0 0
        %2605 = vmatmul.mubr.bf16.gmra.mxu0 %v2571
        %v2606 = vpop.f32.mrf.mxu0
        %v2607 = vadd.f32 0.0, %v2606
        %v2608 = vpop.f32.mrf.mxu0
        %v2609 = vadd.f32 0.0, %v2608
        %v2610 = vpop.f32.mrf.mxu0
        %v2611 = vadd.f32 0.0, %v2610
        %v2612 = vpop.f32.mrf.mxu0
        %v2613 = vadd.f32 0.0, %v2612
        %2614 = vdwg.mxu0
        %2615 = vmatprep.subr.bf16.mxu0 0
        %2616 = vmatpush1.bf16.xpose.msra.mxu0 0
        %2617 = vmatprep.subr.bf16.mxu0 0
        %2618 = vmatpush1.bf16.xpose.msra.mxu0 0
        %2619 = vmatprep.subr.bf16.mxu0 0
        %2620 = vmatpush1.bf16.xpose.msra.mxu0 0
        %2621 = vmatprep.subr.bf16.mxu0 0
        %2622 = vmatpush1.bf16.xpose.msra.mxu0 0
        %2623 = vmatprep.subr.bf16.mxu0 0
        %2624 = vmatpush1.bf16.xpose.msra.mxu0 0
        %2625 = vmatprep.subr.bf16.mxu0 0
        %2626 = vmatpush1.bf16.xpose.msra.mxu0 0
        %2627 = vmatprep.subr.bf16.mxu0 0
        %2628 = vmatpush1.bf16.xpose.msra.mxu0 0
        %2629 = vmatprep.subr.bf16.mxu0 0
        %2630 = vmatpush1.bf16.xpose.msra.mxu0 %v2571
        %2631 = vmatprep.subr.bf16.mxu0 0
        %2632 = vmatpush2.bf16.xpose.msra.mxu0 0
        %2633 = vmatprep.subr.bf16.mxu0 0
        %2634 = vmatpush2.bf16.xpose.msra.mxu0 0
        %2635 = vmatprep.subr.bf16.mxu0 0
        %2636 = vmatpush2.bf16.xpose.msra.mxu0 0
        %2637 = vmatprep.subr.bf16.mxu0 0
        %2638 = vmatpush2.bf16.xpose.msra.mxu0 0
        %2639 = vmatprep.subr.bf16.mxu0 0
        %2640 = vmatpush2.bf16.xpose.msra.mxu0 0
        %2641 = vmatprep.subr.bf16.mxu0 0
        %2642 = vmatpush2.bf16.xpose.msra.mxu0 0
        %2643 = vmatprep.subr.bf16.mxu0 0
        %2644 = vmatpush2.bf16.xpose.msra.mxu0 0
        %2645 = vmatprep.subr.bf16.mxu0 0
        %2646 = vmatpush2.bf16.xpose.msra.mxu0 0
        %2647 = vmatprep.mubr.bf16.mxu0 0
        %2648 = vmatmul.mubr.bf16.gmra.mxu0 %v2571
        %v2649 = vpop.f32.mrf.mxu0
        %v2650 = vadd.f32 0.0, %v2649
        %v2651 = vpop.f32.mrf.mxu0
        %v2652 = vpop.f32.mrf.mxu0
        %v2653 = vadd.f32 0.0, %v2652
        %v2654 = vpop.f32.mrf.mxu0
        %2655 = vdwg.mxu0
        %v2656 = vpack.c.bf16 %v2653, %v2650
        %v2657 = vmul.f32 %v2432, %v2607
        %v2658 = vmul.f32 %v2433, %v2609
        %v2659 = vmul.f32 %v2434, %v2611
        %v2660 = vmul.f32 %v2435, %v2613
        %v2662 = vsel %vm1265, %v2656, 0
        %2664 = vmatprep.subr.bf16.mxu0 0
        %2665 = vmatpush1.bf16.msra.mxu0 0
        %2666 = vmatprep.subr.bf16.mxu0 0
        %2667 = vmatpush1.bf16.msra.mxu0 0
        %2668 = vmatprep.subr.bf16.mxu0 0
        %2669 = vmatpush1.bf16.msra.mxu0 0
        %2670 = vmatprep.subr.bf16.mxu0 0
        %2671 = vmatpush1.bf16.msra.mxu0 0
        %2672 = vmatprep.subr.bf16.mxu0 0
        %2673 = vmatpush1.bf16.msra.mxu0 0
        %2674 = vmatprep.subr.bf16.mxu0 0
        %2675 = vmatpush1.bf16.msra.mxu0 0
        %2676 = vmatprep.subr.bf16.mxu0 0
        %2677 = vmatpush1.bf16.msra.mxu0 0
        %2678 = vmatprep.subr.bf16.mxu0 %v2437
        %2679 = vmatpush1.bf16.msra.mxu0 %v2436
        %2680 = vmatprep.subr.bf16.mxu0 0
        %2681 = vmatpush2.bf16.msra.mxu0 0
        %2682 = vmatprep.subr.bf16.mxu0 0
        %2683 = vmatpush2.bf16.msra.mxu0 0
        %2684 = vmatprep.subr.bf16.mxu0 0
        %2685 = vmatpush2.bf16.msra.mxu0 0
        %2686 = vmatprep.subr.bf16.mxu0 0
        %2687 = vmatpush2.bf16.msra.mxu0 0
        %2688 = vmatprep.subr.bf16.mxu0 0
        %2689 = vmatpush2.bf16.msra.mxu0 0
        %2690 = vmatprep.subr.bf16.mxu0 0
        %2691 = vmatpush2.bf16.msra.mxu0 0
        %2692 = vmatprep.subr.bf16.mxu0 0
        %2693 = vmatpush2.bf16.msra.mxu0 0
        %2694 = vmatprep.subr.bf16.mxu0 0
        %2695 = vmatpush2.bf16.msra.mxu0 0
        %2696 = vmatprep.mubr.bf16.mxu0 0
        %2697 = vmatmul.mubr.bf16.gmra.mxu0 %v2662
        %v2698 = vpop.f32.mrf.mxu0
        %v2699 = vadd.f32 1e-06, %v2698
        %v2700 = vpop.f32.mrf.mxu0
        %v2701 = vadd.f32 1e-06, %v2700
        %v2702 = vpop.f32.mrf.mxu0
        %v2703 = vadd.f32 1e-06, %v2702
        %v2704 = vpop.f32.mrf.mxu0
        %v2705 = vadd.f32 1e-06, %v2704
        %2706 = vdwg.mxu0
        %v2707 = vrcp.pop %v2699
        %v2708 = vrcp.pop %v2701
        %v2709 = vrcp.pop %v2703
        %v2710 = vrcp.pop %v2705
        %v2711 = vmul.f32 %v2657, %v2707
        %v2712 = vmul.f32 %v2658, %v2708
        %v2713 = vmul.f32 %v2659, %v2709
        %v2714 = vmul.f32 %v2660, %v2710
        %v2715 = vpack.c.bf16 %v2713, %v2711
        %v2716 = vpack.c.bf16 %v2714, %v2712
        %2717 = vmatprep.subr.bf16.mxu0 %v1111
        %2718 = vmatpush1.bf16.xpose.msra.mxu0 %v1110
        %2719 = vmatprep.subr.bf16.mxu0 %v1109
        %2720 = vmatpush1.bf16.xpose.msra.mxu0 %v1108
        %2721 = vmatprep.subr.bf16.mxu0 %v1107
        %2722 = vmatpush1.bf16.xpose.msra.mxu0 %v1106
        %2723 = vmatprep.subr.bf16.mxu0 %v1105
        %2724 = vmatpush1.bf16.xpose.msra.mxu0 %v1104
        %2725 = vmatprep.subr.bf16.mxu0 %v1103
        %2726 = vmatpush1.bf16.xpose.msra.mxu0 %v1102
        %2727 = vmatprep.subr.bf16.mxu0 %v1101
        %2728 = vmatpush1.bf16.xpose.msra.mxu0 %v1100
        %2729 = vmatprep.subr.bf16.mxu0 %v1099
        %2730 = vmatpush1.bf16.xpose.msra.mxu0 %v1098
        %2731 = vmatprep.subr.bf16.mxu0 %v1097
        %2732 = vmatpush1.bf16.xpose.msra.mxu0 %v1096
        %2733 = vmatprep.subr.bf16.mxu0 0
        %2734 = vmatpush2.bf16.xpose.msra.mxu0 0
        %2735 = vmatprep.subr.bf16.mxu0 0
        %2736 = vmatpush2.bf16.xpose.msra.mxu0 0
        %2737 = vmatprep.subr.bf16.mxu0 0
        %2738 = vmatpush2.bf16.xpose.msra.mxu0 0
        %2739 = vmatprep.subr.bf16.mxu0 0
        %2740 = vmatpush2.bf16.xpose.msra.mxu0 0
        %2741 = vmatprep.subr.bf16.mxu0 0
        %2742 = vmatpush2.bf16.xpose.msra.mxu0 0
        %2743 = vmatprep.subr.bf16.mxu0 0
        %2744 = vmatpush2.bf16.xpose.msra.mxu0 0
        %2745 = vmatprep.subr.bf16.mxu0 0
        %2746 = vmatpush2.bf16.xpose.msra.mxu0 0
        %2747 = vmatprep.subr.bf16.mxu0 0
        %2748 = vmatpush2.bf16.xpose.msra.mxu0 0
        %2749 = vmatprep.mubr.bf16.mxu0 %v2716
        %2750 = vmatmul.mubr.bf16.gmra.mxu0 %v2715
        %v2751 = vpop.f32.mrf.mxu0
        %v2752 = vadd.f32 0.0, %v2751
        %v2753 = vpop.f32.mrf.mxu0
        %v2754 = vpop.f32.mrf.mxu0
        %v2755 = vadd.f32 0.0, %v2754
        %v2756 = vpop.f32.mrf.mxu0
        %2757 = vdwg.mxu0
        %2758 = vmatprep.subr.bf16.mxu0 0
        %2759 = vmatpush1.bf16.xpose.msra.mxu0 0
        %2760 = vmatprep.subr.bf16.mxu0 0
        %2761 = vmatpush1.bf16.xpose.msra.mxu0 0
        %2762 = vmatprep.subr.bf16.mxu0 0
        %2763 = vmatpush1.bf16.xpose.msra.mxu0 0
        %2764 = vmatprep.subr.bf16.mxu0 0
        %2765 = vmatpush1.bf16.xpose.msra.mxu0 0
        %2766 = vmatprep.subr.bf16.mxu0 0
        %2767 = vmatpush1.bf16.xpose.msra.mxu0 0
        %2768 = vmatprep.subr.bf16.mxu0 0
        %2769 = vmatpush1.bf16.xpose.msra.mxu0 0
        %2770 = vmatprep.subr.bf16.mxu0 0
        %2771 = vmatpush1.bf16.xpose.msra.mxu0 0
        %2772 = vmatprep.subr.bf16.mxu0 %v2716
        %2773 = vmatpush1.bf16.xpose.msra.mxu0 %v2715
        %2774 = vmatprep.subr.bf16.mxu0 0
        %2775 = vmatpush2.bf16.xpose.msra.mxu0 0
        %2776 = vmatprep.subr.bf16.mxu0 0
        %2777 = vmatpush2.bf16.xpose.msra.mxu0 0
        %2778 = vmatprep.subr.bf16.mxu0 0
        %2779 = vmatpush2.bf16.xpose.msra.mxu0 0
        %2780 = vmatprep.subr.bf16.mxu0 0
        %2781 = vmatpush2.bf16.xpose.msra.mxu0 0
        %2782 = vmatprep.subr.bf16.mxu0 0
        %2783 = vmatpush2.bf16.xpose.msra.mxu0 0
        %2784 = vmatprep.subr.bf16.mxu0 0
        %2785 = vmatpush2.bf16.xpose.msra.mxu0 0
        %2786 = vmatprep.subr.bf16.mxu0 0
        %2787 = vmatpush2.bf16.xpose.msra.mxu0 0
        %2788 = vmatprep.subr.bf16.mxu0 0
        %2789 = vmatpush2.bf16.xpose.msra.mxu0 0
        %2790 = vmatprep.mubr.bf16.mxu0 %v2716
        %2791 = vmatmul.mubr.bf16.gmra.mxu0 %v2715
        %v2792 = vpop.f32.mrf.mxu0
        %v2793 = vadd.f32 0.0, %v2792
        %v2794 = vpop.f32.mrf.mxu0
        %v2795 = vpop.f32.mrf.mxu0
        %v2796 = vadd.f32 0.0, %v2795
        %v2797 = vpop.f32.mrf.mxu0
        %2798 = vdwg.mxu0
        %v2799 = vpack.c.bf16 %v2796, %v2793
        %v2800 = vmul.f32 %v2569, %v2752
        %v2801 = vmul.f32 %v2570, %v2755
        %v2803 = vsel %vm1265, %v2799, 0
        %2805 = vmatprep.subr.bf16.mxu0 0
        %2806 = vmatpush1.bf16.msra.mxu0 0
        %2807 = vmatprep.subr.bf16.mxu0 0
        %2808 = vmatpush1.bf16.msra.mxu0 0
        %2809 = vmatprep.subr.bf16.mxu0 0
        %2810 = vmatpush1.bf16.msra.mxu0 0
        %2811 = vmatprep.subr.bf16.mxu0 0
        %2812 = vmatpush1.bf16.msra.mxu0 0
        %2813 = vmatprep.subr.bf16.mxu0 0
        %2814 = vmatpush1.bf16.msra.mxu0 0
        %2815 = vmatprep.subr.bf16.mxu0 0
        %2816 = vmatpush1.bf16.msra.mxu0 0
        %2817 = vmatprep.subr.bf16.mxu0 0
        %2818 = vmatpush1.bf16.msra.mxu0 0
        %2819 = vmatprep.subr.bf16.mxu0 0
        %2820 = vmatpush1.bf16.msra.mxu0 %v2571
        %2821 = vmatprep.subr.bf16.mxu0 0
        %2822 = vmatpush2.bf16.msra.mxu0 0
        %2823 = vmatprep.subr.bf16.mxu0 0
        %2824 = vmatpush2.bf16.msra.mxu0 0
        %2825 = vmatprep.subr.bf16.mxu0 0
        %2826 = vmatpush2.bf16.msra.mxu0 0
        %2827 = vmatprep.subr.bf16.mxu0 0
        %2828 = vmatpush2.bf16.msra.mxu0 0
        %2829 = vmatprep.subr.bf16.mxu0 0
        %2830 = vmatpush2.bf16.msra.mxu0 0
        %2831 = vmatprep.subr.bf16.mxu0 0
        %2832 = vmatpush2.bf16.msra.mxu0 0
        %2833 = vmatprep.subr.bf16.mxu0 0
        %2834 = vmatpush2.bf16.msra.mxu0 0
        %2835 = vmatprep.subr.bf16.mxu0 0
        %2836 = vmatpush2.bf16.msra.mxu0 0
        %2837 = vmatprep.mubr.bf16.mxu0 0
        %2838 = vmatmul.mubr.bf16.gmra.mxu0 %v2803
        %v2839 = vpop.f32.mrf.mxu0
        %v2840 = vadd.f32 1e-06, %v2839
        %v2841 = vpop.f32.mrf.mxu0
        %v2842 = vpop.f32.mrf.mxu0
        %v2843 = vadd.f32 1e-06, %v2842
        %v2844 = vpop.f32.mrf.mxu0
        %2845 = vdwg.mxu0
        %v2846 = vrcp.pop %v2840
        %v2847 = vrcp.pop %v2843
        %v2848 = vmul.f32 %v2800, %v2846
        %v2849 = vmul.f32 %v2801, %v2847
        %v2850 = vpack.c.bf16 %v2849, %v2848
        %2851 = vmatprep.subr.bf16.mxu0 %v1111
        %2852 = vmatpush1.bf16.msra.mxu0 %v1110
        %2853 = vmatprep.subr.bf16.mxu0 %v1109
        %2854 = vmatpush1.bf16.msra.mxu0 %v1108
        %2855 = vmatprep.subr.bf16.mxu0 %v1107
        %2856 = vmatpush1.bf16.msra.mxu0 %v1106
        %2857 = vmatprep.subr.bf16.mxu0 %v1105
        %2858 = vmatpush1.bf16.msra.mxu0 %v1104
        %2859 = vmatprep.subr.bf16.mxu0 %v1103
        %2860 = vmatpush1.bf16.msra.mxu0 %v1102
        %2861 = vmatprep.subr.bf16.mxu0 %v1101
        %2862 = vmatpush1.bf16.msra.mxu0 %v1100
        %2863 = vmatprep.subr.bf16.mxu0 %v1099
        %2864 = vmatpush1.bf16.msra.mxu0 %v1098
        %2865 = vmatprep.subr.bf16.mxu0 %v1097
        %2866 = vmatpush1.bf16.msra.mxu0 %v1096
        %2867 = vmatprep.subr.bf16.mxu0 0
        %2868 = vmatpush2.bf16.msra.mxu0 0
        %2869 = vmatprep.subr.bf16.mxu0 0
        %2870 = vmatpush2.bf16.msra.mxu0 0
        %2871 = vmatprep.subr.bf16.mxu0 0
        %2872 = vmatpush2.bf16.msra.mxu0 0
        %2873 = vmatprep.subr.bf16.mxu0 0
        %2874 = vmatpush2.bf16.msra.mxu0 0
        %2875 = vmatprep.subr.bf16.mxu0 0
        %2876 = vmatpush2.bf16.msra.mxu0 0
        %2877 = vmatprep.subr.bf16.mxu0 0
        %2878 = vmatpush2.bf16.msra.mxu0 0
        %2879 = vmatprep.subr.bf16.mxu0 0
        %2880 = vmatpush2.bf16.msra.mxu0 0
        %2881 = vmatprep.subr.bf16.mxu0 0
        %2882 = vmatpush2.bf16.msra.mxu0 0
        %2883 = vmatprep.mubr.bf16.mxu0 0
        %2884 = vmatmul.mubr.bf16.gmra.mxu0 %v2850
        %v2885 = vpop.f32.mrf.mxu0
        %v2886 = vadd.f32 0.0, %v2885
        %v2887 = vpop.f32.mrf.mxu0
        %v2888 = vadd.f32 0.0, %v2887
        %v2889 = vpop.f32.mrf.mxu0
        %v2890 = vadd.f32 0.0, %v2889
        %v2891 = vpop.f32.mrf.mxu0
        %v2892 = vadd.f32 0.0, %v2891
        %2893 = vdwg.mxu0
        %2894 = vmatprep.subr.bf16.mxu0 0
        %2895 = vmatpush1.bf16.xpose.msra.mxu0 0
        %2896 = vmatprep.subr.bf16.mxu0 0
        %2897 = vmatpush1.bf16.xpose.msra.mxu0 0
        %2898 = vmatprep.subr.bf16.mxu0 0
        %2899 = vmatpush1.bf16.xpose.msra.mxu0 0
        %2900 = vmatprep.subr.bf16.mxu0 0
        %2901 = vmatpush1.bf16.xpose.msra.mxu0 0
        %2902 = vmatprep.subr.bf16.mxu0 0
        %2903 = vmatpush1.bf16.xpose.msra.mxu0 0
        %2904 = vmatprep.subr.bf16.mxu0 0
        %2905 = vmatpush1.bf16.xpose.msra.mxu0 0
        %2906 = vmatprep.subr.bf16.mxu0 0
        %2907 = vmatpush1.bf16.xpose.msra.mxu0 0
        %2908 = vmatprep.subr.bf16.mxu0 0
        %2909 = vmatpush1.bf16.xpose.msra.mxu0 %v2850
        %2910 = vmatprep.subr.bf16.mxu0 0
        %2911 = vmatpush2.bf16.xpose.msra.mxu0 0
        %2912 = vmatprep.subr.bf16.mxu0 0
        %2913 = vmatpush2.bf16.xpose.msra.mxu0 0
        %2914 = vmatprep.subr.bf16.mxu0 0
        %2915 = vmatpush2.bf16.xpose.msra.mxu0 0
        %2916 = vmatprep.subr.bf16.mxu0 0
        %2917 = vmatpush2.bf16.xpose.msra.mxu0 0
        %2918 = vmatprep.subr.bf16.mxu0 0
        %2919 = vmatpush2.bf16.xpose.msra.mxu0 0
        %2920 = vmatprep.subr.bf16.mxu0 0
        %2921 = vmatpush2.bf16.xpose.msra.mxu0 0
        %2922 = vmatprep.subr.bf16.mxu0 0
        %2923 = vmatpush2.bf16.xpose.msra.mxu0 0
        %2924 = vmatprep.subr.bf16.mxu0 0
        %2925 = vmatpush2.bf16.xpose.msra.mxu0 0
        %2926 = vmatprep.mubr.bf16.mxu0 0
        %2927 = vmatmul.mubr.bf16.gmra.mxu0 %v2850
        %v2928 = vpop.f32.mrf.mxu0
        %v2929 = vadd.f32 0.0, %v2928
        %v2930 = vpop.f32.mrf.mxu0
        %v2931 = vpop.f32.mrf.mxu0
        %v2932 = vadd.f32 0.0, %v2931
        %v2933 = vpop.f32.mrf.mxu0
        %2934 = vdwg.mxu0
        %v2935 = vpack.c.bf16 %v2932, %v2929
        %v2936 = vmul.f32 %v2711, %v2886
        %v2937 = vmul.f32 %v2712, %v2888
        %v2938 = vmul.f32 %v2713, %v2890
        %v2939 = vmul.f32 %v2714, %v2892
        %v2941 = vsel %vm1265, %v2935, 0
        %2943 = vmatprep.subr.bf16.mxu0 0
        %2944 = vmatpush1.bf16.msra.mxu0 0
        %2945 = vmatprep.subr.bf16.mxu0 0
        %2946 = vmatpush1.bf16.msra.mxu0 0
        %2947 = vmatprep.subr.bf16.mxu0 0
        %2948 = vmatpush1.bf16.msra.mxu0 0
        %2949 = vmatprep.subr.bf16.mxu0 0
        %2950 = vmatpush1.bf16.msra.mxu0 0
        %2951 = vmatprep.subr.bf16.mxu0 0
        %2952 = vmatpush1.bf16.msra.mxu0 0
        %2953 = vmatprep.subr.bf16.mxu0 0
        %2954 = vmatpush1.bf16.msra.mxu0 0
        %2955 = vmatprep.subr.bf16.mxu0 0
        %2956 = vmatpush1.bf16.msra.mxu0 0
        %2957 = vmatprep.subr.bf16.mxu0 %v2716
        %2958 = vmatpush1.bf16.msra.mxu0 %v2715
        %2959 = vmatprep.subr.bf16.mxu0 0
        %2960 = vmatpush2.bf16.msra.mxu0 0
        %2961 = vmatprep.subr.bf16.mxu0 0
        %2962 = vmatpush2.bf16.msra.mxu0 0
        %2963 = vmatprep.subr.bf16.mxu0 0
        %2964 = vmatpush2.bf16.msra.mxu0 0
        %2965 = vmatprep.subr.bf16.mxu0 0
        %2966 = vmatpush2.bf16.msra.mxu0 0
        %2967 = vmatprep.subr.bf16.mxu0 0
        %2968 = vmatpush2.bf16.msra.mxu0 0
        %2969 = vmatprep.subr.bf16.mxu0 0
        %2970 = vmatpush2.bf16.msra.mxu0 0
        %2971 = vmatprep.subr.bf16.mxu0 0
        %2972 = vmatpush2.bf16.msra.mxu0 0
        %2973 = vmatprep.subr.bf16.mxu0 0
        %2974 = vmatpush2.bf16.msra.mxu0 0
        %2975 = vmatprep.mubr.bf16.mxu0 0
        %2976 = vmatmul.mubr.bf16.gmra.mxu0 %v2941
        %v2977 = vpop.f32.mrf.mxu0
        %v2978 = vadd.f32 1e-06, %v2977
        %v2979 = vpop.f32.mrf.mxu0
        %v2980 = vadd.f32 1e-06, %v2979
        %v2981 = vpop.f32.mrf.mxu0
        %v2982 = vadd.f32 1e-06, %v2981
        %v2983 = vpop.f32.mrf.mxu0
        %v2984 = vadd.f32 1e-06, %v2983
        %2985 = vdwg.mxu0
        %v2986 = vrcp.pop %v2978
        %v2987 = vrcp.pop %v2980
        %v2988 = vrcp.pop %v2982
        %v2989 = vrcp.pop %v2984
        %v2990 = vmul.f32 %v2936, %v2986
        %v2991 = vmul.f32 %v2937, %v2987
        %v2992 = vmul.f32 %v2938, %v2988
        %v2993 = vmul.f32 %v2939, %v2989
        %v2994 = vpack.c.bf16 %v2992, %v2990
        %v2995 = vpack.c.bf16 %v2993, %v2991
        %2996 = vmatprep.subr.bf16.mxu0 %v1111
        %2997 = vmatpush1.bf16.xpose.msra.mxu0 %v1110
        %2998 = vmatprep.subr.bf16.mxu0 %v1109
        %2999 = vmatpush1.bf16.xpose.msra.mxu0 %v1108
        %3000 = vmatprep.subr.bf16.mxu0 %v1107
        %3001 = vmatpush1.bf16.xpose.msra.mxu0 %v1106
        %3002 = vmatprep.subr.bf16.mxu0 %v1105
        %3003 = vmatpush1.bf16.xpose.msra.mxu0 %v1104
        %3004 = vmatprep.subr.bf16.mxu0 %v1103
        %3005 = vmatpush1.bf16.xpose.msra.mxu0 %v1102
        %3006 = vmatprep.subr.bf16.mxu0 %v1101
        %3007 = vmatpush1.bf16.xpose.msra.mxu0 %v1100
        %3008 = vmatprep.subr.bf16.mxu0 %v1099
        %3009 = vmatpush1.bf16.xpose.msra.mxu0 %v1098
        %3010 = vmatprep.subr.bf16.mxu0 %v1097
        %3011 = vmatpush1.bf16.xpose.msra.mxu0 %v1096
        %3012 = vmatprep.subr.bf16.mxu0 0
        %3013 = vmatpush2.bf16.xpose.msra.mxu0 0
        %3014 = vmatprep.subr.bf16.mxu0 0
        %3015 = vmatpush2.bf16.xpose.msra.mxu0 0
        %3016 = vmatprep.subr.bf16.mxu0 0
        %3017 = vmatpush2.bf16.xpose.msra.mxu0 0
        %3018 = vmatprep.subr.bf16.mxu0 0
        %3019 = vmatpush2.bf16.xpose.msra.mxu0 0
        %3020 = vmatprep.subr.bf16.mxu0 0
        %3021 = vmatpush2.bf16.xpose.msra.mxu0 0
        %3022 = vmatprep.subr.bf16.mxu0 0
        %3023 = vmatpush2.bf16.xpose.msra.mxu0 0
        %3024 = vmatprep.subr.bf16.mxu0 0
        %3025 = vmatpush2.bf16.xpose.msra.mxu0 0
        %3026 = vmatprep.subr.bf16.mxu0 0
        %3027 = vmatpush2.bf16.xpose.msra.mxu0 0
        %3028 = vmatprep.mubr.bf16.mxu0 %v2995
        %3029 = vmatmul.mubr.bf16.gmra.mxu0 %v2994
        %v3030 = vpop.f32.mrf.mxu0
        %v3031 = vadd.f32 0.0, %v3030
        %v3032 = vpop.f32.mrf.mxu0
        %v3033 = vpop.f32.mrf.mxu0
        %v3034 = vadd.f32 0.0, %v3033
        %v3035 = vpop.f32.mrf.mxu0
        %3036 = vdwg.mxu0
        %3037 = vmatprep.subr.bf16.mxu0 0
        %3038 = vmatpush1.bf16.xpose.msra.mxu0 0
        %3039 = vmatprep.subr.bf16.mxu0 0
        %3040 = vmatpush1.bf16.xpose.msra.mxu0 0
        %3041 = vmatprep.subr.bf16.mxu0 0
        %3042 = vmatpush1.bf16.xpose.msra.mxu0 0
        %3043 = vmatprep.subr.bf16.mxu0 0
        %3044 = vmatpush1.bf16.xpose.msra.mxu0 0
        %3045 = vmatprep.subr.bf16.mxu0 0
        %3046 = vmatpush1.bf16.xpose.msra.mxu0 0
        %3047 = vmatprep.subr.bf16.mxu0 0
        %3048 = vmatpush1.bf16.xpose.msra.mxu0 0
        %3049 = vmatprep.subr.bf16.mxu0 0
        %3050 = vmatpush1.bf16.xpose.msra.mxu0 0
        %3051 = vmatprep.subr.bf16.mxu0 %v2995
        %3052 = vmatpush1.bf16.xpose.msra.mxu0 %v2994
        %3053 = vmatprep.subr.bf16.mxu0 0
        %3054 = vmatpush2.bf16.xpose.msra.mxu0 0
        %3055 = vmatprep.subr.bf16.mxu0 0
        %3056 = vmatpush2.bf16.xpose.msra.mxu0 0
        %3057 = vmatprep.subr.bf16.mxu0 0
        %3058 = vmatpush2.bf16.xpose.msra.mxu0 0
        %3059 = vmatprep.subr.bf16.mxu0 0
        %3060 = vmatpush2.bf16.xpose.msra.mxu0 0
        %3061 = vmatprep.subr.bf16.mxu0 0
        %3062 = vmatpush2.bf16.xpose.msra.mxu0 0
        %3063 = vmatprep.subr.bf16.mxu0 0
        %3064 = vmatpush2.bf16.xpose.msra.mxu0 0
        %3065 = vmatprep.subr.bf16.mxu0 0
        %3066 = vmatpush2.bf16.xpose.msra.mxu0 0
        %3067 = vmatprep.subr.bf16.mxu0 0
        %3068 = vmatpush2.bf16.xpose.msra.mxu0 0
        %3069 = vmatprep.mubr.bf16.mxu0 %v2995
        %3070 = vmatmul.mubr.bf16.gmra.mxu0 %v2994
        %v3071 = vpop.f32.mrf.mxu0
        %v3072 = vadd.f32 0.0, %v3071
        %v3073 = vpop.f32.mrf.mxu0
        %v3074 = vpop.f32.mrf.mxu0
        %v3075 = vadd.f32 0.0, %v3074
        %v3076 = vpop.f32.mrf.mxu0
        %3077 = vdwg.mxu0
        %v3078 = vpack.c.bf16 %v3075, %v3072
        %v3079 = vmul.f32 %v2848, %v3031
        %v3080 = vmul.f32 %v2849, %v3034
        %v3082 = vsel %vm1265, %v3078, 0
        %3084 = vmatprep.subr.bf16.mxu0 0
        %3085 = vmatpush1.bf16.msra.mxu0 0
        %3086 = vmatprep.subr.bf16.mxu0 0
        %3087 = vmatpush1.bf16.msra.mxu0 0
        %3088 = vmatprep.subr.bf16.mxu0 0
        %3089 = vmatpush1.bf16.msra.mxu0 0
        %3090 = vmatprep.subr.bf16.mxu0 0
        %3091 = vmatpush1.bf16.msra.mxu0 0
        %3092 = vmatprep.subr.bf16.mxu0 0
        %3093 = vmatpush1.bf16.msra.mxu0 0
        %3094 = vmatprep.subr.bf16.mxu0 0
        %3095 = vmatpush1.bf16.msra.mxu0 0
        %3096 = vmatprep.subr.bf16.mxu0 0
        %3097 = vmatpush1.bf16.msra.mxu0 0
        %3098 = vmatprep.subr.bf16.mxu0 0
        %3099 = vmatpush1.bf16.msra.mxu0 %v2850
        %3100 = vmatprep.subr.bf16.mxu0 0
        %3101 = vmatpush2.bf16.msra.mxu0 0
        %3102 = vmatprep.subr.bf16.mxu0 0
        %3103 = vmatpush2.bf16.msra.mxu0 0
        %3104 = vmatprep.subr.bf16.mxu0 0
        %3105 = vmatpush2.bf16.msra.mxu0 0
        %3106 = vmatprep.subr.bf16.mxu0 0
        %3107 = vmatpush2.bf16.msra.mxu0 0
        %3108 = vmatprep.subr.bf16.mxu0 0
        %3109 = vmatpush2.bf16.msra.mxu0 0
        %3110 = vmatprep.subr.bf16.mxu0 0
        %3111 = vmatpush2.bf16.msra.mxu0 0
        %3112 = vmatprep.subr.bf16.mxu0 0
        %3113 = vmatpush2.bf16.msra.mxu0 0
        %3114 = vmatprep.subr.bf16.mxu0 0
        %3115 = vmatpush2.bf16.msra.mxu0 0
        %3116 = vmatprep.mubr.bf16.mxu0 0
        %3117 = vmatmul.mubr.bf16.gmra.mxu0 %v3082
        %v3118 = vpop.f32.mrf.mxu0
        %v3119 = vadd.f32 1e-06, %v3118
        %v3120 = vpop.f32.mrf.mxu0
        %v3121 = vpop.f32.mrf.mxu0
        %v3122 = vadd.f32 1e-06, %v3121
        %v3123 = vpop.f32.mrf.mxu0
        %3124 = vdwg.mxu0
        %v3125 = vrcp.pop %v3119
        %v3126 = vrcp.pop %v3122
        %v3127 = vmul.f32 %v3079, %v3125
        %v3128 = vmul.f32 %v3080, %v3126
        %v3129 = vpack.c.bf16 %v3128, %v3127
        %3130 = vmatprep.subr.bf16.mxu0 %v1111
        %3131 = vmatpush1.bf16.msra.mxu0 %v1110
        %3132 = vmatprep.subr.bf16.mxu0 %v1109
        %3133 = vmatpush1.bf16.msra.mxu0 %v1108
        %3134 = vmatprep.subr.bf16.mxu0 %v1107
        %3135 = vmatpush1.bf16.msra.mxu0 %v1106
        %3136 = vmatprep.subr.bf16.mxu0 %v1105
        %3137 = vmatpush1.bf16.msra.mxu0 %v1104
        %3138 = vmatprep.subr.bf16.mxu0 %v1103
        %3139 = vmatpush1.bf16.msra.mxu0 %v1102
        %3140 = vmatprep.subr.bf16.mxu0 %v1101
        %3141 = vmatpush1.bf16.msra.mxu0 %v1100
        %3142 = vmatprep.subr.bf16.mxu0 %v1099
        %3143 = vmatpush1.bf16.msra.mxu0 %v1098
        %3144 = vmatprep.subr.bf16.mxu0 %v1097
        %3145 = vmatpush1.bf16.msra.mxu0 %v1096
        %3146 = vmatprep.subr.bf16.mxu0 0
        %3147 = vmatpush2.bf16.msra.mxu0 0
        %3148 = vmatprep.subr.bf16.mxu0 0
        %3149 = vmatpush2.bf16.msra.mxu0 0
        %3150 = vmatprep.subr.bf16.mxu0 0
        %3151 = vmatpush2.bf16.msra.mxu0 0
        %3152 = vmatprep.subr.bf16.mxu0 0
        %3153 = vmatpush2.bf16.msra.mxu0 0
        %3154 = vmatprep.subr.bf16.mxu0 0
        %3155 = vmatpush2.bf16.msra.mxu0 0
        %3156 = vmatprep.subr.bf16.mxu0 0
        %3157 = vmatpush2.bf16.msra.mxu0 0
        %3158 = vmatprep.subr.bf16.mxu0 0
        %3159 = vmatpush2.bf16.msra.mxu0 0
        %3160 = vmatprep.subr.bf16.mxu0 0
        %3161 = vmatpush2.bf16.msra.mxu0 0
        %3162 = vmatprep.mubr.bf16.mxu0 0
        %3163 = vmatmul.mubr.bf16.gmra.mxu0 %v3129
        %v3164 = vpop.f32.mrf.mxu0
        %v3165 = vadd.f32 0.0, %v3164
        %v3166 = vpop.f32.mrf.mxu0
        %v3167 = vadd.f32 0.0, %v3166
        %v3168 = vpop.f32.mrf.mxu0
        %v3169 = vadd.f32 0.0, %v3168
        %v3170 = vpop.f32.mrf.mxu0
        %v3171 = vadd.f32 0.0, %v3170
        %3172 = vdwg.mxu0
        %3173 = vmatprep.subr.bf16.mxu0 0
        %3174 = vmatpush1.bf16.xpose.msra.mxu0 0
        %3175 = vmatprep.subr.bf16.mxu0 0
        %3176 = vmatpush1.bf16.xpose.msra.mxu0 0
        %3177 = vmatprep.subr.bf16.mxu0 0
        %3178 = vmatpush1.bf16.xpose.msra.mxu0 0
        %3179 = vmatprep.subr.bf16.mxu0 0
        %3180 = vmatpush1.bf16.xpose.msra.mxu0 0
        %3181 = vmatprep.subr.bf16.mxu0 0
        %3182 = vmatpush1.bf16.xpose.msra.mxu0 0
        %3183 = vmatprep.subr.bf16.mxu0 0
        %3184 = vmatpush1.bf16.xpose.msra.mxu0 0
        %3185 = vmatprep.subr.bf16.mxu0 0
        %3186 = vmatpush1.bf16.xpose.msra.mxu0 0
        %3187 = vmatprep.subr.bf16.mxu0 0
        %3188 = vmatpush1.bf16.xpose.msra.mxu0 %v3129
        %3189 = vmatprep.subr.bf16.mxu0 0
        %3190 = vmatpush2.bf16.xpose.msra.mxu0 0
        %3191 = vmatprep.subr.bf16.mxu0 0
        %3192 = vmatpush2.bf16.xpose.msra.mxu0 0
        %3193 = vmatprep.subr.bf16.mxu0 0
        %3194 = vmatpush2.bf16.xpose.msra.mxu0 0
        %3195 = vmatprep.subr.bf16.mxu0 0
        %3196 = vmatpush2.bf16.xpose.msra.mxu0 0
        %3197 = vmatprep.subr.bf16.mxu0 0
        %3198 = vmatpush2.bf16.xpose.msra.mxu0 0
        %3199 = vmatprep.subr.bf16.mxu0 0
        %3200 = vmatpush2.bf16.xpose.msra.mxu0 0
        %3201 = vmatprep.subr.bf16.mxu0 0
        %3202 = vmatpush2.bf16.xpose.msra.mxu0 0
        %3203 = vmatprep.subr.bf16.mxu0 0
        %3204 = vmatpush2.bf16.xpose.msra.mxu0 0
        %3205 = vmatprep.mubr.bf16.mxu0 0
        %3206 = vmatmul.mubr.bf16.gmra.mxu0 %v3129
        %v3207 = vpop.f32.mrf.mxu0
        %v3208 = vadd.f32 0.0, %v3207
        %v3209 = vpop.f32.mrf.mxu0
        %v3210 = vpop.f32.mrf.mxu0
        %v3211 = vadd.f32 0.0, %v3210
        %v3212 = vpop.f32.mrf.mxu0
        %3213 = vdwg.mxu0
        %v3214 = vpack.c.bf16 %v3211, %v3208
        %v3215 = vmul.f32 %v2990, %v3165
        %v3216 = vmul.f32 %v2991, %v3167
        %v3217 = vmul.f32 %v2992, %v3169
        %v3218 = vmul.f32 %v2993, %v3171
        %v3220 = vsel %vm1265, %v3214, 0
        %3222 = vmatprep.subr.bf16.mxu0 0
        %3223 = vmatpush1.bf16.msra.mxu0 0
        %3224 = vmatprep.subr.bf16.mxu0 0
        %3225 = vmatpush1.bf16.msra.mxu0 0
        %3226 = vmatprep.subr.bf16.mxu0 0
        %3227 = vmatpush1.bf16.msra.mxu0 0
        %3228 = vmatprep.subr.bf16.mxu0 0
        %3229 = vmatpush1.bf16.msra.mxu0 0
        %3230 = vmatprep.subr.bf16.mxu0 0
        %3231 = vmatpush1.bf16.msra.mxu0 0
        %3232 = vmatprep.subr.bf16.mxu0 0
        %3233 = vmatpush1.bf16.msra.mxu0 0
        %3234 = vmatprep.subr.bf16.mxu0 0
        %3235 = vmatpush1.bf16.msra.mxu0 0
        %3236 = vmatprep.subr.bf16.mxu0 %v2995
        %3237 = vmatpush1.bf16.msra.mxu0 %v2994
        %3238 = vmatprep.subr.bf16.mxu0 0
        %3239 = vmatpush2.bf16.msra.mxu0 0
        %3240 = vmatprep.subr.bf16.mxu0 0
        %3241 = vmatpush2.bf16.msra.mxu0 0
        %3242 = vmatprep.subr.bf16.mxu0 0
        %3243 = vmatpush2.bf16.msra.mxu0 0
        %3244 = vmatprep.subr.bf16.mxu0 0
        %3245 = vmatpush2.bf16.msra.mxu0 0
        %3246 = vmatprep.subr.bf16.mxu0 0
        %3247 = vmatpush2.bf16.msra.mxu0 0
        %3248 = vmatprep.subr.bf16.mxu0 0
        %3249 = vmatpush2.bf16.msra.mxu0 0
        %3250 = vmatprep.subr.bf16.mxu0 0
        %3251 = vmatpush2.bf16.msra.mxu0 0
        %3252 = vmatprep.subr.bf16.mxu0 0
        %3253 = vmatpush2.bf16.msra.mxu0 0
        %3254 = vmatprep.mubr.bf16.mxu0 0
        %3255 = vmatmul.mubr.bf16.gmra.mxu0 %v3220
        %v3256 = vpop.f32.mrf.mxu0
        %v3257 = vadd.f32 1e-06, %v3256
        %v3258 = vpop.f32.mrf.mxu0
        %v3259 = vadd.f32 1e-06, %v3258
        %v3260 = vpop.f32.mrf.mxu0
        %v3261 = vadd.f32 1e-06, %v3260
        %v3262 = vpop.f32.mrf.mxu0
        %v3263 = vadd.f32 1e-06, %v3262
        %3264 = vdwg.mxu0
        %v3265 = vrcp.pop %v3257
        %v3266 = vrcp.pop %v3259
        %v3267 = vrcp.pop %v3261
        %v3268 = vrcp.pop %v3263
        %v3269 = vmul.f32 %v3215, %v3265
        %v3270 = vmul.f32 %v3216, %v3266
        %v3271 = vmul.f32 %v3217, %v3267
        %v3272 = vmul.f32 %v3218, %v3268
        %v3273 = vpack.c.bf16 %v3271, %v3269
        %v3274 = vpack.c.bf16 %v3272, %v3270
        %v3277 = vunpack.c.l.b16 %v3273
        %v3278 = vunpack.c.l.b16 %v3274
        %v3279 = vunpack.c.h.b16 %v3273
        %v3280 = vunpack.c.h.b16 %v3274
        %v3281 = vpack.c.b16 %v3278, %v3277
        %v3282 = vpack.c.b16 %v3280, %v3279
        %3285 = vst [vmem:[#allocation4] sm:$0xff] %v3281
        %3286 = vst [vmem:[#allocation4 + $0x8] sm:$0xff] %v3282
        %v3303 = vunpack.c.l.b16 %v230
        %v3304 = vunpack.c.l.b16 %v231
        %v3305 = vunpack.c.l.b16 %v232
        %v3306 = vunpack.c.l.b16 %v233
        %v3307 = vunpack.c.l.b16 %v234
        %v3308 = vunpack.c.l.b16 %v235
        %v3309 = vunpack.c.l.b16 %v236
        %v3310 = vunpack.c.l.b16 %v237
        %v3311 = vunpack.c.l.b16 %v238
        %v3312 = vunpack.c.l.b16 %v239
        %v3313 = vunpack.c.l.b16 %v240
        %v3314 = vunpack.c.l.b16 %v241
        %v3315 = vunpack.c.l.b16 %v242
        %v3316 = vunpack.c.l.b16 %v243
        %v3317 = vunpack.c.l.b16 %v244
        %v3318 = vunpack.c.l.b16 %v245
        %v3319 = vpack.c.b16 %v3304, %v3303
        %v3320 = vpack.c.b16 %v3306, %v3305
        %v3321 = vpack.c.b16 %v3308, %v3307
        %v3322 = vpack.c.b16 %v3310, %v3309
        %v3323 = vpack.c.b16 %v3312, %v3311
        %v3324 = vpack.c.b16 %v3314, %v3313
        %v3325 = vpack.c.b16 %v3316, %v3315
        %v3326 = vpack.c.b16 %v3318, %v3317
        %3335 = vmatprep.subr.bf16.mxu0 0
        %3336 = vmatpush1.bf16.xpose.msra.mxu0 0
        %3337 = vmatprep.subr.bf16.mxu0 0
        %3338 = vmatpush1.bf16.xpose.msra.mxu0 0
        %3339 = vmatprep.subr.bf16.mxu0 0
        %3340 = vmatpush1.bf16.xpose.msra.mxu0 0
        %3341 = vmatprep.subr.bf16.mxu0 0
        %3342 = vmatpush1.bf16.xpose.msra.mxu0 0
        %3343 = vmatprep.subr.bf16.mxu0 0
        %3344 = vmatpush1.bf16.xpose.msra.mxu0 0
        %3345 = vmatprep.subr.bf16.mxu0 0
        %3346 = vmatpush1.bf16.xpose.msra.mxu0 0
        %3347 = vmatprep.subr.bf16.mxu0 0
        %3348 = vmatpush1.bf16.xpose.msra.mxu0 0
        %3349 = vmatprep.subr.bf16.mxu0 0
        %3350 = vmatpush1.bf16.xpose.msra.mxu0 %v3129
        %3351 = vmatprep.subr.bf16.mxu0 0
        %3352 = vmatpush2.bf16.xpose.msra.mxu0 0
        %3353 = vmatprep.subr.bf16.mxu0 0
        %3354 = vmatpush2.bf16.xpose.msra.mxu0 0
        %3355 = vmatprep.subr.bf16.mxu0 0
        %3356 = vmatpush2.bf16.xpose.msra.mxu0 0
        %3357 = vmatprep.subr.bf16.mxu0 0
        %3358 = vmatpush2.bf16.xpose.msra.mxu0 0
        %3359 = vmatprep.subr.bf16.mxu0 0
        %3360 = vmatpush2.bf16.xpose.msra.mxu0 0
        %3361 = vmatprep.subr.bf16.mxu0 0
        %3362 = vmatpush2.bf16.xpose.msra.mxu0 0
        %3363 = vmatprep.subr.bf16.mxu0 0
        %3364 = vmatpush2.bf16.xpose.msra.mxu0 0
        %3365 = vmatprep.subr.bf16.mxu0 0
        %3366 = vmatpush2.bf16.xpose.msra.mxu0 0
        %3367 = vmatprep.mubr.bf16.mxu0 0
        %3368 = vmatmul.mubr.bf16.gmra.mxu0 %v3319
        %v3369 = vpop.f32.mrf.mxu0
        %v3370 = vadd.f32 0.0, %v3369
        %v3371 = vpop.f32.mrf.mxu0
        %v3372 = vpop.f32.mrf.mxu0
        %v3373 = vadd.f32 0.0, %v3372
        %v3374 = vpop.f32.mrf.mxu0
        %3375 = vmatprep.mubr.bf16.mxu0 0
        %3376 = vmatmul.mubr.bf16.gmra.mxu0 %v3320
        %v3377 = vpop.f32.mrf.mxu0
        %v3378 = vadd.f32 0.0, %v3377
        %v3379 = vpop.f32.mrf.mxu0
        %v3380 = vpop.f32.mrf.mxu0
        %v3381 = vadd.f32 0.0, %v3380
        %v3382 = vpop.f32.mrf.mxu0
        %3383 = vmatprep.mubr.bf16.mxu0 0
        %3384 = vmatmul.mubr.bf16.gmra.mxu0 %v3321
        %v3385 = vpop.f32.mrf.mxu0
        %v3386 = vadd.f32 0.0, %v3385
        %v3387 = vpop.f32.mrf.mxu0
        %v3388 = vpop.f32.mrf.mxu0
        %v3389 = vadd.f32 0.0, %v3388
        %v3390 = vpop.f32.mrf.mxu0
        %3391 = vmatprep.mubr.bf16.mxu0 0
        %3392 = vmatmul.mubr.bf16.gmra.mxu0 %v3322
        %v3393 = vpop.f32.mrf.mxu0
        %v3394 = vadd.f32 0.0, %v3393
        %v3395 = vpop.f32.mrf.mxu0
        %v3396 = vpop.f32.mrf.mxu0
        %v3397 = vadd.f32 0.0, %v3396
        %v3398 = vpop.f32.mrf.mxu0
        %3399 = vmatprep.mubr.bf16.mxu0 0
        %3400 = vmatmul.mubr.bf16.gmra.mxu0 %v3323
        %v3401 = vpop.f32.mrf.mxu0
        %v3402 = vadd.f32 0.0, %v3401
        %v3403 = vpop.f32.mrf.mxu0
        %v3404 = vpop.f32.mrf.mxu0
        %v3405 = vadd.f32 0.0, %v3404
        %v3406 = vpop.f32.mrf.mxu0
        %3407 = vmatprep.mubr.bf16.mxu0 0
        %3408 = vmatmul.mubr.bf16.gmra.mxu0 %v3324
        %v3409 = vpop.f32.mrf.mxu0
        %v3410 = vadd.f32 0.0, %v3409
        %v3411 = vpop.f32.mrf.mxu0
        %v3412 = vpop.f32.mrf.mxu0
        %v3413 = vadd.f32 0.0, %v3412
        %v3414 = vpop.f32.mrf.mxu0
        %3415 = vmatprep.mubr.bf16.mxu0 0
        %3416 = vmatmul.mubr.bf16.gmra.mxu0 %v3325
        %v3417 = vpop.f32.mrf.mxu0
        %v3418 = vadd.f32 0.0, %v3417
        %v3419 = vpop.f32.mrf.mxu0
        %v3420 = vpop.f32.mrf.mxu0
        %v3421 = vadd.f32 0.0, %v3420
        %v3422 = vpop.f32.mrf.mxu0
        %3423 = vmatprep.mubr.bf16.mxu0 0
        %3424 = vmatmul.mubr.bf16.gmra.mxu0 %v3326
        %v3425 = vpop.f32.mrf.mxu0
        %v3426 = vadd.f32 0.0, %v3425
        %v3427 = vpop.f32.mrf.mxu0
        %v3428 = vpop.f32.mrf.mxu0
        %v3429 = vadd.f32 0.0, %v3428
        %v3430 = vpop.f32.mrf.mxu0
        %3431 = vdwg.mxu0
        %v3432 = vpack.c.bf16 %v3373, %v3370
        %v3433 = vpack.c.bf16 %v3381, %v3378
        %v3434 = vpack.c.bf16 %v3389, %v3386
        %v3435 = vpack.c.bf16 %v3397, %v3394
        %v3436 = vpack.c.bf16 %v3405, %v3402
        %v3437 = vpack.c.bf16 %v3413, %v3410
        %v3438 = vpack.c.bf16 %v3421, %v3418
        %v3439 = vpack.c.bf16 %v3429, %v3426
        loop: start=0, step=1, limit=2
        $region175: #{tpu_custom_call.1} parent=39 // loop_pre_header
          _
        $region176: #{tpu_custom_call.1} parent=39 // loop_header
          %s3441 = sphi 0, %s3445
          %p3442 = scmp.ge.s32.totalorder %s3441, 2
        $region177: #{tpu_custom_call.1} parent=39 // loop_header_branch
          %3444 = sbr.rel (%p3442) target = $region181
        $region178: #{tpu_custom_call.1} parent=39 // loop_body
          %s3446 = sand.u32 %s3441, 1
          %p3447 = scmp.ge.s32.totalorder %s3441, 2
          // Predicated region
          $region182: #{tpu_custom_call.1} parent=178 // pred_check
            %p3448 = pneg %p3447
          $region183: #{tpu_custom_call.1} parent=178 // pred_check_branch
            %3450 = sbr.rel (%p3448) target = $region185
          $region184: #{tpu_custom_call.1} parent=178 // pred_region
            %s3451 = ssub.s32 %s3441, 2
            %s3452 = smul.u32 %s3451, 128
            %s3453 = scalar_lea.sflag [#allocation7], %s3446
            %s3454 = smul.u32 4, 16
            %s3455 = smul.u32 %s3454, 1
            %s3456 = sshll.u32 %s3455, 4
            %3457 = dma.done %s3453, %s3456
          $region185: #{tpu_custom_call.1} parent=178 // pred_fallthru
            _
          %s3458 = smul.u32 %s3441, 128
          %s3459 = sshra.s32 %s3458, 7
          %s3460 = sand.u32 %s3458, 127
          %s3461 = smul.addr %s3459, 4
          %s3462 = scalar_lea.vmem [#allocation4], %s3461
          %v3463 = vld [vmem:[%s3462] sm:$0xf]
          %v3464 = vld [vmem:[%s3462 + $0x8] sm:$0xf]
          %3466 = vset.pattern.permute.xlu0 0
          %3467 = vperm.xlu0 %3466, %v246
          %v3468 = vpop.permute.xlu0 %3467
          %3471 = vset.pattern.permute.xlu0 0
          %3472 = vperm.xlu0 %3471, %v247
          %v3473 = vpop.permute.xlu0 %3472
          %3476 = vset.pattern.permute.xlu0 0
          %3477 = vperm.xlu0 %3476, %v248
          %v3478 = vpop.permute.xlu0 %3477
          %3481 = vset.pattern.permute.xlu0 0
          %3482 = vperm.xlu0 %3481, %v249
          %v3483 = vpop.permute.xlu0 %3482
          %3486 = vset.pattern.permute.xlu0 0
          %3487 = vperm.xlu0 %3486, %v250
          %v3488 = vpop.permute.xlu0 %3487
          %3491 = vset.pattern.permute.xlu0 0
          %3492 = vperm.xlu0 %3491, %v251
          %v3493 = vpop.permute.xlu0 %3492
          %3496 = vset.pattern.permute.xlu0 0
          %3497 = vperm.xlu0 %3496, %v252
          %v3498 = vpop.permute.xlu0 %3497
          %3501 = vset.pattern.permute.xlu0 0
          %3502 = vperm.xlu0 %3501, %v253
          %v3503 = vpop.permute.xlu0 %3502
          %3506 = vset.pattern.permute.xlu0 0
          %3507 = vperm.xlu0 %3506, %v254
          %v3508 = vpop.permute.xlu0 %3507
          %3511 = vset.pattern.permute.xlu0 0
          %3512 = vperm.xlu0 %3511, %v255
          %v3513 = vpop.permute.xlu0 %3512
          %3516 = vset.pattern.permute.xlu0 0
          %3517 = vperm.xlu0 %3516, %v256
          %v3518 = vpop.permute.xlu0 %3517
          %3521 = vset.pattern.permute.xlu0 0
          %3522 = vperm.xlu0 %3521, %v257
          %v3523 = vpop.permute.xlu0 %3522
          %3526 = vset.pattern.permute.xlu0 0
          %3527 = vperm.xlu0 %3526, %v258
          %v3528 = vpop.permute.xlu0 %3527
          %3531 = vset.pattern.permute.xlu0 0
          %3532 = vperm.xlu0 %3531, %v259
          %v3533 = vpop.permute.xlu0 %3532
          %3536 = vset.pattern.permute.xlu0 0
          %3537 = vperm.xlu0 %3536, %v260
          %v3538 = vpop.permute.xlu0 %3537
          %3541 = vset.pattern.permute.xlu0 0
          %3542 = vperm.xlu0 %3541, %v261
          %v3543 = vpop.permute.xlu0 %3542
          %v3547 = vunpack.c.l.b16 %v3463
          %v3548 = vunpack.c.l.b16 %v3464
          %v3549 = vpack.c.b16 %v3548, %v3547
          %v3552 = vsel %vm1265, %v3432, 0
          %v3555 = vsel %vm1265, %v3433, 0
          %v3558 = vsel %vm1265, %v3434, 0
          %v3561 = vsel %vm1265, %v3435, 0
          %v3564 = vsel %vm1265, %v3436, 0
          %v3567 = vsel %vm1265, %v3437, 0
          %v3570 = vsel %vm1265, %v3438, 0
          %v3573 = vsel %vm1265, %v3439, 0
          %3575 = vmatprep.subr.bf16.mxu0 0
          %3576 = vmatpush1.bf16.msra.mxu0 0
          %3577 = vmatprep.subr.bf16.mxu0 0
          %3578 = vmatpush1.bf16.msra.mxu0 0
          %3579 = vmatprep.subr.bf16.mxu0 0
          %3580 = vmatpush1.bf16.msra.mxu0 0
          %3581 = vmatprep.subr.bf16.mxu0 0
          %3582 = vmatpush1.bf16.msra.mxu0 0
          %3583 = vmatprep.subr.bf16.mxu0 0
          %3584 = vmatpush1.bf16.msra.mxu0 0
          %3585 = vmatprep.subr.bf16.mxu0 0
          %3586 = vmatpush1.bf16.msra.mxu0 0
          %3587 = vmatprep.subr.bf16.mxu0 0
          %3588 = vmatpush1.bf16.msra.mxu0 0
          %3589 = vmatprep.subr.bf16.mxu0 0
          %3590 = vmatpush1.bf16.msra.mxu0 %v3549
          %3591 = vmatprep.subr.bf16.mxu0 0
          %3592 = vmatpush2.bf16.msra.mxu0 0
          %3593 = vmatprep.subr.bf16.mxu0 0
          %3594 = vmatpush2.bf16.msra.mxu0 0
          %3595 = vmatprep.subr.bf16.mxu0 0
          %3596 = vmatpush2.bf16.msra.mxu0 0
          %3597 = vmatprep.subr.bf16.mxu0 0
          %3598 = vmatpush2.bf16.msra.mxu0 0
          %3599 = vmatprep.subr.bf16.mxu0 0
          %3600 = vmatpush2.bf16.msra.mxu0 0
          %3601 = vmatprep.subr.bf16.mxu0 0
          %3602 = vmatpush2.bf16.msra.mxu0 0
          %3603 = vmatprep.subr.bf16.mxu0 0
          %3604 = vmatpush2.bf16.msra.mxu0 0
          %3605 = vmatprep.subr.bf16.mxu0 0
          %3606 = vmatpush2.bf16.msra.mxu0 0
          %3607 = vmatprep.mubr.bf16.mxu0 0
          %3608 = vmatmul.mubr.bf16.gmra.mxu0 %v3552
          %v3609 = vpop.f32.mrf.mxu0
          %v3610 = vadd.f32 %v3468, %v3609
          %v3611 = vpop.f32.mrf.mxu0
          %v3612 = vpop.f32.mrf.mxu0
          %v3613 = vadd.f32 %v3473, %v3612
          %v3614 = vpop.f32.mrf.mxu0
          %3615 = vmatprep.mubr.bf16.mxu0 0
          %3616 = vmatmul.mubr.bf16.gmra.mxu0 %v3555
          %v3617 = vpop.f32.mrf.mxu0
          %v3618 = vadd.f32 %v3478, %v3617
          %v3619 = vpop.f32.mrf.mxu0
          %v3620 = vpop.f32.mrf.mxu0
          %v3621 = vadd.f32 %v3483, %v3620
          %v3622 = vpop.f32.mrf.mxu0
          %3623 = vmatprep.mubr.bf16.mxu0 0
          %3624 = vmatmul.mubr.bf16.gmra.mxu0 %v3558
          %v3625 = vpop.f32.mrf.mxu0
          %v3626 = vadd.f32 %v3488, %v3625
          %v3627 = vpop.f32.mrf.mxu0
          %v3628 = vpop.f32.mrf.mxu0
          %v3629 = vadd.f32 %v3493, %v3628
          %v3630 = vpop.f32.mrf.mxu0
          %3631 = vmatprep.mubr.bf16.mxu0 0
          %3632 = vmatmul.mubr.bf16.gmra.mxu0 %v3561
          %v3633 = vpop.f32.mrf.mxu0
          %v3634 = vadd.f32 %v3498, %v3633
          %v3635 = vpop.f32.mrf.mxu0
          %v3636 = vpop.f32.mrf.mxu0
          %v3637 = vadd.f32 %v3503, %v3636
          %v3638 = vpop.f32.mrf.mxu0
          %3639 = vmatprep.mubr.bf16.mxu0 0
          %3640 = vmatmul.mubr.bf16.gmra.mxu0 %v3564
          %v3641 = vpop.f32.mrf.mxu0
          %v3642 = vadd.f32 %v3508, %v3641
          %v3643 = vpop.f32.mrf.mxu0
          %v3644 = vpop.f32.mrf.mxu0
          %v3645 = vadd.f32 %v3513, %v3644
          %v3646 = vpop.f32.mrf.mxu0
          %3647 = vmatprep.mubr.bf16.mxu0 0
          %3648 = vmatmul.mubr.bf16.gmra.mxu0 %v3567
          %v3649 = vpop.f32.mrf.mxu0
          %v3650 = vadd.f32 %v3518, %v3649
          %v3651 = vpop.f32.mrf.mxu0
          %v3652 = vpop.f32.mrf.mxu0
          %v3653 = vadd.f32 %v3523, %v3652
          %v3654 = vpop.f32.mrf.mxu0
          %3655 = vmatprep.mubr.bf16.mxu0 0
          %3656 = vmatmul.mubr.bf16.gmra.mxu0 %v3570
          %v3657 = vpop.f32.mrf.mxu0
          %v3658 = vadd.f32 %v3528, %v3657
          %v3659 = vpop.f32.mrf.mxu0
          %v3660 = vpop.f32.mrf.mxu0
          %v3661 = vadd.f32 %v3533, %v3660
          %v3662 = vpop.f32.mrf.mxu0
          %3663 = vmatprep.mubr.bf16.mxu0 0
          %3664 = vmatmul.mubr.bf16.gmra.mxu0 %v3573
          %v3665 = vpop.f32.mrf.mxu0
          %v3666 = vadd.f32 %v3538, %v3665
          %v3667 = vpop.f32.mrf.mxu0
          %v3668 = vpop.f32.mrf.mxu0
          %v3669 = vadd.f32 %v3543, %v3668
          %v3670 = vpop.f32.mrf.mxu0
          %3671 = vdwg.mxu0
          %s3672 = smul.addr %s3459, 4
          %s3673 = scalar_lea.vmem [#allocation2], %s3672
          %v3674 = vld [vmem:[%s3673] sm:$0xf]
          %v3675 = vld [vmem:[%s3673 + $0x8] sm:$0xf]
          %v3676 = vld [vmem:[%s3673 + $0x10] sm:$0xf]
          %v3677 = vld [vmem:[%s3673 + $0x18] sm:$0xf]
          %v3678 = vld [vmem:[%s3673 + $0x20] sm:$0xf]
          %v3679 = vld [vmem:[%s3673 + $0x28] sm:$0xf]
          %v3680 = vld [vmem:[%s3673 + $0x30] sm:$0xf]
          %v3681 = vld [vmem:[%s3673 + $0x38] sm:$0xf]
          %v3682 = vld [vmem:[%s3673 + $0x40] sm:$0xf]
          %v3683 = vld [vmem:[%s3673 + $0x48] sm:$0xf]
          %v3684 = vld [vmem:[%s3673 + $0x50] sm:$0xf]
          %v3685 = vld [vmem:[%s3673 + $0x58] sm:$0xf]
          %v3686 = vld [vmem:[%s3673 + $0x60] sm:$0xf]
          %v3687 = vld [vmem:[%s3673 + $0x68] sm:$0xf]
          %v3688 = vld [vmem:[%s3673 + $0x70] sm:$0xf]
          %v3689 = vld [vmem:[%s3673 + $0x78] sm:$0xf]
          %v3690 = vunpack.c.l.bf16 %v3674
          %v3691 = vunpack.c.l.bf16 %v3675
          %v3692 = vunpack.c.l.bf16 %v3676
          %v3693 = vunpack.c.l.bf16 %v3677
          %v3694 = vunpack.c.l.bf16 %v3678
          %v3695 = vunpack.c.l.bf16 %v3679
          %v3696 = vunpack.c.l.bf16 %v3680
          %v3697 = vunpack.c.l.bf16 %v3681
          %v3698 = vunpack.c.l.bf16 %v3682
          %v3699 = vunpack.c.l.bf16 %v3683
          %v3700 = vunpack.c.l.bf16 %v3684
          %v3701 = vunpack.c.l.bf16 %v3685
          %v3702 = vunpack.c.l.bf16 %v3686
          %v3703 = vunpack.c.l.bf16 %v3687
          %v3704 = vunpack.c.l.bf16 %v3688
          %v3705 = vunpack.c.l.bf16 %v3689
          %v3706 = vadd.f32 %v3690, %v3610
          %v3707 = vadd.f32 %v3691, %v3613
          %v3708 = vadd.f32 %v3692, %v3618
          %v3709 = vadd.f32 %v3693, %v3621
          %v3710 = vadd.f32 %v3694, %v3626
          %v3711 = vadd.f32 %v3695, %v3629
          %v3712 = vadd.f32 %v3696, %v3634
          %v3713 = vadd.f32 %v3697, %v3637
          %v3714 = vadd.f32 %v3698, %v3642
          %v3715 = vadd.f32 %v3699, %v3645
          %v3716 = vadd.f32 %v3700, %v3650
          %v3717 = vadd.f32 %v3701, %v3653
          %v3718 = vadd.f32 %v3702, %v3658
          %v3719 = vadd.f32 %v3703, %v3661
          %v3720 = vadd.f32 %v3704, %v3666
          %v3721 = vadd.f32 %v3705, %v3669
          %v3722 = vmax.f32 %v3706, 0.0
          %v3723 = vmax.f32 %v3707, 0.0
          %v3724 = vmax.f32 %v3708, 0.0
          %v3725 = vmax.f32 %v3709, 0.0
          %v3726 = vmax.f32 %v3710, 0.0
          %v3727 = vmax.f32 %v3711, 0.0
          %v3728 = vmax.f32 %v3712, 0.0
          %v3729 = vmax.f32 %v3713, 0.0
          %v3730 = vmax.f32 %v3714, 0.0
          %v3731 = vmax.f32 %v3715, 0.0
          %v3732 = vmax.f32 %v3716, 0.0
          %v3733 = vmax.f32 %v3717, 0.0
          %v3734 = vmax.f32 %v3718, 0.0
          %v3735 = vmax.f32 %v3719, 0.0
          %v3736 = vmax.f32 %v3720, 0.0
          %v3737 = vmax.f32 %v3721, 0.0
          %v3738 = vpack.c.bf16 %v3723, %v3722
          %v3739 = vpack.c.bf16 %v3725, %v3724
          %v3740 = vpack.c.bf16 %v3727, %v3726
          %v3741 = vpack.c.bf16 %v3729, %v3728
          %v3742 = vpack.c.bf16 %v3731, %v3730
          %v3743 = vpack.c.bf16 %v3733, %v3732
          %v3744 = vpack.c.bf16 %v3735, %v3734
          %v3745 = vpack.c.bf16 %v3737, %v3736
          %v3754 = vunpack.c.l.b16 %v3738
          %v3755 = vunpack.c.h.b16 %v3738
          %v3756 = vunpack.c.l.b16 %v3739
          %v3757 = vunpack.c.h.b16 %v3739
          %v3758 = vunpack.c.l.b16 %v3740
          %v3759 = vunpack.c.h.b16 %v3740
          %v3760 = vunpack.c.l.b16 %v3741
          %v3761 = vunpack.c.h.b16 %v3741
          %v3762 = vunpack.c.l.b16 %v3742
          %v3763 = vunpack.c.h.b16 %v3742
          %v3764 = vunpack.c.l.b16 %v3743
          %v3765 = vunpack.c.h.b16 %v3743
          %v3766 = vunpack.c.l.b16 %v3744
          %v3767 = vunpack.c.h.b16 %v3744
          %v3768 = vunpack.c.l.b16 %v3745
          %v3769 = vunpack.c.h.b16 %v3745
          %v3770 = vpack.c.b16 %v3754, %v3754
          %v3771 = vpack.c.b16 %v3755, %v3755
          %v3772 = vpack.c.b16 %v3756, %v3756
          %v3773 = vpack.c.b16 %v3757, %v3757
          %v3774 = vpack.c.b16 %v3758, %v3758
          %v3775 = vpack.c.b16 %v3759, %v3759
          %v3776 = vpack.c.b16 %v3760, %v3760
          %v3777 = vpack.c.b16 %v3761, %v3761
          %v3778 = vpack.c.b16 %v3762, %v3762
          %v3779 = vpack.c.b16 %v3763, %v3763
          %v3780 = vpack.c.b16 %v3764, %v3764
          %v3781 = vpack.c.b16 %v3765, %v3765
          %v3782 = vpack.c.b16 %v3766, %v3766
          %v3783 = vpack.c.b16 %v3767, %v3767
          %v3784 = vpack.c.b16 %v3768, %v3768
          %v3785 = vpack.c.b16 %v3769, %v3769
          %s3802 = smul.u32 %s3446, 16
          %s3803 = smul.addr %s3802, 4
          %s3804 = scalar_lea.vmem [#allocation5], %s3803
          %3805 = vst [vmem:[%s3804] sm:$0xf] %v3770
          %3806 = vst [vmem:[%s3804 + $0x4] sm:$0xf] %v3771
          %3807 = vst [vmem:[%s3804 + $0x8] sm:$0xf] %v3772
          %3808 = vst [vmem:[%s3804 + $0xc] sm:$0xf] %v3773
          %3809 = vst [vmem:[%s3804 + $0x10] sm:$0xf] %v3774
          %3810 = vst [vmem:[%s3804 + $0x14] sm:$0xf] %v3775
          %3811 = vst [vmem:[%s3804 + $0x18] sm:$0xf] %v3776
          %3812 = vst [vmem:[%s3804 + $0x1c] sm:$0xf] %v3777
          %3813 = vst [vmem:[%s3804 + $0x20] sm:$0xf] %v3778
          %3814 = vst [vmem:[%s3804 + $0x24] sm:$0xf] %v3779
          %3815 = vst [vmem:[%s3804 + $0x28] sm:$0xf] %v3780
          %3816 = vst [vmem:[%s3804 + $0x2c] sm:$0xf] %v3781
          %3817 = vst [vmem:[%s3804 + $0x30] sm:$0xf] %v3782
          %3818 = vst [vmem:[%s3804 + $0x34] sm:$0xf] %v3783
          %3819 = vst [vmem:[%s3804 + $0x38] sm:$0xf] %v3784
          %3820 = vst [vmem:[%s3804 + $0x3c] sm:$0xf] %v3785
          %s3821 = sadd.s32 %s3459, %s262
          %s3822 = smul.addr %s3821, 64
          %s3823 = scalar_lea.hbm %s6, %s3822
          %s3824 = scalar_lea.sflag [#allocation7], %s3446
          %s3826 = sshll.u32 %s3804, 4
          %s3827 = int_to_ptr.vmem [resolvable:$true] %s3826
          %3829 = dma.vmem_to_hbm [thread:$0]  %s3827, 1024, %s3823, %s3824, 64, 128, 4
        $region179: #{tpu_custom_call.1} parent=39 // loop_footer
          %s3445 = sadd.s32 1, %s3441
        $region180: #{tpu_custom_call.1} parent=39 // loop_footer_branch
          %3440 = sbr.rel target = $region176
        $region181: #{tpu_custom_call.1} parent=39 // loop_exit
          _
        %s3830 = scalar_lea.sflag [#allocation7], 1
        %s3831 = smul.u32 4, 16
        %s3832 = smul.u32 %s3831, 1
        %s3833 = sshll.u32 %s3832, 4
        %3834 = dma.done %s3830, %s3833
        %s3835 = sshll.u32 %s3832, 4
        %3836 = dma.done [#allocation7], %s3835
      $region40: #{tpu_custom_call.1} parent=5 // pred_fallthru
        _
    $region6: #{tpu_custom_call.1} parent=1 // loop_footer
      %s20 = sadd.s32 1, %s16
    $region7: #{tpu_custom_call.1} parent=1 // loop_footer_branch
      %15 = sbr.rel target = $region3
    $region8: #{tpu_custom_call.1} parent=1 // loop_exit
      _
    %3837 = vsyncpa [#allocation9], 1
    %s3838 = scalar_lea.sflag [#allocation9], 1
    %3839 = vsyncpa %s3838, 1
    %3840 = vsyncpa [#allocation11], 1
  %3841 = vsyncmov [#allocation6]
  %s3842 = vpop.sfrf %3841
  %p3843 = scmp.eq.s32.totalorder %s3842, 0
  %p3844 = pneg %p3843
  %3846 = shalt.err (%p3844)
  %s3847 = scalar_lea.sflag [#allocation6], 1
  %3848 = vsyncmov %s3847
  %s3849 = vpop.sfrf %3848
  %p3850 = scmp.eq.s32.totalorder %s3849, 0
  %p3851 = pneg %p3850
  %3853 = shalt.err (%p3851)
  %3854 = vsyncmov [#allocation7]
  %s3855 = vpop.sfrf %3854
  %p3856 = scmp.eq.s32.totalorder %s3855, 0
  %p3857 = pneg %p3856
  %3859 = shalt.err (%p3857)
  %s3860 = scalar_lea.sflag [#allocation7], 1
  %3861 = vsyncmov %s3860
  %s3862 = vpop.sfrf %3861
  %p3863 = scmp.eq.s32.totalorder %s3862, 0
  %p3864 = pneg %p3863
  %3866 = shalt.err (%p3864)

</llo_original>
